<compile_context>
chip_gen: v5e
topology: v5e:2x2
jax: 0.10.0
libtpu: 0.0.40
codegen_flags: <defaults>
</compile_context>

<pallas_src>
import functools
import math

import jax
import jax.numpy as jnp
from jax.experimental import pallas as pl
from jax.experimental.pallas import tpu as pltpu

LN_EPS = 1e-5                        # nn.LayerNorm default eps
_VMEM_LIMIT = 32 * 1024 * 1024       # >= scoped default on v5e (16M) / v6e / v7x (32M)
_GELU_C = math.sqrt(2.0 / math.pi)


# ----------------------------- in-kernel math -----------------------------

def _gelu(x):
    # tanh-form GELU (torch nn.GELU(approximate='tanh')); tanh runs on the EUP
    # slot so the FFN elementwise path stays off the VALU.  Kept in f32.
    return 0.5 * x * (1.0 + jnp.tanh(_GELU_C * (x + 0.044715 * x * x * x)))


def _layernorm(x, gamma, beta):
    mu = jnp.mean(x, axis=-1, keepdims=True)
    var = jnp.mean(jnp.square(x - mu), axis=-1, keepdims=True)
    return (x - mu) * jax.lax.rsqrt(var + LN_EPS) * gamma + beta


def _mha(xn, w_qkv, w_out, b_out, *, heads):
    """Multi-head attention on a (TB, n, d) block.

    w_qkv: (d, 3d) bf16, column order [q | k | v], softmax scale pre-folded into
           the q columns.   w_out: (d, d) bf16.   b_out: (1, d) f32.
    """
    d = xn.shape[-1]
    dh = d // heads
    # One fused, lane-dense QKV projection (bf16 in, f32 accumulation).
    qkv = jnp.dot(xn.astype(jnp.bfloat16), w_qkv,
                  preferred_element_type=jnp.float32)            # (TB, n, 3d)
    heads_out = []
    for h in range(heads):
        qh = qkv[:, :, h * dh:(h + 1) * dh].astype(jnp.bfloat16)
        kh = qkv[:, :, d + h * dh:d + (h + 1) * dh].astype(jnp.bfloat16)
        vh = qkv[:, :, 2 * d + h * dh:2 * d + (h + 1) * dh].astype(jnp.bfloat16)
        dots = jnp.einsum('bnd,bmd->bnm', qh, kh,
                          preferred_element_type=jnp.float32)    # (TB, n, n) f32
        dots = dots - jnp.max(dots, axis=-1, keepdims=True)
        e = jnp.exp(dots)
        attn = e * pl.reciprocal(jnp.sum(e, axis=-1, keepdims=True), approx=True)
        heads_out.append(jnp.einsum('bnm,bmd->bnd', attn.astype(jnp.bfloat16), vh,
                                    preferred_element_type=jnp.float32))
    out = jnp.concatenate(heads_out, axis=-1).astype(jnp.bfloat16)   # (TB, n, d)
    # Single concat-heads output projection.
    return jnp.dot(out, w_out, preferred_element_type=jnp.float32) + b_out


# -------------------------------- kernels ---------------------------------

def _patch_embed_kernel(x_ref, w_ref, b_ref, o_ref):
    o_ref[...] = (jnp.dot(x_ref[...].astype(jnp.bfloat16), w_ref[...],
                          preferred_element_type=jnp.float32) + b_ref[...])


def _transformer_block_kernel(x_ref, ln1_g, ln1_b, w_qkv, w_out, b_out,
                              ln2_g, ln2_b, w_ff1, b_ff1, w_ff2, b_ff2,
                              o_ref, *, heads):
    x = x_ref[...]                                               # (TB, n, d) f32
    xn = _layernorm(x, ln1_g[...], ln1_b[...])
    x = x + _mha(xn, w_qkv[...], w_out[...], b_out[...], heads=heads)
    xn2 = _layernorm(x, ln2_g[...], ln2_b[...])
    h = jnp.dot(xn2.astype(jnp.bfloat16), w_ff1[...],
                preferred_element_type=jnp.float32) + b_ff1[...]
    h = _gelu(h)
    h = jnp.dot(h.astype(jnp.bfloat16), w_ff2[...],
                preferred_element_type=jnp.float32) + b_ff2[...]
    o_ref[...] = x + h


def _attn_residual_kernel(x_ref, ln_g, ln_b, w_qkv, w_out, b_out, o_ref, *, heads):
    x = x_ref[...]                                               # (TB, F, d) f32
    xn = _layernorm(x, ln_g[...], ln_b[...])
    o_ref[...] = x + _mha(xn, w_qkv[...], w_out[...], b_out[...], heads=heads)


def _mlp_head_kernel(x_ref, ln_g, ln_b, w1, b1, w2, b2, o_ref):
    xn = _layernorm(x_ref[...], ln_g[...], ln_b[...])
    h = _gelu(jnp.dot(xn.astype(jnp.bfloat16), w1[...],
                      preferred_element_type=jnp.float32) + b1[...])
    o_ref[...] = jnp.dot(h.astype(jnp.bfloat16), w2[...],
                         preferred_element_type=jnp.float32) + b2[...]


# ------------------------------- wrappers ----------------------------------

def _param_spec(p):
    # Replicated (grid-invariant) weight block.  At production ViT widths on
    # v7x (64 MiB VMEM) consider pipeline_mode=pl.Buffered(1) here plus a
    # K-tiled FFN; unnecessary at these toy shapes.
    nd = p.ndim
    return pl.BlockSpec(p.shape, lambda i, _nd=nd: (0,) * _nd)


def _pick_block(total, max_blk=8, min_grid=2):
    """Largest divisor of `total` <= max_blk that still leaves >= min_grid grid
    steps (keeps both v7x TensorCores busy)."""
    for t in range(min(total, max_blk), 0, -1):
        if total % t == 0 and total // t >= min_grid:
            return t
    return 1


def _compiler_params():
    return pltpu.CompilerParams(dimension_semantics=("parallel",),
                                vmem_limit_bytes=_VMEM_LIMIT)


def run_patch_embed(patches, w, b):
    m, k = patches.shape
    d = w.shape[1]
    mb = min(m, 256)
    return pl.pallas_call(
        _patch_embed_kernel,
        grid=(pl.cdiv(m, mb),),
        in_specs=[pl.BlockSpec((mb, k), lambda i: (i, 0)),
                  pl.BlockSpec((k, d), lambda i: (0, 0)),
                  pl.BlockSpec((1, d), lambda i: (0, 0))],
        out_specs=pl.BlockSpec((mb, d), lambda i: (i, 0)),
        out_shape=jax.ShapeDtypeStruct((m, d), jnp.float32),
        compiler_params=_compiler_params(),
    )(patches, w, b)


def run_transformer_block(x, block_params, heads):
    bf, n, d = x.shape
    tb = _pick_block(bf)
    kernel = functools.partial(_transformer_block_kernel, heads=heads)
    seq_spec = pl.BlockSpec((tb, n, d), lambda i: (i, 0, 0))
    return pl.pallas_call(
        kernel,
        grid=(bf // tb,),
        in_specs=[seq_spec] + [_param_spec(p) for p in block_params],
        out_specs=seq_spec,
        out_shape=jax.ShapeDtypeStruct((bf, n, d), jnp.float32),
        compiler_params=_compiler_params(),
    )(x, *block_params)


def run_attn_residual(x, attn_params, heads):
    bp, f, d = x.shape
    tb = _pick_block(bp)
    kernel = functools.partial(_attn_residual_kernel, heads=heads)
    seq_spec = pl.BlockSpec((tb, f, d), lambda i: (i, 0, 0))
    return pl.pallas_call(
        kernel,
        grid=(bp // tb,),
        in_specs=[seq_spec] + [_param_spec(p) for p in attn_params],
        out_specs=seq_spec,
        out_shape=jax.ShapeDtypeStruct((bp, f, d), jnp.float32),
        compiler_params=_compiler_params(),
    )(x, *attn_params)


def run_mlp_head(x, head_params):
    bsz, d = x.shape
    nc = head_params[-1].shape[1]
    mb = min(bsz, 256)
    return pl.pallas_call(
        _mlp_head_kernel,
        grid=(pl.cdiv(bsz, mb),),
        in_specs=[pl.BlockSpec((mb, d), lambda i: (i, 0))]
                 + [_param_spec(p) for p in head_params],
        out_specs=pl.BlockSpec((mb, nc), lambda i: (i, 0)),
        out_shape=jax.ShapeDtypeStruct((bsz, nc), jnp.float32),
        compiler_params=_compiler_params(),
    )(x, *head_params)


# --------------------------- parameters (synthetic) -------------------------

def init_params(key, cfg):
    d, mlp, p = cfg['dim'], cfg['mlp_dim'], cfg['patch_size']
    heads = cfg['heads']
    dh = d // heads
    F = cfg['num_frames']
    P = (cfg['image_size'] // p) ** 2
    nc = cfg['num_classes']
    depth = cfg['depth']
    keys = iter(jax.random.split(key, 256))

    def w(shape, scale=0.02):
        return (scale * jax.random.normal(next(keys), shape)).astype(jnp.float32)

    def bf16(a):
        return a.astype(jnp.bfloat16)

    def mha_params():
        w_qkv = w((d, 3 * d))                 # nn.Linear(dim, 3*dim, bias=False)
        # Fold the 1/sqrt(dh) attention scale into the q columns (one-time).
        w_qkv = w_qkv.at[:, :d].multiply(dh ** -0.5)
        w_out = w((d, d))                     # nn.Linear(dim, dim)
        b_out = w((1, d))
        return bf16(w_qkv), bf16(w_out), b_out

    ones = jnp.ones((1, d), jnp.float32)
    zeros = jnp.zeros((1, d), jnp.float32)

    params = {
        'patch_w': bf16(w((3 * p * p, d))),   # flattened Conv2d weight, (c, i, j)
        'patch_b': w((1, d)),
        'cls_token': w((1, 1, 1, d)),
        'pos_embedding': w((1, 1, P + 1, d)),
        'temporal_embedding': w((1, F, 1, d)),
        'blocks': [],
        'temporal': [],
    }
    for _ in range(depth):
        w_qkv, w_out, b_out = mha_params()
        params['blocks'].append([
            ones, zeros, w_qkv, w_out, b_out,                 # norm1 + attn
            ones, zeros,                                      # norm2
            bf16(w((d, mlp))), w((1, mlp)),                   # ffn linear 1
            bf16(w((mlp, d))), w((1, d)),                     # ffn linear 2
        ])
    for _ in range(depth // 2):
        w_qkv, w_out, b_out = mha_params()
        params['temporal'].append([ones, zeros, w_qkv, w_out, b_out])
    params['head'] = [ones, zeros, bf16(w((d, mlp))), w((1, mlp)),
                      bf16(w((mlp, nc))), w((1, nc))]
    return params


# ------------------------------ full forward -------------------------------

def video_vit_forward(x, params, cfg):
    B, F, C, H, W = x.shape
    p, d, heads = cfg['patch_size'], cfg['dim'], cfg['heads']
    Hp, Wp = H // p, W // p
    P = Hp * Wp

    # PatchEmbedding: NCHW conv (kernel=stride=patch) == patch-flatten @ W
    xr = x.reshape(B * F, C, Hp, p, Wp, p).transpose(0, 2, 4, 1, 3, 5)
    patches = xr.reshape(B * F * P, C * p * p)
    emb = run_patch_embed(patches, params['patch_w'], params['patch_b'])
    tokens = emb.reshape(B, F, P, d)

    cls = jnp.broadcast_to(params['cls_token'], (B, F, 1, d))
    tokens = jnp.concatenate([cls, tokens], axis=2)           # (B, F, P+1, d)
    tokens = tokens + params['pos_embedding'] + params['temporal_embedding']
    # nn.Dropout layers are identity here (eval-mode semantics).

    depth = cfg['depth']
    n_temporal = depth // 2
    for i in range(depth):
        b, f, pp, dd = tokens.shape
        flat = tokens.reshape(b * f, pp, dd)
        flat = run_transformer_block(flat, params['blocks'][i], heads)
        tokens = flat.reshape(b, f, pp, dd)
        # Matches the PyTorch reference exactly: temporal attention only fires
        # when i < depth//2 AND i is odd (so some allocated temporal blocks are
        # intentionally unused, e.g. depth=4 only runs temporal[0] at i=1).
        if i < n_temporal and i % 2 == 1:
            # TODO(synk): the frame<->patch layout swap stays as an XLA transpose;
            # an in-place strided BlockSpec would need (1, F, 1, d) blocks (violates
            # the (8,128) block rule at these shapes) or an in-kernel rank-3
            # leading-dim transpose, so it is kept host-side for robust lowering.
            t = tokens.transpose(0, 2, 1, 3).reshape(b * pp, f, dd)
            t = run_attn_residual(t, params['temporal'][i // 2], heads)
            tokens = t.reshape(b, pp, f, dd).transpose(0, 2, 1, 3)

    cls_feat = tokens[:, :, 0]             # (B, F, d)
    pooled = jnp.mean(cls_feat, axis=1)    # (B, d)
    return run_mlp_head(pooled, params['head'])


# --------------------------------- main -------------------------------------

if __name__ == "__main__":
    cfg = dict(image_size=16, patch_size=8, num_frames=4, num_classes=10,
               dim=32, depth=4, heads=4, mlp_dim=64, dropout=0.1, emb_dropout=0.1)
    key = jax.random.PRNGKey(0)
    pkey, xkey = jax.random.split(key)
    params = init_params(pkey, cfg)
    x = jax.random.normal(
        xkey, (2, cfg['num_frames'], 3, cfg['image_size'], cfg['image_size']),
        dtype=jnp.float32)
    fwd = jax.jit(functools.partial(video_vit_forward, cfg=cfg))
    logits = fwd(x, params)
    jax.block_until_ready(logits)
    assert logits.shape == (2, cfg['num_classes'])
    assert bool(jnp.all(jnp.isfinite(logits)))
    print("KERNEL_OK")
</pallas_src>

<mosaic_0001>
module attributes {stable_mosaic.version = 11 : i64} {
  func.func @_patch_embed_kernel(%arg0: i32, %arg1: memref<32x192xf32, #tpu.memory_space<vmem>>, %arg2: memref<192x32xbf16, #tpu.memory_space<vmem>>, %arg3: memref<1x32xf32, #tpu.memory_space<vmem>>, %arg4: memref<32x32xf32, #tpu.memory_space<vmem>>) attributes {dimension_semantics = [#tpu.dimension_semantics<parallel>], iteration_bounds = array<i64: 1>, scalar_prefetch = 0 : i64, scratch_operands = 0 : i64, tpu.core_type = #tpu.core_type<tc>, window_params = [{transform_indices = @transform_0, window_bounds = array<i64: 32, 192>}, {pipeline_mode = #tpu.pipeline_mode<synchronous>, transform_indices = @transform_1, window_bounds = array<i64: 192, 32>}, {pipeline_mode = #tpu.pipeline_mode<synchronous>, transform_indices = @transform_2, window_bounds = array<i64: 1, 32>}, {transform_indices = @transform_3, window_bounds = array<i64: 32, 32>}]} {
    %c0 = arith.constant 0 : index
    %c0_0 = arith.constant 0 : index
    %0 = vector.load %arg1[%c0, %c0_0] : memref<32x192xf32, #tpu.memory_space<vmem>>, vector<32x192xf32>
    %1 = arith.truncf %0 : vector<32x192xf32> to vector<32x192xbf16>
    %c0_1 = arith.constant 0 : index
    %c0_2 = arith.constant 0 : index
    %2 = vector.load %arg2[%c0_1, %c0_2] : memref<192x32xbf16, #tpu.memory_space<vmem>>, vector<192x32xbf16>
    %cst = arith.constant dense<0.000000e+00> : vector<32x32xf32>
    %3 = tpu.matmul %1, %2, %cst {dimension_numbers = #tpu.dot_dimension_numbers<[1], [0], [0], [1], [0, 0, 1, 1], [], []>} : vector<32x192xbf16>, vector<192x32xbf16>, vector<32x32xf32> -> vector<32x32xf32>
    %c0_3 = arith.constant 0 : index
    %c0_4 = arith.constant 0 : index
    %4 = vector.load %arg3[%c0_3, %c0_4] : memref<1x32xf32, #tpu.memory_space<vmem>>, vector<1x32xf32>
    %5 = vector.broadcast %4 : vector<1x32xf32> to vector<32x32xf32>
    %6 = arith.addf %3, %5 : vector<32x32xf32>
    %c0_5 = arith.constant 0 : index
    %c0_6 = arith.constant 0 : index
    %7 = vector.load %arg4[%c0_5, %c0_6] : memref<32x32xf32, #tpu.memory_space<vmem>>, vector<32x32xf32>
    tpu.vector_store %arg4[%c0_5, %c0_6], %6 {strides = array<i32>} : memref<32x32xf32, #tpu.memory_space<vmem>>, vector<32x32xf32>,
    return
  }
  func.func @transform_0(%arg0: i32) -> (i32, i32) {
    %c0_i32 = arith.constant 0 : i32
    %c0_i32_0 = arith.constant 0 : i32
    return %arg0, %c0_i32 : i32, i32
  }
  func.func @transform_1(%arg0: i32) -> (i32, i32) {
    %c0_i32 = arith.constant 0 : i32
    %c0_i32_0 = arith.constant 0 : i32
    %c0_i32_1 = arith.constant 0 : i32
    return %c0_i32, %c0_i32_0 : i32, i32
  }
  func.func @transform_2(%arg0: i32) -> (i32, i32) {
    %c0_i32 = arith.constant 0 : i32
    %c0_i32_0 = arith.constant 0 : i32
    %c0_i32_1 = arith.constant 0 : i32
    return %c0_i32, %c0_i32_0 : i32, i32
  }
  func.func @transform_3(%arg0: i32) -> (i32, i32) {
    %c0_i32 = arith.constant 0 : i32
    %c0_i32_0 = arith.constant 0 : i32
    return %arg0, %c0_i32 : i32, i32
  }
}

module attributes {stable_mosaic.version = 11 : i64} {
  func.func @_transformer_block_kernel(%arg0: i32, %arg1: memref<4x5x32xf32, #tpu.memory_space<vmem>>, %arg2: memref<1x32xf32, #tpu.memory_space<vmem>>, %arg3: memref<1x32xf32, #tpu.memory_space<vmem>>, %arg4: memref<32x96xbf16, #tpu.memory_space<vmem>>, %arg5: memref<32x32xbf16, #tpu.memory_space<vmem>>, %arg6: memref<1x32xf32, #tpu.memory_space<vmem>>, %arg7: memref<1x32xf32, #tpu.memory_space<vmem>>, %arg8: memref<1x32xf32, #tpu.memory_space<vmem>>, %arg9: memref<32x64xbf16, #tpu.memory_space<vmem>>, %arg10: memref<1x64xf32, #tpu.memory_space<vmem>>, %arg11: memref<64x32xbf16, #tpu.memory_space<vmem>>, %arg12: memref<1x32xf32, #tpu.memory_space<vmem>>, %arg13: memref<4x5x32xf32, #tpu.memory_space<vmem>>) attributes {dimension_semantics = [#tpu.dimension_semantics<parallel>], iteration_bounds = array<i64: 2>, scalar_prefetch = 0 : i64, scratch_operands = 0 : i64, tpu.core_type = #tpu.core_type<tc>, window_params = [{transform_indices = @transform_0, window_bounds = array<i64: 4, 5, 32>}, {pipeline_mode = #tpu.pipeline_mode<synchronous>, transform_indices = @transform_1, window_bounds = array<i64: 1, 32>}, {pipeline_mode = #tpu.pipeline_mode<synchronous>, transform_indices = @transform_2, window_bounds = array<i64: 1, 32>}, {pipeline_mode = #tpu.pipeline_mode<synchronous>, transform_indices = @transform_3, window_bounds = array<i64: 32, 96>}, {pipeline_mode = #tpu.pipeline_mode<synchronous>, transform_indices = @transform_4, window_bounds = array<i64: 32, 32>}, {pipeline_mode = #tpu.pipeline_mode<synchronous>, transform_indices = @transform_5, window_bounds = array<i64: 1, 32>}, {pipeline_mode = #tpu.pipeline_mode<synchronous>, transform_indices = @transform_6, window_bounds = array<i64: 1, 32>}, {pipeline_mode = #tpu.pipeline_mode<synchronous>, transform_indices = @transform_7, window_bounds = array<i64: 1, 32>}, {pipeline_mode = #tpu.pipeline_mode<synchronous>, transform_indices = @transform_8, window_bounds = array<i64: 32, 64>}, {pipeline_mode = #tpu.pipeline_mode<synchronous>, transform_indices = @transform_9, window_bounds = array<i64: 1, 64>}, {pipeline_mode = #tpu.pipeline_mode<synchronous>, transform_indices = @transform_10, window_bounds = array<i64: 64, 32>}, {pipeline_mode = #tpu.pipeline_mode<synchronous>, transform_indices = @transform_11, window_bounds = array<i64: 1, 32>}, {transform_indices = @transform_12, window_bounds = array<i64: 4, 5, 32>}]} {
    %c0 = arith.constant 0 : index
    %c0_0 = arith.constant 0 : index
    %c0_1 = arith.constant 0 : index
    %0 = vector.load %arg1[%c0, %c0_0, %c0_1] : memref<4x5x32xf32, #tpu.memory_space<vmem>>, vector<4x5x32xf32>
    %c0_2 = arith.constant 0 : index
    %c0_3 = arith.constant 0 : index
    %1 = vector.load %arg2[%c0_2, %c0_3] : memref<1x32xf32, #tpu.memory_space<vmem>>, vector<1x32xf32>
    %c0_4 = arith.constant 0 : index
    %c0_5 = arith.constant 0 : index
    %2 = vector.load %arg3[%c0_4, %c0_5] : memref<1x32xf32, #tpu.memory_space<vmem>>, vector<1x32xf32>
    %cst = arith.constant dense<0.000000e+00> : vector<4x5xf32>
    %3 = vector.multi_reduction <add>, %0, %cst [2] : vector<4x5x32xf32> to vector<4x5xf32>
    %4 = vector.shape_cast %3 : vector<4x5xf32> to vector<4x5x1xf32>
    %cst_6 = arith.constant 3.200000e+01 : f32
    %5 = vector.broadcast %cst_6 : f32 to vector<4x5x1xf32>
    %6 = arith.divf %4, %5 : vector<4x5x1xf32>
    %7 = vector.broadcast %6 : vector<4x5x1xf32> to vector<4x5x32xf32>
    %8 = arith.subf %0, %7 : vector<4x5x32xf32>
    %9 = arith.mulf %8, %8 : vector<4x5x32xf32>
    %cst_7 = arith.constant dense<0.000000e+00> : vector<4x5xf32>
    %10 = vector.multi_reduction <add>, %9, %cst_7 [2] : vector<4x5x32xf32> to vector<4x5xf32>
    %11 = vector.shape_cast %10 : vector<4x5xf32> to vector<4x5x1xf32>
    %cst_8 = arith.constant 3.200000e+01 : f32
    %12 = vector.broadcast %cst_8 : f32 to vector<4x5x1xf32>
    %13 = arith.divf %11, %12 : vector<4x5x1xf32>
    %14 = vector.broadcast %6 : vector<4x5x1xf32> to vector<4x5x32xf32>
    %15 = arith.subf %0, %14 : vector<4x5x32xf32>
    %cst_9 = arith.constant 9.99999974E-6 : f32
    %16 = vector.broadcast %cst_9 : f32 to vector<4x5x1xf32>
    %17 = arith.addf %13, %16 : vector<4x5x1xf32>
    %18 = math.rsqrt %17 : vector<4x5x1xf32>
    %19 = vector.broadcast %18 : vector<4x5x1xf32> to vector<4x5x32xf32>
    %20 = arith.mulf %15, %19 : vector<4x5x32xf32>
    %21 = vector.shape_cast %1 : vector<1x32xf32> to vector<1x1x32xf32>
    %22 = vector.broadcast %21 : vector<1x1x32xf32> to vector<4x5x32xf32>
    %23 = arith.mulf %20, %22 : vector<4x5x32xf32>
    %24 = vector.shape_cast %2 : vector<1x32xf32> to vector<1x1x32xf32>
    %25 = vector.broadcast %24 : vector<1x1x32xf32> to vector<4x5x32xf32>
    %26 = arith.addf %23, %25 : vector<4x5x32xf32>
    %c0_10 = arith.constant 0 : index
    %c0_11 = arith.constant 0 : index
    %27 = vector.load %arg4[%c0_10, %c0_11] : memref<32x96xbf16, #tpu.memory_space<vmem>>, vector<32x96xbf16>
    %c0_12 = arith.constant 0 : index
    %c0_13 = arith.constant 0 : index
    %28 = vector.load %arg5[%c0_12, %c0_13] : memref<32x32xbf16, #tpu.memory_space<vmem>>, vector<32x32xbf16>
    %c0_14 = arith.constant 0 : index
    %c0_15 = arith.constant 0 : index
    %29 = vector.load %arg6[%c0_14, %c0_15] : memref<1x32xf32, #tpu.memory_space<vmem>>, vector<1x32xf32>
    %30 = arith.truncf %26 : vector<4x5x32xf32> to vector<4x5x32xbf16>
    %cst_16 = arith.constant dense<0.000000e+00> : vector<4x5x96xf32>
    %31 = tpu.matmul %30, %27, %cst_16 {dimension_numbers = #tpu.dot_dimension_numbers<[2], [0], [0, 1], [1], [0, 0, 0, 1, 1, 1], [], []>} : vector<4x5x32xbf16>, vector<32x96xbf16>, vector<4x5x96xf32> -> vector<4x5x96xf32>
    %32 = vector.extract_strided_slice %31 {offsets = [0, 0, 0], sizes = [4, 5, 8], strides = [1, 1, 1]} : vector<4x5x96xf32> to vector<4x5x8xf32>
    %33 = arith.truncf %32 : vector<4x5x8xf32> to vector<4x5x8xbf16>
    %34 = vector.extract_strided_slice %31 {offsets = [0, 0, 32], sizes = [4, 5, 8], strides = [1, 1, 1]} : vector<4x5x96xf32> to vector<4x5x8xf32>
    %35 = arith.truncf %34 : vector<4x5x8xf32> to vector<4x5x8xbf16>
    %36 = vector.extract_strided_slice %31 {offsets = [0, 0, 64], sizes = [4, 5, 8], strides = [1, 1, 1]} : vector<4x5x96xf32> to vector<4x5x8xf32>
    %37 = arith.truncf %36 : vector<4x5x8xf32> to vector<4x5x8xbf16>
    "tpu.trace_start"() <{level = 10 : i32, message = "bnd,bmd->bnm"}> : () -> ()
    %cst_17 = arith.constant dense<0.000000e+00> : vector<4x5x5xf32>
    %38 = tpu.matmul %33, %35, %cst_17 {dimension_numbers = #tpu.dot_dimension_numbers<[2], [2], [1], [1], [0, 0, 0, 1, 1, 1], [0], [0]>} : vector<4x5x8xbf16>, vector<4x5x8xbf16>, vector<4x5x5xf32> -> vector<4x5x5xf32>
    "tpu.trace_stop"() : () -> ()
    %cst_18 = arith.constant dense<0xFF800000> : vector<4x5xf32>
    %39 = vector.multi_reduction <maximumf>, %38, %cst_18 [2] : vector<4x5x5xf32> to vector<4x5xf32>
    %40 = vector.shape_cast %39 : vector<4x5xf32> to vector<4x5x1xf32>
    %41 = vector.broadcast %40 : vector<4x5x1xf32> to vector<4x5x5xf32>
    %42 = arith.subf %38, %41 : vector<4x5x5xf32>
    %43 = math.exp %42 : vector<4x5x5xf32>
    %cst_19 = arith.constant dense<0.000000e+00> : vector<4x5xf32>
    %44 = vector.multi_reduction <add>, %43, %cst_19 [2] : vector<4x5x5xf32> to vector<4x5xf32>
    %45 = vector.shape_cast %44 : vector<4x5xf32> to vector<4x5x1xf32>
    %46 = tpu.reciprocal %45 {approx = true} : vector<4x5x1xf32> -> vector<4x5x1xf32>
    %47 = vector.broadcast %46 : vector<4x5x1xf32> to vector<4x5x5xf32>
    %48 = arith.mulf %43, %47 : vector<4x5x5xf32>
    %49 = arith.truncf %48 : vector<4x5x5xf32> to vector<4x5x5xbf16>
    "tpu.trace_start"() <{level = 10 : i32, message = "bnm,bmd->bnd"}> : () -> ()
    %cst_20 = arith.constant dense<0.000000e+00> : vector<4x5x8xf32>
    %50 = tpu.matmul %49, %37, %cst_20 {dimension_numbers = #tpu.dot_dimension_numbers<[2], [1], [1], [2], [0, 0, 0, 1, 1, 2], [0], [0]>} : vector<4x5x5xbf16>, vector<4x5x8xbf16>, vector<4x5x8xf32> -> vector<4x5x8xf32>
    "tpu.trace_stop"() : () -> ()
    %51 = vector.extract_strided_slice %31 {offsets = [0, 0, 8], sizes = [4, 5, 8], strides = [1, 1, 1]} : vector<4x5x96xf32> to vector<4x5x8xf32>
    %52 = arith.truncf %51 : vector<4x5x8xf32> to vector<4x5x8xbf16>
    %53 = vector.extract_strided_slice %31 {offsets = [0, 0, 40], sizes = [4, 5, 8], strides = [1, 1, 1]} : vector<4x5x96xf32> to vector<4x5x8xf32>
    %54 = arith.truncf %53 : vector<4x5x8xf32> to vector<4x5x8xbf16>
    %55 = vector.extract_strided_slice %31 {offsets = [0, 0, 72], sizes = [4, 5, 8], strides = [1, 1, 1]} : vector<4x5x96xf32> to vector<4x5x8xf32>
    %56 = arith.truncf %55 : vector<4x5x8xf32> to vector<4x5x8xbf16>
    "tpu.trace_start"() <{level = 10 : i32, message = "bnd,bmd->bnm"}> : () -> ()
    %cst_21 = arith.constant dense<0.000000e+00> : vector<4x5x5xf32>
    %57 = tpu.matmul %52, %54, %cst_21 {dimension_numbers = #tpu.dot_dimension_numbers<[2], [2], [1], [1], [0, 0, 0, 1, 1, 1], [0], [0]>} : vector<4x5x8xbf16>, vector<4x5x8xbf16>, vector<4x5x5xf32> -> vector<4x5x5xf32>
    "tpu.trace_stop"() : () -> ()
    %cst_22 = arith.constant dense<0xFF800000> : vector<4x5xf32>
    %58 = vector.multi_reduction <maximumf>, %57, %cst_22 [2] : vector<4x5x5xf32> to vector<4x5xf32>
    %59 = vector.shape_cast %58 : vector<4x5xf32> to vector<4x5x1xf32>
    %60 = vector.broadcast %59 : vector<4x5x1xf32> to vector<4x5x5xf32>
    %61 = arith.subf %57, %60 : vector<4x5x5xf32>
    %62 = math.exp %61 : vector<4x5x5xf32>
    %cst_23 = arith.constant dense<0.000000e+00> : vector<4x5xf32>
    %63 = vector.multi_reduction <add>, %62, %cst_23 [2] : vector<4x5x5xf32> to vector<4x5xf32>
    %64 = vector.shape_cast %63 : vector<4x5xf32> to vector<4x5x1xf32>
    %65 = tpu.reciprocal %64 {approx = true} : vector<4x5x1xf32> -> vector<4x5x1xf32>
    %66 = vector.broadcast %65 : vector<4x5x1xf32> to vector<4x5x5xf32>
    %67 = arith.mulf %62, %66 : vector<4x5x5xf32>
    %68 = arith.truncf %67 : vector<4x5x5xf32> to vector<4x5x5xbf16>
    "tpu.trace_start"() <{level = 10 : i32, message = "bnm,bmd->bnd"}> : () -> ()
    %cst_24 = arith.constant dense<0.000000e+00> : vector<4x5x8xf32>
    %69 = tpu.matmul %68, %56, %cst_24 {dimension_numbers = #tpu.dot_dimension_numbers<[2], [1], [1], [2], [0, 0, 0, 1, 1, 2], [0], [0]>} : vector<4x5x5xbf16>, vector<4x5x8xbf16>, vector<4x5x8xf32> -> vector<4x5x8xf32>
    "tpu.trace_stop"() : () -> ()
    %70 = vector.extract_strided_slice %31 {offsets = [0, 0, 16], sizes = [4, 5, 8], strides = [1, 1, 1]} : vector<4x5x96xf32> to vector<4x5x8xf32>
    %71 = arith.truncf %70 : vector<4x5x8xf32> to vector<4x5x8xbf16>
    %72 = vector.extract_strided_slice %31 {offsets = [0, 0, 48], sizes = [4, 5, 8], strides = [1, 1, 1]} : vector<4x5x96xf32> to vector<4x5x8xf32>
    %73 = arith.truncf %72 : vector<4x5x8xf32> to vector<4x5x8xbf16>
    %74 = vector.extract_strided_slice %31 {offsets = [0, 0, 80], sizes = [4, 5, 8], strides = [1, 1, 1]} : vector<4x5x96xf32> to vector<4x5x8xf32>
    %75 = arith.truncf %74 : vector<4x5x8xf32> to vector<4x5x8xbf16>
    "tpu.trace_start"() <{level = 10 : i32, message = "bnd,bmd->bnm"}> : () -> ()
    %cst_25 = arith.constant dense<0.000000e+00> : vector<4x5x5xf32>
    %76 = tpu.matmul %71, %73, %cst_25 {dimension_numbers = #tpu.dot_dimension_numbers<[2], [2], [1], [1], [0, 0, 0, 1, 1, 1], [0], [0]>} : vector<4x5x8xbf16>, vector<4x5x8xbf16>, vector<4x5x5xf32> -> vector<4x5x5xf32>
    "tpu.trace_stop"() : () -> ()
    %cst_26 = arith.constant dense<0xFF800000> : vector<4x5xf32>
    %77 = vector.multi_reduction <maximumf>, %76, %cst_26 [2] : vector<4x5x5xf32> to vector<4x5xf32>
    %78 = vector.shape_cast %77 : vector<4x5xf32> to vector<4x5x1xf32>
    %79 = vector.broadcast %78 : vector<4x5x1xf32> to vector<4x5x5xf32>
    %80 = arith.subf %76, %79 : vector<4x5x5xf32>
    %81 = math.exp %80 : vector<4x5x5xf32>
    %cst_27 = arith.constant dense<0.000000e+00> : vector<4x5xf32>
    %82 = vector.multi_reduction <add>, %81, %cst_27 [2] : vector<4x5x5xf32> to vector<4x5xf32>
    %83 = vector.shape_cast %82 : vector<4x5xf32> to vector<4x5x1xf32>
    %84 = tpu.reciprocal %83 {approx = true} : vector<4x5x1xf32> -> vector<4x5x1xf32>
    %85 = vector.broadcast %84 : vector<4x5x1xf32> to vector<4x5x5xf32>
    %86 = arith.mulf %81, %85 : vector<4x5x5xf32>
    %87 = arith.truncf %86 : vector<4x5x5xf32> to vector<4x5x5xbf16>
    "tpu.trace_start"() <{level = 10 : i32, message = "bnm,bmd->bnd"}> : () -> ()
    %cst_28 = arith.constant dense<0.000000e+00> : vector<4x5x8xf32>
    %88 = tpu.matmul %87, %75, %cst_28 {dimension_numbers = #tpu.dot_dimension_numbers<[2], [1], [1], [2], [0, 0, 0, 1, 1, 2], [0], [0]>} : vector<4x5x5xbf16>, vector<4x5x8xbf16>, vector<4x5x8xf32> -> vector<4x5x8xf32>
    "tpu.trace_stop"() : () -> ()
    %89 = vector.extract_strided_slice %31 {offsets = [0, 0, 24], sizes = [4, 5, 8], strides = [1, 1, 1]} : vector<4x5x96xf32> to vector<4x5x8xf32>
    %90 = arith.truncf %89 : vector<4x5x8xf32> to vector<4x5x8xbf16>
    %91 = vector.extract_strided_slice %31 {offsets = [0, 0, 56], sizes = [4, 5, 8], strides = [1, 1, 1]} : vector<4x5x96xf32> to vector<4x5x8xf32>
    %92 = arith.truncf %91 : vector<4x5x8xf32> to vector<4x5x8xbf16>
    %93 = vector.extract_strided_slice %31 {offsets = [0, 0, 88], sizes = [4, 5, 8], strides = [1, 1, 1]} : vector<4x5x96xf32> to vector<4x5x8xf32>
    %94 = arith.truncf %93 : vector<4x5x8xf32> to vector<4x5x8xbf16>
    "tpu.trace_start"() <{level = 10 : i32, message = "bnd,bmd->bnm"}> : () -> ()
    %cst_29 = arith.constant dense<0.000000e+00> : vector<4x5x5xf32>
    %95 = tpu.matmul %90, %92, %cst_29 {dimension_numbers = #tpu.dot_dimension_numbers<[2], [2], [1], [1], [0, 0, 0, 1, 1, 1], [0], [0]>} : vector<4x5x8xbf16>, vector<4x5x8xbf16>, vector<4x5x5xf32> -> vector<4x5x5xf32>
    "tpu.trace_stop"() : () -> ()
    %cst_30 = arith.constant dense<0xFF800000> : vector<4x5xf32>
    %96 = vector.multi_reduction <maximumf>, %95, %cst_30 [2] : vector<4x5x5xf32> to vector<4x5xf32>
    %97 = vector.shape_cast %96 : vector<4x5xf32> to vector<4x5x1xf32>
    %98 = vector.broadcast %97 : vector<4x5x1xf32> to vector<4x5x5xf32>
    %99 = arith.subf %95, %98 : vector<4x5x5xf32>
    %100 = math.exp %99 : vector<4x5x5xf32>
    %cst_31 = arith.constant dense<0.000000e+00> : vector<4x5xf32>
    %101 = vector.multi_reduction <add>, %100, %cst_31 [2] : vector<4x5x5xf32> to vector<4x5xf32>
    %102 = vector.shape_cast %101 : vector<4x5xf32> to vector<4x5x1xf32>
    %103 = tpu.reciprocal %102 {approx = true} : vector<4x5x1xf32> -> vector<4x5x1xf32>
    %104 = vector.broadcast %103 : vector<4x5x1xf32> to vector<4x5x5xf32>
    %105 = arith.mulf %100, %104 : vector<4x5x5xf32>
    %106 = arith.truncf %105 : vector<4x5x5xf32> to vector<4x5x5xbf16>
    "tpu.trace_start"() <{level = 10 : i32, message = "bnm,bmd->bnd"}> : () -> ()
    %cst_32 = arith.constant dense<0.000000e+00> : vector<4x5x8xf32>
    %107 = tpu.matmul %106, %94, %cst_32 {dimension_numbers = #tpu.dot_dimension_numbers<[2], [1], [1], [2], [0, 0, 0, 1, 1, 2], [0], [0]>} : vector<4x5x5xbf16>, vector<4x5x8xbf16>, vector<4x5x8xf32> -> vector<4x5x8xf32>
    "tpu.trace_stop"() : () -> ()
    %108 = tpu.concatenate %50, %69, %88, %107 in 2 : vector<4x5x8xf32>, vector<4x5x8xf32>, vector<4x5x8xf32>, vector<4x5x8xf32> -> vector<4x5x32xf32>
    %109 = arith.truncf %108 : vector<4x5x32xf32> to vector<4x5x32xbf16>
    %cst_33 = arith.constant dense<0.000000e+00> : vector<4x5x32xf32>
    %110 = tpu.matmul %109, %28, %cst_33 {dimension_numbers = #tpu.dot_dimension_numbers<[2], [0], [0, 1], [1], [0, 0, 0, 1, 1, 1], [], []>} : vector<4x5x32xbf16>, vector<32x32xbf16>, vector<4x5x32xf32> -> vector<4x5x32xf32>
    %111 = vector.shape_cast %29 : vector<1x32xf32> to vector<1x1x32xf32>
    %112 = vector.broadcast %111 : vector<1x1x32xf32> to vector<4x5x32xf32>
    %113 = arith.addf %110, %112 : vector<4x5x32xf32>
    %114 = arith.addf %0, %113 : vector<4x5x32xf32>
    %c0_34 = arith.constant 0 : index
    %c0_35 = arith.constant 0 : index
    %115 = vector.load %arg7[%c0_34, %c0_35] : memref<1x32xf32, #tpu.memory_space<vmem>>, vector<1x32xf32>
    %c0_36 = arith.constant 0 : index
    %c0_37 = arith.constant 0 : index
    %116 = vector.load %arg8[%c0_36, %c0_37] : memref<1x32xf32, #tpu.memory_space<vmem>>, vector<1x32xf32>
    %cst_38 = arith.constant dense<0.000000e+00> : vector<4x5xf32>
    %117 = vector.multi_reduction <add>, %114, %cst_38 [2] : vector<4x5x32xf32> to vector<4x5xf32>
    %118 = vector.shape_cast %117 : vector<4x5xf32> to vector<4x5x1xf32>
    %cst_39 = arith.constant 3.200000e+01 : f32
    %119 = vector.broadcast %cst_39 : f32 to vector<4x5x1xf32>
    %120 = arith.divf %118, %119 : vector<4x5x1xf32>
    %121 = vector.broadcast %120 : vector<4x5x1xf32> to vector<4x5x32xf32>
    %122 = arith.subf %114, %121 : vector<4x5x32xf32>
    %123 = arith.mulf %122, %122 : vector<4x5x32xf32>
    %cst_40 = arith.constant dense<0.000000e+00> : vector<4x5xf32>
    %124 = vector.multi_reduction <add>, %123, %cst_40 [2] : vector<4x5x32xf32> to vector<4x5xf32>
    %125 = vector.shape_cast %124 : vector<4x5xf32> to vector<4x5x1xf32>
    %cst_41 = arith.constant 3.200000e+01 : f32
    %126 = vector.broadcast %cst_41 : f32 to vector<4x5x1xf32>
    %127 = arith.divf %125, %126 : vector<4x5x1xf32>
    %128 = vector.broadcast %120 : vector<4x5x1xf32> to vector<4x5x32xf32>
    %129 = arith.subf %114, %128 : vector<4x5x32xf32>
    %cst_42 = arith.constant 9.99999974E-6 : f32
    %130 = vector.broadcast %cst_42 : f32 to vector<4x5x1xf32>
    %131 = arith.addf %127, %130 : vector<4x5x1xf32>
    %132 = math.rsqrt %131 : vector<4x5x1xf32>
    %133 = vector.broadcast %132 : vector<4x5x1xf32> to vector<4x5x32xf32>
    %134 = arith.mulf %129, %133 : vector<4x5x32xf32>
    %135 = vector.shape_cast %115 : vector<1x32xf32> to vector<1x1x32xf32>
    %136 = vector.broadcast %135 : vector<1x1x32xf32> to vector<4x5x32xf32>
    %137 = arith.mulf %134, %136 : vector<4x5x32xf32>
    %138 = vector.shape_cast %116 : vector<1x32xf32> to vector<1x1x32xf32>
    %139 = vector.broadcast %138 : vector<1x1x32xf32> to vector<4x5x32xf32>
    %140 = arith.addf %137, %139 : vector<4x5x32xf32>
    %141 = arith.truncf %140 : vector<4x5x32xf32> to vector<4x5x32xbf16>
    %c0_43 = arith.constant 0 : index
    %c0_44 = arith.constant 0 : index
    %142 = vector.load %arg9[%c0_43, %c0_44] : memref<32x64xbf16, #tpu.memory_space<vmem>>, vector<32x64xbf16>
    %cst_45 = arith.constant dense<0.000000e+00> : vector<4x5x64xf32>
    %143 = tpu.matmul %141, %142, %cst_45 {dimension_numbers = #tpu.dot_dimension_numbers<[2], [0], [0, 1], [1], [0, 0, 0, 1, 1, 1], [], []>} : vector<4x5x32xbf16>, vector<32x64xbf16>, vector<4x5x64xf32> -> vector<4x5x64xf32>
    %c0_46 = arith.constant 0 : index
    %c0_47 = arith.constant 0 : index
    %144 = vector.load %arg10[%c0_46, %c0_47] : memref<1x64xf32, #tpu.memory_space<vmem>>, vector<1x64xf32>
    %145 = vector.shape_cast %144 : vector<1x64xf32> to vector<1x1x64xf32>
    %146 = vector.broadcast %145 : vector<1x1x64xf32> to vector<4x5x64xf32>
    %147 = arith.addf %143, %146 : vector<4x5x64xf32>
    %cst_48 = arith.constant 5.000000e-01 : f32
    %148 = vector.broadcast %cst_48 : f32 to vector<4x5x64xf32>
    %149 = arith.mulf %148, %147 : vector<4x5x64xf32>
    %cst_49 = arith.constant 4.471500e-02 : f32
    %150 = vector.broadcast %cst_49 : f32 to vector<4x5x64xf32>
    %151 = arith.mulf %150, %147 : vector<4x5x64xf32>
    %152 = arith.mulf %151, %147 : vector<4x5x64xf32>
    %153 = arith.mulf %152, %147 : vector<4x5x64xf32>
    %154 = arith.addf %147, %153 : vector<4x5x64xf32>
    %cst_50 = arith.constant 0.797884583 : f32
    %155 = vector.broadcast %cst_50 : f32 to vector<4x5x64xf32>
    %156 = arith.mulf %155, %154 : vector<4x5x64xf32>
    %157 = math.tanh %156 : vector<4x5x64xf32>
    %cst_51 = arith.constant 1.000000e+00 : f32
    %158 = vector.broadcast %cst_51 : f32 to vector<4x5x64xf32>
    %159 = arith.addf %158, %157 : vector<4x5x64xf32>
    %160 = arith.mulf %149, %159 : vector<4x5x64xf32>
    %161 = arith.truncf %160 : vector<4x5x64xf32> to vector<4x5x64xbf16>
    %c0_52 = arith.constant 0 : index
    %c0_53 = arith.constant 0 : index
    %162 = vector.load %arg11[%c0_52, %c0_53] : memref<64x32xbf16, #tpu.memory_space<vmem>>, vector<64x32xbf16>
    %cst_54 = arith.constant dense<0.000000e+00> : vector<4x5x32xf32>
    %163 = tpu.matmul %161, %162, %cst_54 {dimension_numbers = #tpu.dot_dimension_numbers<[2], [0], [0, 1], [1], [0, 0, 0, 1, 1, 1], [], []>} : vector<4x5x64xbf16>, vector<64x32xbf16>, vector<4x5x32xf32> -> vector<4x5x32xf32>
    %c0_55 = arith.constant 0 : index
    %c0_56 = arith.constant 0 : index
    %164 = vector.load %arg12[%c0_55, %c0_56] : memref<1x32xf32, #tpu.memory_space<vmem>>, vector<1x32xf32>
    %165 = vector.shape_cast %164 : vector<1x32xf32> to vector<1x1x32xf32>
    %166 = vector.broadcast %165 : vector<1x1x32xf32> to vector<4x5x32xf32>
    %167 = arith.addf %163, %166 : vector<4x5x32xf32>
    %168 = arith.addf %114, %167 : vector<4x5x32xf32>
    %c0_57 = arith.constant 0 : index
    %c0_58 = arith.constant 0 : index
    %c0_59 = arith.constant 0 : index
    %169 = vector.load %arg13[%c0_57, %c0_58, %c0_59] : memref<4x5x32xf32, #tpu.memory_space<vmem>>, vector<4x5x32xf32>
    tpu.vector_store %arg13[%c0_57, %c0_58, %c0_59], %168 {strides = array<i32>} : memref<4x5x32xf32, #tpu.memory_space<vmem>>, vector<4x5x32xf32>,
    return
  }
  func.func @transform_0(%arg0: i32) -> (i32, i32, i32) {
    %c0_i32 = arith.constant 0 : i32
    %c0_i32_0 = arith.constant 0 : i32
    %c0_i32_1 = arith.constant 0 : i32
    return %arg0, %c0_i32, %c0_i32_0 : i32, i32, i32
  }
  func.func @transform_1(%arg0: i32) -> (i32, i32) {
    %c0_i32 = arith.constant 0 : i32
    %c0_i32_0 = arith.constant 0 : i32
    %c0_i32_1 = arith.constant 0 : i32
    return %c0_i32, %c0_i32_0 : i32, i32
  }
  func.func @transform_2(%arg0: i32) -> (i32, i32) {
    %c0_i32 = arith.constant 0 : i32
    %c0_i32_0 = arith.constant 0 : i32
    %c0_i32_1 = arith.constant 0 : i32
    return %c0_i32, %c0_i32_0 : i32, i32
  }
  func.func @transform_3(%arg0: i32) -> (i32, i32) {
    %c0_i32 = arith.constant 0 : i32
    %c0_i32_0 = arith.constant 0 : i32
    %c0_i32_1 = arith.constant 0 : i32
    return %c0_i32, %c0_i32_0 : i32, i32
  }
  func.func @transform_4(%arg0: i32) -> (i32, i32) {
    %c0_i32 = arith.constant 0 : i32
    %c0_i32_0 = arith.constant 0 : i32
    %c0_i32_1 = arith.constant 0 : i32
    return %c0_i32, %c0_i32_0 : i32, i32
  }
  func.func @transform_5(%arg0: i32) -> (i32, i32) {
    %c0_i32 = arith.constant 0 : i32
    %c0_i32_0 = arith.constant 0 : i32
    %c0_i32_1 = arith.constant 0 : i32
    return %c0_i32, %c0_i32_0 : i32, i32
  }
  func.func @transform_6(%arg0: i32) -> (i32, i32) {
    %c0_i32 = arith.constant 0 : i32
    %c0_i32_0 = arith.constant 0 : i32
    %c0_i32_1 = arith.constant 0 : i32
    return %c0_i32, %c0_i32_0 : i32, i32
  }
  func.func @transform_7(%arg0: i32) -> (i32, i32) {
    %c0_i32 = arith.constant 0 : i32
    %c0_i32_0 = arith.constant 0 : i32
    %c0_i32_1 = arith.constant 0 : i32
    return %c0_i32, %c0_i32_0 : i32, i32
  }
  func.func @transform_8(%arg0: i32) -> (i32, i32) {
    %c0_i32 = arith.constant 0 : i32
    %c0_i32_0 = arith.constant 0 : i32
    %c0_i32_1 = arith.constant 0 : i32
    return %c0_i32, %c0_i32_0 : i32, i32
  }
  func.func @transform_9(%arg0: i32) -> (i32, i32) {
    %c0_i32 = arith.constant 0 : i32
    %c0_i32_0 = arith.constant 0 : i32
    %c0_i32_1 = arith.constant 0 : i32
    return %c0_i32, %c0_i32_0 : i32, i32
  }
  func.func @transform_10(%arg0: i32) -> (i32, i32) {
    %c0_i32 = arith.constant 0 : i32
    %c0_i32_0 = arith.constant 0 : i32
    %c0_i32_1 = arith.constant 0 : i32
    return %c0_i32, %c0_i32_0 : i32, i32
  }
  func.func @transform_11(%arg0: i32) -> (i32, i32) {
    %c0_i32 = arith.constant 0 : i32
    %c0_i32_0 = arith.constant 0 : i32
    %c0_i32_1 = arith.constant 0 : i32
    return %c0_i32, %c0_i32_0 : i32, i32
  }
  func.func @transform_12(%arg0: i32) -> (i32, i32, i32) {
    %c0_i32 = arith.constant 0 : i32
    %c0_i32_0 = arith.constant 0 : i32
    %c0_i32_1 = arith.constant 0 : i32
    return %arg0, %c0_i32, %c0_i32_0 : i32, i32, i32
  }
}

module attributes {stable_mosaic.version = 11 : i64} {
  func.func @_attn_residual_kernel(%arg0: i32, %arg1: memref<5x4x32xf32, #tpu.memory_space<vmem>>, %arg2: memref<1x32xf32, #tpu.memory_space<vmem>>, %arg3: memref<1x32xf32, #tpu.memory_space<vmem>>, %arg4: memref<32x96xbf16, #tpu.memory_space<vmem>>, %arg5: memref<32x32xbf16, #tpu.memory_space<vmem>>, %arg6: memref<1x32xf32, #tpu.memory_space<vmem>>, %arg7: memref<5x4x32xf32, #tpu.memory_space<vmem>>) attributes {dimension_semantics = [#tpu.dimension_semantics<parallel>], iteration_bounds = array<i64: 2>, scalar_prefetch = 0 : i64, scratch_operands = 0 : i64, tpu.core_type = #tpu.core_type<tc>, window_params = [{transform_indices = @transform_0, window_bounds = array<i64: 5, 4, 32>}, {pipeline_mode = #tpu.pipeline_mode<synchronous>, transform_indices = @transform_1, window_bounds = array<i64: 1, 32>}, {pipeline_mode = #tpu.pipeline_mode<synchronous>, transform_indices = @transform_2, window_bounds = array<i64: 1, 32>}, {pipeline_mode = #tpu.pipeline_mode<synchronous>, transform_indices = @transform_3, window_bounds = array<i64: 32, 96>}, {pipeline_mode = #tpu.pipeline_mode<synchronous>, transform_indices = @transform_4, window_bounds = array<i64: 32, 32>}, {pipeline_mode = #tpu.pipeline_mode<synchronous>, transform_indices = @transform_5, window_bounds = array<i64: 1, 32>}, {transform_indices = @transform_6, window_bounds = array<i64: 5, 4, 32>}]} {
    %c0 = arith.constant 0 : index
    %c0_0 = arith.constant 0 : index
    %c0_1 = arith.constant 0 : index
    %0 = vector.load %arg1[%c0, %c0_0, %c0_1] : memref<5x4x32xf32, #tpu.memory_space<vmem>>, vector<5x4x32xf32>
    %c0_2 = arith.constant 0 : index
    %c0_3 = arith.constant 0 : index
    %1 = vector.load %arg2[%c0_2, %c0_3] : memref<1x32xf32, #tpu.memory_space<vmem>>, vector<1x32xf32>
    %c0_4 = arith.constant 0 : index
    %c0_5 = arith.constant 0 : index
    %2 = vector.load %arg3[%c0_4, %c0_5] : memref<1x32xf32, #tpu.memory_space<vmem>>, vector<1x32xf32>
    %cst = arith.constant dense<0.000000e+00> : vector<5x4xf32>
    %3 = vector.multi_reduction <add>, %0, %cst [2] : vector<5x4x32xf32> to vector<5x4xf32>
    %4 = vector.shape_cast %3 : vector<5x4xf32> to vector<5x4x1xf32>
    %cst_6 = arith.constant 3.200000e+01 : f32
    %5 = vector.broadcast %cst_6 : f32 to vector<5x4x1xf32>
    %6 = arith.divf %4, %5 : vector<5x4x1xf32>
    %7 = vector.broadcast %6 : vector<5x4x1xf32> to vector<5x4x32xf32>
    %8 = arith.subf %0, %7 : vector<5x4x32xf32>
    %9 = arith.mulf %8, %8 : vector<5x4x32xf32>
    %cst_7 = arith.constant dense<0.000000e+00> : vector<5x4xf32>
    %10 = vector.multi_reduction <add>, %9, %cst_7 [2] : vector<5x4x32xf32> to vector<5x4xf32>
    %11 = vector.shape_cast %10 : vector<5x4xf32> to vector<5x4x1xf32>
    %cst_8 = arith.constant 3.200000e+01 : f32
    %12 = vector.broadcast %cst_8 : f32 to vector<5x4x1xf32>
    %13 = arith.divf %11, %12 : vector<5x4x1xf32>
    %14 = vector.broadcast %6 : vector<5x4x1xf32> to vector<5x4x32xf32>
    %15 = arith.subf %0, %14 : vector<5x4x32xf32>
    %cst_9 = arith.constant 9.99999974E-6 : f32
    %16 = vector.broadcast %cst_9 : f32 to vector<5x4x1xf32>
    %17 = arith.addf %13, %16 : vector<5x4x1xf32>
    %18 = math.rsqrt %17 : vector<5x4x1xf32>
    %19 = vector.broadcast %18 : vector<5x4x1xf32> to vector<5x4x32xf32>
    %20 = arith.mulf %15, %19 : vector<5x4x32xf32>
    %21 = vector.shape_cast %1 : vector<1x32xf32> to vector<1x1x32xf32>
    %22 = vector.broadcast %21 : vector<1x1x32xf32> to vector<5x4x32xf32>
    %23 = arith.mulf %20, %22 : vector<5x4x32xf32>
    %24 = vector.shape_cast %2 : vector<1x32xf32> to vector<1x1x32xf32>
    %25 = vector.broadcast %24 : vector<1x1x32xf32> to vector<5x4x32xf32>
    %26 = arith.addf %23, %25 : vector<5x4x32xf32>
    %c0_10 = arith.constant 0 : index
    %c0_11 = arith.constant 0 : index
    %27 = vector.load %arg4[%c0_10, %c0_11] : memref<32x96xbf16, #tpu.memory_space<vmem>>, vector<32x96xbf16>
    %c0_12 = arith.constant 0 : index
    %c0_13 = arith.constant 0 : index
    %28 = vector.load %arg5[%c0_12, %c0_13] : memref<32x32xbf16, #tpu.memory_space<vmem>>, vector<32x32xbf16>
    %c0_14 = arith.constant 0 : index
    %c0_15 = arith.constant 0 : index
    %29 = vector.load %arg6[%c0_14, %c0_15] : memref<1x32xf32, #tpu.memory_space<vmem>>, vector<1x32xf32>
    %30 = arith.truncf %26 : vector<5x4x32xf32> to vector<5x4x32xbf16>
    %cst_16 = arith.constant dense<0.000000e+00> : vector<5x4x96xf32>
    %31 = tpu.matmul %30, %27, %cst_16 {dimension_numbers = #tpu.dot_dimension_numbers<[2], [0], [0, 1], [1], [0, 0, 0, 1, 1, 1], [], []>} : vector<5x4x32xbf16>, vector<32x96xbf16>, vector<5x4x96xf32> -> vector<5x4x96xf32>
    %32 = vector.extract_strided_slice %31 {offsets = [0, 0, 0], sizes = [5, 4, 8], strides = [1, 1, 1]} : vector<5x4x96xf32> to vector<5x4x8xf32>
    %33 = arith.truncf %32 : vector<5x4x8xf32> to vector<5x4x8xbf16>
    %34 = vector.extract_strided_slice %31 {offsets = [0, 0, 32], sizes = [5, 4, 8], strides = [1, 1, 1]} : vector<5x4x96xf32> to vector<5x4x8xf32>
    %35 = arith.truncf %34 : vector<5x4x8xf32> to vector<5x4x8xbf16>
    %36 = vector.extract_strided_slice %31 {offsets = [0, 0, 64], sizes = [5, 4, 8], strides = [1, 1, 1]} : vector<5x4x96xf32> to vector<5x4x8xf32>
    %37 = arith.truncf %36 : vector<5x4x8xf32> to vector<5x4x8xbf16>
    "tpu.trace_start"() <{level = 10 : i32, message = "bnd,bmd->bnm"}> : () -> ()
    %cst_17 = arith.constant dense<0.000000e+00> : vector<5x4x4xf32>
    %38 = tpu.matmul %33, %35, %cst_17 {dimension_numbers = #tpu.dot_dimension_numbers<[2], [2], [1], [1], [0, 0, 0, 1, 1, 1], [0], [0]>} : vector<5x4x8xbf16>, vector<5x4x8xbf16>, vector<5x4x4xf32> -> vector<5x4x4xf32>
    "tpu.trace_stop"() : () -> ()
    %cst_18 = arith.constant dense<0xFF800000> : vector<5x4xf32>
    %39 = vector.multi_reduction <maximumf>, %38, %cst_18 [2] : vector<5x4x4xf32> to vector<5x4xf32>
    %40 = vector.shape_cast %39 : vector<5x4xf32> to vector<5x4x1xf32>
    %41 = vector.broadcast %40 : vector<5x4x1xf32> to vector<5x4x4xf32>
    %42 = arith.subf %38, %41 : vector<5x4x4xf32>
    %43 = math.exp %42 : vector<5x4x4xf32>
    %cst_19 = arith.constant dense<0.000000e+00> : vector<5x4xf32>
    %44 = vector.multi_reduction <add>, %43, %cst_19 [2] : vector<5x4x4xf32> to vector<5x4xf32>
    %45 = vector.shape_cast %44 : vector<5x4xf32> to vector<5x4x1xf32>
    %46 = tpu.reciprocal %45 {approx = true} : vector<5x4x1xf32> -> vector<5x4x1xf32>
    %47 = vector.broadcast %46 : vector<5x4x1xf32> to vector<5x4x4xf32>
    %48 = arith.mulf %43, %47 : vector<5x4x4xf32>
    %49 = arith.truncf %48 : vector<5x4x4xf32> to vector<5x4x4xbf16>
    "tpu.trace_start"() <{level = 10 : i32, message = "bnm,bmd->bnd"}> : () -> ()
    %cst_20 = arith.constant dense<0.000000e+00> : vector<5x4x8xf32>
    %50 = tpu.matmul %49, %37, %cst_20 {dimension_numbers = #tpu.dot_dimension_numbers<[2], [1], [1], [2], [0, 0, 0, 1, 1, 2], [0], [0]>} : vector<5x4x4xbf16>, vector<5x4x8xbf16>, vector<5x4x8xf32> -> vector<5x4x8xf32>
    "tpu.trace_stop"() : () -> ()
    %51 = vector.extract_strided_slice %31 {offsets = [0, 0, 8], sizes = [5, 4, 8], strides = [1, 1, 1]} : vector<5x4x96xf32> to vector<5x4x8xf32>
    %52 = arith.truncf %51 : vector<5x4x8xf32> to vector<5x4x8xbf16>
    %53 = vector.extract_strided_slice %31 {offsets = [0, 0, 40], sizes = [5, 4, 8], strides = [1, 1, 1]} : vector<5x4x96xf32> to vector<5x4x8xf32>
    %54 = arith.truncf %53 : vector<5x4x8xf32> to vector<5x4x8xbf16>
    %55 = vector.extract_strided_slice %31 {offsets = [0, 0, 72], sizes = [5, 4, 8], strides = [1, 1, 1]} : vector<5x4x96xf32> to vector<5x4x8xf32>
    %56 = arith.truncf %55 : vector<5x4x8xf32> to vector<5x4x8xbf16>
    "tpu.trace_start"() <{level = 10 : i32, message = "bnd,bmd->bnm"}> : () -> ()
    %cst_21 = arith.constant dense<0.000000e+00> : vector<5x4x4xf32>
    %57 = tpu.matmul %52, %54, %cst_21 {dimension_numbers = #tpu.dot_dimension_numbers<[2], [2], [1], [1], [0, 0, 0, 1, 1, 1], [0], [0]>} : vector<5x4x8xbf16>, vector<5x4x8xbf16>, vector<5x4x4xf32> -> vector<5x4x4xf32>
    "tpu.trace_stop"() : () -> ()
    %cst_22 = arith.constant dense<0xFF800000> : vector<5x4xf32>
    %58 = vector.multi_reduction <maximumf>, %57, %cst_22 [2] : vector<5x4x4xf32> to vector<5x4xf32>
    %59 = vector.shape_cast %58 : vector<5x4xf32> to vector<5x4x1xf32>
    %60 = vector.broadcast %59 : vector<5x4x1xf32> to vector<5x4x4xf32>
    %61 = arith.subf %57, %60 : vector<5x4x4xf32>
    %62 = math.exp %61 : vector<5x4x4xf32>
    %cst_23 = arith.constant dense<0.000000e+00> : vector<5x4xf32>
    %63 = vector.multi_reduction <add>, %62, %cst_23 [2] : vector<5x4x4xf32> to vector<5x4xf32>
    %64 = vector.shape_cast %63 : vector<5x4xf32> to vector<5x4x1xf32>
    %65 = tpu.reciprocal %64 {approx = true} : vector<5x4x1xf32> -> vector<5x4x1xf32>
    %66 = vector.broadcast %65 : vector<5x4x1xf32> to vector<5x4x4xf32>
    %67 = arith.mulf %62, %66 : vector<5x4x4xf32>
    %68 = arith.truncf %67 : vector<5x4x4xf32> to vector<5x4x4xbf16>
    "tpu.trace_start"() <{level = 10 : i32, message = "bnm,bmd->bnd"}> : () -> ()
    %cst_24 = arith.constant dense<0.000000e+00> : vector<5x4x8xf32>
    %69 = tpu.matmul %68, %56, %cst_24 {dimension_numbers = #tpu.dot_dimension_numbers<[2], [1], [1], [2], [0, 0, 0, 1, 1, 2], [0], [0]>} : vector<5x4x4xbf16>, vector<5x4x8xbf16>, vector<5x4x8xf32> -> vector<5x4x8xf32>
    "tpu.trace_stop"() : () -> ()
    %70 = vector.extract_strided_slice %31 {offsets = [0, 0, 16], sizes = [5, 4, 8], strides = [1, 1, 1]} : vector<5x4x96xf32> to vector<5x4x8xf32>
    %71 = arith.truncf %70 : vector<5x4x8xf32> to vector<5x4x8xbf16>
    %72 = vector.extract_strided_slice %31 {offsets = [0, 0, 48], sizes = [5, 4, 8], strides = [1, 1, 1]} : vector<5x4x96xf32> to vector<5x4x8xf32>
    %73 = arith.truncf %72 : vector<5x4x8xf32> to vector<5x4x8xbf16>
    %74 = vector.extract_strided_slice %31 {offsets = [0, 0, 80], sizes = [5, 4, 8], strides = [1, 1, 1]} : vector<5x4x96xf32> to vector<5x4x8xf32>
    %75 = arith.truncf %74 : vector<5x4x8xf32> to vector<5x4x8xbf16>
    "tpu.trace_start"() <{level = 10 : i32, message = "bnd,bmd->bnm"}> : () -> ()
    %cst_25 = arith.constant dense<0.000000e+00> : vector<5x4x4xf32>
    %76 = tpu.matmul %71, %73, %cst_25 {dimension_numbers = #tpu.dot_dimension_numbers<[2], [2], [1], [1], [0, 0, 0, 1, 1, 1], [0], [0]>} : vector<5x4x8xbf16>, vector<5x4x8xbf16>, vector<5x4x4xf32> -> vector<5x4x4xf32>
    "tpu.trace_stop"() : () -> ()
    %cst_26 = arith.constant dense<0xFF800000> : vector<5x4xf32>
    %77 = vector.multi_reduction <maximumf>, %76, %cst_26 [2] : vector<5x4x4xf32> to vector<5x4xf32>
    %78 = vector.shape_cast %77 : vector<5x4xf32> to vector<5x4x1xf32>
    %79 = vector.broadcast %78 : vector<5x4x1xf32> to vector<5x4x4xf32>
    %80 = arith.subf %76, %79 : vector<5x4x4xf32>
    %81 = math.exp %80 : vector<5x4x4xf32>
    %cst_27 = arith.constant dense<0.000000e+00> : vector<5x4xf32>
    %82 = vector.multi_reduction <add>, %81, %cst_27 [2] : vector<5x4x4xf32> to vector<5x4xf32>
    %83 = vector.shape_cast %82 : vector<5x4xf32> to vector<5x4x1xf32>
    %84 = tpu.reciprocal %83 {approx = true} : vector<5x4x1xf32> -> vector<5x4x1xf32>
    %85 = vector.broadcast %84 : vector<5x4x1xf32> to vector<5x4x4xf32>
    %86 = arith.mulf %81, %85 : vector<5x4x4xf32>
    %87 = arith.truncf %86 : vector<5x4x4xf32> to vector<5x4x4xbf16>
    "tpu.trace_start"() <{level = 10 : i32, message = "bnm,bmd->bnd"}> : () -> ()
    %cst_28 = arith.constant dense<0.000000e+00> : vector<5x4x8xf32>
    %88 = tpu.matmul %87, %75, %cst_28 {dimension_numbers = #tpu.dot_dimension_numbers<[2], [1], [1], [2], [0, 0, 0, 1, 1, 2], [0], [0]>} : vector<5x4x4xbf16>, vector<5x4x8xbf16>, vector<5x4x8xf32> -> vector<5x4x8xf32>
    "tpu.trace_stop"() : () -> ()
    %89 = vector.extract_strided_slice %31 {offsets = [0, 0, 24], sizes = [5, 4, 8], strides = [1, 1, 1]} : vector<5x4x96xf32> to vector<5x4x8xf32>
    %90 = arith.truncf %89 : vector<5x4x8xf32> to vector<5x4x8xbf16>
    %91 = vector.extract_strided_slice %31 {offsets = [0, 0, 56], sizes = [5, 4, 8], strides = [1, 1, 1]} : vector<5x4x96xf32> to vector<5x4x8xf32>
    %92 = arith.truncf %91 : vector<5x4x8xf32> to vector<5x4x8xbf16>
    %93 = vector.extract_strided_slice %31 {offsets = [0, 0, 88], sizes = [5, 4, 8], strides = [1, 1, 1]} : vector<5x4x96xf32> to vector<5x4x8xf32>
    %94 = arith.truncf %93 : vector<5x4x8xf32> to vector<5x4x8xbf16>
    "tpu.trace_start"() <{level = 10 : i32, message = "bnd,bmd->bnm"}> : () -> ()
    %cst_29 = arith.constant dense<0.000000e+00> : vector<5x4x4xf32>
    %95 = tpu.matmul %90, %92, %cst_29 {dimension_numbers = #tpu.dot_dimension_numbers<[2], [2], [1], [1], [0, 0, 0, 1, 1, 1], [0], [0]>} : vector<5x4x8xbf16>, vector<5x4x8xbf16>, vector<5x4x4xf32> -> vector<5x4x4xf32>
    "tpu.trace_stop"() : () -> ()
    %cst_30 = arith.constant dense<0xFF800000> : vector<5x4xf32>
    %96 = vector.multi_reduction <maximumf>, %95, %cst_30 [2] : vector<5x4x4xf32> to vector<5x4xf32>
    %97 = vector.shape_cast %96 : vector<5x4xf32> to vector<5x4x1xf32>
    %98 = vector.broadcast %97 : vector<5x4x1xf32> to vector<5x4x4xf32>
    %99 = arith.subf %95, %98 : vector<5x4x4xf32>
    %100 = math.exp %99 : vector<5x4x4xf32>
    %cst_31 = arith.constant dense<0.000000e+00> : vector<5x4xf32>
    %101 = vector.multi_reduction <add>, %100, %cst_31 [2] : vector<5x4x4xf32> to vector<5x4xf32>
    %102 = vector.shape_cast %101 : vector<5x4xf32> to vector<5x4x1xf32>
    %103 = tpu.reciprocal %102 {approx = true} : vector<5x4x1xf32> -> vector<5x4x1xf32>
    %104 = vector.broadcast %103 : vector<5x4x1xf32> to vector<5x4x4xf32>
    %105 = arith.mulf %100, %104 : vector<5x4x4xf32>
    %106 = arith.truncf %105 : vector<5x4x4xf32> to vector<5x4x4xbf16>
    "tpu.trace_start"() <{level = 10 : i32, message = "bnm,bmd->bnd"}> : () -> ()
    %cst_32 = arith.constant dense<0.000000e+00> : vector<5x4x8xf32>
    %107 = tpu.matmul %106, %94, %cst_32 {dimension_numbers = #tpu.dot_dimension_numbers<[2], [1], [1], [2], [0, 0, 0, 1, 1, 2], [0], [0]>} : vector<5x4x4xbf16>, vector<5x4x8xbf16>, vector<5x4x8xf32> -> vector<5x4x8xf32>
    "tpu.trace_stop"() : () -> ()
    %108 = tpu.concatenate %50, %69, %88, %107 in 2 : vector<5x4x8xf32>, vector<5x4x8xf32>, vector<5x4x8xf32>, vector<5x4x8xf32> -> vector<5x4x32xf32>
    %109 = arith.truncf %108 : vector<5x4x32xf32> to vector<5x4x32xbf16>
    %cst_33 = arith.constant dense<0.000000e+00> : vector<5x4x32xf32>
    %110 = tpu.matmul %109, %28, %cst_33 {dimension_numbers = #tpu.dot_dimension_numbers<[2], [0], [0, 1], [1], [0, 0, 0, 1, 1, 1], [], []>} : vector<5x4x32xbf16>, vector<32x32xbf16>, vector<5x4x32xf32> -> vector<5x4x32xf32>
    %111 = vector.shape_cast %29 : vector<1x32xf32> to vector<1x1x32xf32>
    %112 = vector.broadcast %111 : vector<1x1x32xf32> to vector<5x4x32xf32>
    %113 = arith.addf %110, %112 : vector<5x4x32xf32>
    %114 = arith.addf %0, %113 : vector<5x4x32xf32>
    %c0_34 = arith.constant 0 : index
    %c0_35 = arith.constant 0 : index
    %c0_36 = arith.constant 0 : index
    %115 = vector.load %arg7[%c0_34, %c0_35, %c0_36] : memref<5x4x32xf32, #tpu.memory_space<vmem>>, vector<5x4x32xf32>
    tpu.vector_store %arg7[%c0_34, %c0_35, %c0_36], %114 {strides = array<i32>} : memref<5x4x32xf32, #tpu.memory_space<vmem>>, vector<5x4x32xf32>,
    return
  }
  func.func @transform_0(%arg0: i32) -> (i32, i32, i32) {
    %c0_i32 = arith.constant 0 : i32
    %c0_i32_0 = arith.constant 0 : i32
    %c0_i32_1 = arith.constant 0 : i32
    return %arg0, %c0_i32, %c0_i32_0 : i32, i32, i32
  }
  func.func @transform_1(%arg0: i32) -> (i32, i32) {
    %c0_i32 = arith.constant 0 : i32
    %c0_i32_0 = arith.constant 0 : i32
    %c0_i32_1 = arith.constant 0 : i32
    return %c0_i32, %c0_i32_0 : i32, i32
  }
  func.func @transform_2(%arg0: i32) -> (i32, i32) {
    %c0_i32 = arith.constant 0 : i32
    %c0_i32_0 = arith.constant 0 : i32
    %c0_i32_1 = arith.constant 0 : i32
    return %c0_i32, %c0_i32_0 : i32, i32
  }
  func.func @transform_3(%arg0: i32) -> (i32, i32) {
    %c0_i32 = arith.constant 0 : i32
    %c0_i32_0 = arith.constant 0 : i32
    %c0_i32_1 = arith.constant 0 : i32
    return %c0_i32, %c0_i32_0 : i32, i32
  }
  func.func @transform_4(%arg0: i32) -> (i32, i32) {
    %c0_i32 = arith.constant 0 : i32
    %c0_i32_0 = arith.constant 0 : i32
    %c0_i32_1 = arith.constant 0 : i32
    return %c0_i32, %c0_i32_0 : i32, i32
  }
  func.func @transform_5(%arg0: i32) -> (i32, i32) {
    %c0_i32 = arith.constant 0 : i32
    %c0_i32_0 = arith.constant 0 : i32
    %c0_i32_1 = arith.constant 0 : i32
    return %c0_i32, %c0_i32_0 : i32, i32
  }
  func.func @transform_6(%arg0: i32) -> (i32, i32, i32) {
    %c0_i32 = arith.constant 0 : i32
    %c0_i32_0 = arith.constant 0 : i32
    %c0_i32_1 = arith.constant 0 : i32
    return %arg0, %c0_i32, %c0_i32_0 : i32, i32, i32
  }
}

module attributes {stable_mosaic.version = 11 : i64} {
  func.func @_mlp_head_kernel(%arg0: i32, %arg1: memref<2x32xf32, #tpu.memory_space<vmem>>, %arg2: memref<1x32xf32, #tpu.memory_space<vmem>>, %arg3: memref<1x32xf32, #tpu.memory_space<vmem>>, %arg4: memref<32x64xbf16, #tpu.memory_space<vmem>>, %arg5: memref<1x64xf32, #tpu.memory_space<vmem>>, %arg6: memref<64x10xbf16, #tpu.memory_space<vmem>>, %arg7: memref<1x10xf32, #tpu.memory_space<vmem>>, %arg8: memref<2x10xf32, #tpu.memory_space<vmem>>) attributes {dimension_semantics = [#tpu.dimension_semantics<parallel>], iteration_bounds = array<i64: 1>, scalar_prefetch = 0 : i64, scratch_operands = 0 : i64, tpu.core_type = #tpu.core_type<tc>, window_params = [{transform_indices = @transform_0, window_bounds = array<i64: 2, 32>}, {pipeline_mode = #tpu.pipeline_mode<synchronous>, transform_indices = @transform_1, window_bounds = array<i64: 1, 32>}, {pipeline_mode = #tpu.pipeline_mode<synchronous>, transform_indices = @transform_2, window_bounds = array<i64: 1, 32>}, {pipeline_mode = #tpu.pipeline_mode<synchronous>, transform_indices = @transform_3, window_bounds = array<i64: 32, 64>}, {pipeline_mode = #tpu.pipeline_mode<synchronous>, transform_indices = @transform_4, window_bounds = array<i64: 1, 64>}, {pipeline_mode = #tpu.pipeline_mode<synchronous>, transform_indices = @transform_5, window_bounds = array<i64: 64, 10>}, {pipeline_mode = #tpu.pipeline_mode<synchronous>, transform_indices = @transform_6, window_bounds = array<i64: 1, 10>}, {transform_indices = @transform_7, window_bounds = array<i64: 2, 10>}]} {
    %c0 = arith.constant 0 : index
    %c0_0 = arith.constant 0 : index
    %0 = vector.load %arg1[%c0, %c0_0] : memref<2x32xf32, #tpu.memory_space<vmem>>, vector<2x32xf32>
    %c0_1 = arith.constant 0 : index
    %c0_2 = arith.constant 0 : index
    %1 = vector.load %arg2[%c0_1, %c0_2] : memref<1x32xf32, #tpu.memory_space<vmem>>, vector<1x32xf32>
    %c0_3 = arith.constant 0 : index
    %c0_4 = arith.constant 0 : index
    %2 = vector.load %arg3[%c0_3, %c0_4] : memref<1x32xf32, #tpu.memory_space<vmem>>, vector<1x32xf32>
    %cst = arith.constant dense<0.000000e+00> : vector<2xf32>
    %3 = vector.multi_reduction <add>, %0, %cst [1] : vector<2x32xf32> to vector<2xf32>
    %4 = vector.shape_cast %3 : vector<2xf32> to vector<2x1xf32>
    %cst_5 = arith.constant 3.200000e+01 : f32
    %5 = vector.broadcast %cst_5 : f32 to vector<2x1xf32>
    %6 = arith.divf %4, %5 : vector<2x1xf32>
    %7 = vector.broadcast %6 : vector<2x1xf32> to vector<2x32xf32>
    %8 = arith.subf %0, %7 : vector<2x32xf32>
    %9 = arith.mulf %8, %8 : vector<2x32xf32>
    %cst_6 = arith.constant dense<0.000000e+00> : vector<2xf32>
    %10 = vector.multi_reduction <add>, %9, %cst_6 [1] : vector<2x32xf32> to vector<2xf32>
    %11 = vector.shape_cast %10 : vector<2xf32> to vector<2x1xf32>
    %cst_7 = arith.constant 3.200000e+01 : f32
    %12 = vector.broadcast %cst_7 : f32 to vector<2x1xf32>
    %13 = arith.divf %11, %12 : vector<2x1xf32>
    %14 = vector.broadcast %6 : vector<2x1xf32> to vector<2x32xf32>
    %15 = arith.subf %0, %14 : vector<2x32xf32>
    %cst_8 = arith.constant 9.99999974E-6 : f32
    %16 = vector.broadcast %cst_8 : f32 to vector<2x1xf32>
    %17 = arith.addf %13, %16 : vector<2x1xf32>
    %18 = math.rsqrt %17 : vector<2x1xf32>
    %19 = vector.broadcast %18 : vector<2x1xf32> to vector<2x32xf32>
    %20 = arith.mulf %15, %19 : vector<2x32xf32>
    %21 = vector.broadcast %1 : vector<1x32xf32> to vector<2x32xf32>
    %22 = arith.mulf %20, %21 : vector<2x32xf32>
    %23 = vector.broadcast %2 : vector<1x32xf32> to vector<2x32xf32>
    %24 = arith.addf %22, %23 : vector<2x32xf32>
    %25 = arith.truncf %24 : vector<2x32xf32> to vector<2x32xbf16>
    %c0_9 = arith.constant 0 : index
    %c0_10 = arith.constant 0 : index
    %26 = vector.load %arg4[%c0_9, %c0_10] : memref<32x64xbf16, #tpu.memory_space<vmem>>, vector<32x64xbf16>
    %cst_11 = arith.constant dense<0.000000e+00> : vector<2x64xf32>
    %27 = tpu.matmul %25, %26, %cst_11 {dimension_numbers = #tpu.dot_dimension_numbers<[1], [0], [0], [1], [0, 0, 1, 1], [], []>} : vector<2x32xbf16>, vector<32x64xbf16>, vector<2x64xf32> -> vector<2x64xf32>
    %c0_12 = arith.constant 0 : index
    %c0_13 = arith.constant 0 : index
    %28 = vector.load %arg5[%c0_12, %c0_13] : memref<1x64xf32, #tpu.memory_space<vmem>>, vector<1x64xf32>
    %29 = vector.broadcast %28 : vector<1x64xf32> to vector<2x64xf32>
    %30 = arith.addf %27, %29 : vector<2x64xf32>
    %cst_14 = arith.constant 5.000000e-01 : f32
    %31 = vector.broadcast %cst_14 : f32 to vector<2x64xf32>
    %32 = arith.mulf %31, %30 : vector<2x64xf32>
    %cst_15 = arith.constant 4.471500e-02 : f32
    %33 = vector.broadcast %cst_15 : f32 to vector<2x64xf32>
    %34 = arith.mulf %33, %30 : vector<2x64xf32>
    %35 = arith.mulf %34, %30 : vector<2x64xf32>
    %36 = arith.mulf %35, %30 : vector<2x64xf32>
    %37 = arith.addf %30, %36 : vector<2x64xf32>
    %cst_16 = arith.constant 0.797884583 : f32
    %38 = vector.broadcast %cst_16 : f32 to vector<2x64xf32>
    %39 = arith.mulf %38, %37 : vector<2x64xf32>
    %40 = math.tanh %39 : vector<2x64xf32>
    %cst_17 = arith.constant 1.000000e+00 : f32
    %41 = vector.broadcast %cst_17 : f32 to vector<2x64xf32>
    %42 = arith.addf %41, %40 : vector<2x64xf32>
    %43 = arith.mulf %32, %42 : vector<2x64xf32>
    %44 = arith.truncf %43 : vector<2x64xf32> to vector<2x64xbf16>
    %c0_18 = arith.constant 0 : index
    %c0_19 = arith.constant 0 : index
    %45 = vector.load %arg6[%c0_18, %c0_19] : memref<64x10xbf16, #tpu.memory_space<vmem>>, vector<64x10xbf16>
    %cst_20 = arith.constant dense<0.000000e+00> : vector<2x10xf32>
    %46 = tpu.matmul %44, %45, %cst_20 {dimension_numbers = #tpu.dot_dimension_numbers<[1], [0], [0], [1], [0, 0, 1, 1], [], []>} : vector<2x64xbf16>, vector<64x10xbf16>, vector<2x10xf32> -> vector<2x10xf32>
    %c0_21 = arith.constant 0 : index
    %c0_22 = arith.constant 0 : index
    %47 = vector.load %arg7[%c0_21, %c0_22] : memref<1x10xf32, #tpu.memory_space<vmem>>, vector<1x10xf32>
    %48 = vector.broadcast %47 : vector<1x10xf32> to vector<2x10xf32>
    %49 = arith.addf %46, %48 : vector<2x10xf32>
    %c0_23 = arith.constant 0 : index
    %c0_24 = arith.constant 0 : index
    %50 = vector.load %arg8[%c0_23, %c0_24] : memref<2x10xf32, #tpu.memory_space<vmem>>, vector<2x10xf32>
    tpu.vector_store %arg8[%c0_23, %c0_24], %49 {strides = array<i32>} : memref<2x10xf32, #tpu.memory_space<vmem>>, vector<2x10xf32>,
    return
  }
  func.func @transform_0(%arg0: i32) -> (i32, i32) {
    %c0_i32 = arith.constant 0 : i32
    %c0_i32_0 = arith.constant 0 : i32
    return %arg0, %c0_i32 : i32, i32
  }
  func.func @transform_1(%arg0: i32) -> (i32, i32) {
    %c0_i32 = arith.constant 0 : i32
    %c0_i32_0 = arith.constant 0 : i32
    %c0_i32_1 = arith.constant 0 : i32
    return %c0_i32, %c0_i32_0 : i32, i32
  }
  func.func @transform_2(%arg0: i32) -> (i32, i32) {
    %c0_i32 = arith.constant 0 : i32
    %c0_i32_0 = arith.constant 0 : i32
    %c0_i32_1 = arith.constant 0 : i32
    return %c0_i32, %c0_i32_0 : i32, i32
  }
  func.func @transform_3(%arg0: i32) -> (i32, i32) {
    %c0_i32 = arith.constant 0 : i32
    %c0_i32_0 = arith.constant 0 : i32
    %c0_i32_1 = arith.constant 0 : i32
    return %c0_i32, %c0_i32_0 : i32, i32
  }
  func.func @transform_4(%arg0: i32) -> (i32, i32) {
    %c0_i32 = arith.constant 0 : i32
    %c0_i32_0 = arith.constant 0 : i32
    %c0_i32_1 = arith.constant 0 : i32
    return %c0_i32, %c0_i32_0 : i32, i32
  }
  func.func @transform_5(%arg0: i32) -> (i32, i32) {
    %c0_i32 = arith.constant 0 : i32
    %c0_i32_0 = arith.constant 0 : i32
    %c0_i32_1 = arith.constant 0 : i32
    return %c0_i32, %c0_i32_0 : i32, i32
  }
  func.func @transform_6(%arg0: i32) -> (i32, i32) {
    %c0_i32 = arith.constant 0 : i32
    %c0_i32_0 = arith.constant 0 : i32
    %c0_i32_1 = arith.constant 0 : i32
    return %c0_i32, %c0_i32_0 : i32, i32
  }
  func.func @transform_7(%arg0: i32) -> (i32, i32) {
    %c0_i32 = arith.constant 0 : i32
    %c0_i32_0 = arith.constant 0 : i32
    return %arg0, %c0_i32 : i32, i32
  }
}

</mosaic_0001>

<llo_original>
// kernel: video_vit_forward.7
$region0: #{video_vit_forward.7}
  #allocation0 [shape = 'u32[]', space=smem, size = 0x4, offset = 0x4, fixed_abs, tag = 'smem constant byte address 0x4 - core index']
  #allocation1 [shape = 'u32[72,128]{1,0:T(1,128)}', space=vmem, size = 0x9000, scoped, tag = 'internal scratch']
  %s0 = inlined_call_operand.vmem [shape: f32[32,192], index: 0, kind: input, shape index: {}]
  %s1 = inlined_call_operand.vmem [shape: bf16[192,32], index: 1, kind: input, shape index: {}]
  %s2 = inlined_call_operand.vmem [shape: f32[1,32], index: 2, kind: input, shape index: {}]
  %s3 = inlined_call_operand.vmem [shape: f32[32,32], index: 3, kind: output, shape index: {}]
  %s4 = sld [smem:[#allocation0]]
  $region22: #{video_vit_forward.7} parent=0
    _
  %s6 = ssub.s32 1, %s4
  %s7 = scalar_select 0, %s6, %s4
  // Predicated region
  $region2: #{video_vit_forward.7} parent=0 // pred_check
    _
  $region3: #{video_vit_forward.7} parent=0 // pred_check_branch
    %9 = sbr.rel (0) target = $region5
  $region4: #{video_vit_forward.7} parent=0 // pred_region
    _
  $region5: #{video_vit_forward.7} parent=0 // pred_fallthru
    _
  // Predicated region
  $region6: #{video_vit_forward.7} parent=0 // pred_check
    _
  $region7: #{video_vit_forward.7} parent=0 // pred_check_branch
    %11 = sbr.rel (0) target = $region9
  $region8: #{video_vit_forward.7} parent=0 // pred_region
    _
  $region9: #{video_vit_forward.7} parent=0 // pred_fallthru
    _
  // Predicated region
  $region10: #{video_vit_forward.7} parent=0 // pred_check
    _
  $region11: #{video_vit_forward.7} parent=0 // pred_check_branch
    %13 = sbr.rel (0) target = $region13
  $region12: #{video_vit_forward.7} parent=0 // pred_region
    _
  $region13: #{video_vit_forward.7} parent=0 // pred_fallthru
    _
  %v15 = vld [vmem:[%s0] sm:$0xff]
  %v16 = vld [vmem:[%s0 + $0x8] sm:$0xff]
  %v17 = vld [vmem:[%s0 + $0x10] sm:$0xff]
  %v18 = vld [vmem:[%s0 + $0x18] sm:$0xff]
  %v19 = vld [vmem:[%s0 + $0x20] sm:$0xff]
  %v20 = vld [vmem:[%s0 + $0x28] sm:$0xff]
  %v21 = vld [vmem:[%s0 + $0x30] sm:$0xff]
  %v22 = vld [vmem:[%s0 + $0x38] sm:$0xff]
  %v23 = vpack.c.bf16 %v17, %v15
  %v24 = vpack.c.bf16 %v18, %v16
  %v25 = vpack.c.bf16 %v21, %v19
  %v26 = vpack.c.bf16 %v22, %v20
  %v27 = vld [vmem:[%s1] sm:$0xf]
  %v28 = vld [vmem:[%s1 + $0x4] sm:$0xf]
  %v29 = vld [vmem:[%s1 + $0x8] sm:$0xf]
  %v30 = vld [vmem:[%s1 + $0xc] sm:$0xf]
  %v31 = vld [vmem:[%s1 + $0x10] sm:$0xf]
  %v32 = vld [vmem:[%s1 + $0x14] sm:$0xf]
  %v33 = vld [vmem:[%s1 + $0x18] sm:$0xf]
  %v34 = vld [vmem:[%s1 + $0x1c] sm:$0xf]
  %v35 = vld [vmem:[%s1 + $0x20] sm:$0xf]
  %v36 = vld [vmem:[%s1 + $0x24] sm:$0xf]
  %v37 = vld [vmem:[%s1 + $0x28] sm:$0xf]
  %v38 = vld [vmem:[%s1 + $0x2c] sm:$0xf]
  %v39 = vld [vmem:[%s1 + $0x30] sm:$0xf]
  %v40 = vld [vmem:[%s1 + $0x34] sm:$0xf]
  %v41 = vld [vmem:[%s1 + $0x38] sm:$0xf]
  %v42 = vld [vmem:[%s1 + $0x3c] sm:$0xf]
  %v43 = vld [vmem:[%s1 + $0x40] sm:$0xf]
  %v44 = vld [vmem:[%s1 + $0x44] sm:$0xf]
  %v45 = vld [vmem:[%s1 + $0x48] sm:$0xf]
  %v46 = vld [vmem:[%s1 + $0x4c] sm:$0xf]
  %v47 = vld [vmem:[%s1 + $0x50] sm:$0xf]
  %v48 = vld [vmem:[%s1 + $0x54] sm:$0xf]
  %v49 = vld [vmem:[%s1 + $0x58] sm:$0xf]
  %v50 = vld [vmem:[%s1 + $0x5c] sm:$0xf]
  %v51 = vld [vmem:[%s2] sm:$0x1]
  %v53 = vperm.slane %v51, 0
  %v79 = vunpack.c.l.b16 %v27
  %v80 = vunpack.c.l.b16 %v28
  %v81 = vunpack.c.l.b16 %v29
  %v82 = vunpack.c.l.b16 %v30
  %v83 = vunpack.c.l.b16 %v31
  %v84 = vunpack.c.l.b16 %v32
  %v85 = vunpack.c.l.b16 %v33
  %v86 = vunpack.c.l.b16 %v34
  %v87 = vunpack.c.l.b16 %v35
  %v88 = vunpack.c.l.b16 %v36
  %v89 = vunpack.c.l.b16 %v37
  %v90 = vunpack.c.l.b16 %v38
  %v91 = vunpack.c.l.b16 %v39
  %v92 = vunpack.c.l.b16 %v40
  %v93 = vunpack.c.l.b16 %v41
  %v94 = vunpack.c.l.b16 %v42
  %v95 = vunpack.c.l.b16 %v43
  %v96 = vunpack.c.l.b16 %v44
  %v97 = vunpack.c.l.b16 %v45
  %v98 = vunpack.c.l.b16 %v46
  %v99 = vunpack.c.l.b16 %v47
  %v100 = vunpack.c.l.b16 %v48
  %v101 = vunpack.c.l.b16 %v49
  %v102 = vunpack.c.l.b16 %v50
  %v103 = vpack.c.b16 %v80, %v79
  %v104 = vpack.c.b16 %v82, %v81
  %v105 = vpack.c.b16 %v84, %v83
  %v106 = vpack.c.b16 %v86, %v85
  %v107 = vpack.c.b16 %v88, %v87
  %v108 = vpack.c.b16 %v90, %v89
  %v109 = vpack.c.b16 %v92, %v91
  %v110 = vpack.c.b16 %v94, %v93
  %v111 = vpack.c.b16 %v96, %v95
  %v112 = vpack.c.b16 %v98, %v97
  %v113 = vpack.c.b16 %v100, %v99
  %v114 = vpack.c.b16 %v102, %v101
  %vm127 = vcmask 523264
  %v129 = vsel %vm127, %v24, 0
  %v132 = vsel %vm127, %v26, 0
  %134 = vmatpush.bf16.msra.mxu0 %v110
  %135 = vmatpush.bf16.msra.mxu0 %v109
  %136 = vmatpush.bf16.msra.mxu0 %v108
  %137 = vmatpush.bf16.msra.mxu0 %v107
  %138 = vmatpush.bf16.msra.mxu0 %v106
  %139 = vmatpush.bf16.msra.mxu0 %v105
  %140 = vmatpush.bf16.msra.mxu0 %v104
  %141 = vmatpush.bf16.msra.mxu0 %v103
  %142 = vmatmul.bf16.gmra.mxu0 %v23
  %v143 = vpop.f32.mrf.mxu0
  %v144 = vadd.f32 %v53, %v143
  %v145 = vpop.f32.mrf.mxu0
  %v146 = vadd.f32 %v53, %v145
  %147 = vmatmul.bf16.gmra.mxu0 %v25
  %v148 = vpop.f32.mrf.mxu0
  %v149 = vadd.f32 %v53, %v148
  %v150 = vpop.f32.mrf.mxu0
  %v151 = vadd.f32 %v53, %v150
  %152 = vdwg.mxu0
  %153 = vmatpush.bf16.msra.mxu0 0
  %154 = vmatpush.bf16.msra.mxu0 0
  %155 = vmatpush.bf16.msra.mxu0 0
  %156 = vmatpush.bf16.msra.mxu0 0
  %157 = vmatpush.bf16.msra.mxu0 %v114
  %158 = vmatpush.bf16.msra.mxu0 %v113
  %159 = vmatpush.bf16.msra.mxu0 %v112
  %160 = vmatpush.bf16.msra.mxu0 %v111
  %161 = vmatmul.bf16.gmra.mxu0 %v129
  %v162 = vpop.f32.mrf.mxu0
  %v163 = vadd.f32 %v144, %v162
  %v164 = vpop.f32.mrf.mxu0
  %v165 = vadd.f32 %v146, %v164
  %166 = vmatmul.bf16.gmra.mxu0 %v132
  %v167 = vpop.f32.mrf.mxu0
  %v168 = vadd.f32 %v149, %v167
  %v169 = vpop.f32.mrf.mxu0
  %v170 = vadd.f32 %v151, %v169
  %171 = vdwg.mxu0
  %vm172 = vcmask 261120
  %173 = vst.msk [vmem:[%s3] sm:$0xff] %vm172, %v163
  %174 = vst.msk [vmem:[%s3 + $0x8] sm:$0xff] %vm172, %v165
  %175 = vst.msk [vmem:[%s3 + $0x10] sm:$0xff] %vm172, %v168
  %176 = vst.msk [vmem:[%s3 + $0x18] sm:$0xff] %vm172, %v170
  // Predicated region
  $region14: #{video_vit_forward.7} parent=0 // pred_check
    _
  $region15: #{video_vit_forward.7} parent=0 // pred_check_branch
    %178 = sbr.rel (0) target = $region17
  $region16: #{video_vit_forward.7} parent=0 // pred_region
    _
  $region17: #{video_vit_forward.7} parent=0 // pred_fallthru
    _
  // Predicated region
  $region18: #{video_vit_forward.7} parent=0 // pred_check
    _
  $region19: #{video_vit_forward.7} parent=0 // pred_check_branch
    %180 = sbr.rel (0) target = $region21
  $region20: #{video_vit_forward.7} parent=0 // pred_region
    _
  $region21: #{video_vit_forward.7} parent=0 // pred_fallthru
    _

// kernel: video_vit_forward.13
$region0: #{video_vit_forward.13}
  #allocation0 [shape = 'u32[]', space=smem, size = 0x4, offset = 0x4, fixed_abs, tag = 'smem constant byte address 0x4 - core index']
  #allocation1 [shape = 'u32[72,128]{1,0:T(1,128)}', space=vmem, size = 0x9000, scoped, tag = 'internal scratch']
  %s0 = inlined_call_operand.vmem [shape: f32[2,32], index: 0, kind: input, shape index: {}]
  %s1 = inlined_call_operand.vmem [shape: f32[1,32], index: 1, kind: input, shape index: {}]
  %s2 = inlined_call_operand.vmem [shape: f32[1,32], index: 2, kind: input, shape index: {}]
  %s3 = inlined_call_operand.vmem [shape: bf16[32,64], index: 3, kind: input, shape index: {}]
  %s4 = inlined_call_operand.vmem [shape: f32[1,64], index: 4, kind: input, shape index: {}]
  %s5 = inlined_call_operand.vmem [shape: bf16[64,10], index: 5, kind: input, shape index: {}]
  %s6 = inlined_call_operand.vmem [shape: f32[1,10], index: 6, kind: input, shape index: {}]
  %s7 = inlined_call_operand.hbm [shape: f32[2,10], index: 7, kind: output, shape index: {}]
  %s8 = sld [smem:[#allocation0]]
  $region38: #{video_vit_forward.13} parent=0
    _
  %s10 = ssub.s32 1, %s8
  %s11 = scalar_select 0, %s10, %s8
  $region1: #{video_vit_forward.13} parent=0
    #allocation2 [shape = 'u8[1024]{0}', space=vmem, size = 0x400, scoped, tag = 'output window, operand 0, single buffered']
    #allocation3 [shape = 's32[1]{0}', space=sflag, size = 0x4, scoped, tag = 'scoped memory for video_vit_forward.13']
    %12 = vsyncpa [#allocation3], 0
    // Predicated region
    $region2: #{video_vit_forward.13} parent=1 // pred_check
      _
    $region3: #{video_vit_forward.13} parent=1 // pred_check_branch
      %14 = sbr.rel (0) target = $region5
    $region4: #{video_vit_forward.13} parent=1 // pred_region
      _
    $region5: #{video_vit_forward.13} parent=1 // pred_fallthru
      _
    // Predicated region
    $region6: #{video_vit_forward.13} parent=1 // pred_check
      _
    $region7: #{video_vit_forward.13} parent=1 // pred_check_branch
      %16 = sbr.rel (0) target = $region9
    $region8: #{video_vit_forward.13} parent=1 // pred_region
      _
    $region9: #{video_vit_forward.13} parent=1 // pred_fallthru
      _
    // Predicated region
    $region10: #{video_vit_forward.13} parent=1 // pred_check
      _
    $region11: #{video_vit_forward.13} parent=1 // pred_check_branch
      %18 = sbr.rel (0) target = $region13
    $region12: #{video_vit_forward.13} parent=1 // pred_region
      _
    $region13: #{video_vit_forward.13} parent=1 // pred_fallthru
      _
    // Predicated region
    $region14: #{video_vit_forward.13} parent=1 // pred_check
      _
    $region15: #{video_vit_forward.13} parent=1 // pred_check_branch
      %20 = sbr.rel (0) target = $region17
    $region16: #{video_vit_forward.13} parent=1 // pred_region
      _
    $region17: #{video_vit_forward.13} parent=1 // pred_fallthru
      _
    // Predicated region
    $region18: #{video_vit_forward.13} parent=1 // pred_check
      _
    $region19: #{video_vit_forward.13} parent=1 // pred_check_branch
      %22 = sbr.rel (0) target = $region21
    $region20: #{video_vit_forward.13} parent=1 // pred_region
      _
    $region21: #{video_vit_forward.13} parent=1 // pred_fallthru
      _
    // Predicated region
    $region22: #{video_vit_forward.13} parent=1 // pred_check
      _
    $region23: #{video_vit_forward.13} parent=1 // pred_check_branch
      %24 = sbr.rel (0) target = $region25
    $region24: #{video_vit_forward.13} parent=1 // pred_region
      _
    $region25: #{video_vit_forward.13} parent=1 // pred_fallthru
      _
    // Predicated region
    $region26: #{video_vit_forward.13} parent=1 // pred_check
      _
    $region27: #{video_vit_forward.13} parent=1 // pred_check_branch
      %26 = sbr.rel (0) target = $region29
    $region28: #{video_vit_forward.13} parent=1 // pred_region
      _
    $region29: #{video_vit_forward.13} parent=1 // pred_fallthru
      _
    %v28 = vld [vmem:[%s0] sm:$0x3]
    %v29 = vld [vmem:[%s1] sm:$0x1]
    %v30 = vld [vmem:[%s2] sm:$0x1]
    %vm31 = vcmask 254976
    %v32 = vsel %vm31, %v28, 0.0
    %33 = vadd.xlane.f32.xlu0 %v32
    %v34 = vpop.xlane.xlu0 %33
    %v35 = vrcp.pop 32.0
    %v36 = vmul.f32 32.0, %v35
    %v37 = vsub.f32 1.0, %v36
    %v38 = vmul.f32 %v35, %v37
    %v39 = vadd.f32 %v35, %v38
    %vm40 = vweird.f32 %v35
    %v41 = vsel %vm40, %v35, %v39
    %v42 = vmul.f32 %v34, %v41
    %v43 = vsub.f32 %v28, %v42
    %v44 = vmul.f32 %v43, %v43
    %v45 = vsel %vm31, %v44, 0.0
    %46 = vadd.xlane.f32.xlu0 %v45
    %v47 = vpop.xlane.xlu0 %46
    %v48 = vmul.f32 %v47, %v41
    %v49 = vadd.f32 %v48, 1e-05
    %v50 = vrsqrt.pop %v49
    %v51 = vmul.f32 %v50, %v49
    %v52 = vmul.f32 %v51, %v50
    %v53 = vmul.f32 0.5, %v52
    %v54 = vsub.f32 1.5, %v53
    %v55 = vmul.f32 %v50, %v54
    %vm56 = vweird.f32 %v49
    %vm57 = vweird.f32 %v50
    %vm58 = vmor %vm56, %vm57
    %v59 = vsel %vm58, %v50, %v55
    %v60 = vmul.f32 %v43, %v59
    %v62 = vperm.slane %v29, 0
    %v64 = vmul.f32 %v60, %v62
    %v66 = vperm.slane %v30, 0
    %v68 = vadd.f32 %v64, %v66
    %v69 = vpack.c.bf16 %v68, %v68
    %v70 = vld [vmem:[%s3] sm:$0xf]
    %v71 = vld [vmem:[%s3 + $0x4] sm:$0xf]
    %v72 = vld [vmem:[%s3 + $0x8] sm:$0xf]
    %v73 = vld [vmem:[%s3 + $0xc] sm:$0xf]
    %v74 = vld [vmem:[%s4] sm:$0x1]
    %v76 = vperm.slane %v74, 0
    %v82 = vunpack.c.l.b16 %v70
    %v83 = vunpack.c.l.b16 %v71
    %v84 = vunpack.c.l.b16 %v72
    %v85 = vunpack.c.l.b16 %v73
    %v86 = vpack.c.b16 %v83, %v82
    %v87 = vpack.c.b16 %v85, %v84
    %vm90 = vcmask 261120
    %v92 = vsel %vm90, %v69, 0
    %94 = vmatpush.bf16.msra.mxu0 0
    %95 = vmatpush.bf16.msra.mxu0 0
    %96 = vmatpush.bf16.msra.mxu0 0
    %97 = vmatpush.bf16.msra.mxu0 0
    %98 = vmatpush.bf16.msra.mxu0 0
    %99 = vmatpush.bf16.msra.mxu0 0
    %100 = vmatpush.bf16.msra.mxu0 %v87
    %101 = vmatpush.bf16.msra.mxu0 %v86
    %102 = vmatmul.bf16.gmra.mxu0 %v92
    %v103 = vpop.f32.mrf.mxu0
    %v104 = vadd.f32 %v76, %v103
    %v105 = vpop.f32.mrf.mxu0
    %106 = vdwg.mxu0
    %v107 = vmul.f32 %v104, 0.5
    %v108 = vmul.f32 %v104, 0.044715
    %v109 = vmul.f32 %v108, %v104
    %v110 = vmul.f32 %v109, %v104
    %v111 = vadd.f32 %v104, %v110
    %v112 = vmul.f32 %v111, 0.7978846
    %v113 = vtanh.pop %v112
    %v114 = vadd.f32 %v113, 1.0
    %v115 = vmul.f32 %v107, %v114
    %v116 = vpack.c.bf16 %v115, %v115
    %v117 = vld [vmem:[%s5] sm:$0xf]
    %v118 = vld [vmem:[%s5 + $0x4] sm:$0xf]
    %v119 = vld [vmem:[%s5 + $0x8] sm:$0xf]
    %v120 = vld [vmem:[%s5 + $0xc] sm:$0xf]
    %v121 = vld [vmem:[%s5 + $0x10] sm:$0xf]
    %v122 = vld [vmem:[%s5 + $0x14] sm:$0xf]
    %v123 = vld [vmem:[%s5 + $0x18] sm:$0xf]
    %v124 = vld [vmem:[%s5 + $0x1c] sm:$0xf]
    %v125 = vld [vmem:[%s6] sm:$0x1]
    %v127 = vperm.slane %v125, 0
    %v137 = vunpack.c.l.b16 %v117
    %v138 = vunpack.c.l.b16 %v118
    %v139 = vunpack.c.l.b16 %v119
    %v140 = vunpack.c.l.b16 %v120
    %v141 = vunpack.c.l.b16 %v121
    %v142 = vunpack.c.l.b16 %v122
    %v143 = vunpack.c.l.b16 %v123
    %v144 = vunpack.c.l.b16 %v124
    %v145 = vpack.c.b16 %v138, %v137
    %v146 = vpack.c.b16 %v140, %v139
    %v147 = vpack.c.b16 %v142, %v141
    %v148 = vpack.c.b16 %v144, %v143
    %vm153 = vcmask 523264
    %v155 = vsel %vm153, %v116, 0
    %157 = vmatpush.bf16.msra.mxu0 0
    %158 = vmatpush.bf16.msra.mxu0 0
    %159 = vmatpush.bf16.msra.mxu0 0
    %160 = vmatpush.bf16.msra.mxu0 0
    %161 = vmatpush.bf16.msra.mxu0 %v148
    %162 = vmatpush.bf16.msra.mxu0 %v147
    %163 = vmatpush.bf16.msra.mxu0 %v146
    %164 = vmatpush.bf16.msra.mxu0 %v145
    %165 = vmatmul.bf16.gmra.mxu0 %v155
    %v166 = vpop.f32.mrf.mxu0
    %v167 = vadd.f32 %v127, %v166
    %v168 = vpop.f32.mrf.mxu0
    %169 = vdwg.mxu0
    %vm170 = vcmask 74752
    %171 = vst.msk [vmem:[#allocation2] sm:$0x3] %vm170, %v167
    // Predicated region
    $region30: #{video_vit_forward.13} parent=1 // pred_check
      _
    $region31: #{video_vit_forward.13} parent=1 // pred_check_branch
      %173 = sbr.rel (0) target = $region33
    $region32: #{video_vit_forward.13} parent=1 // pred_region
      %175 = vsyncadd [#allocation3], 0
      %s177 = sshll.u32 [#allocation2], 4
      %s178 = int_to_ptr.vmem [resolvable:$true] %s177
      %s179 = sshll.u32 %s7, 4
      %s180 = int_to_ptr.hbm [resolvable:$true] %s179
      %182 = dma.vmem_to_hbm [thread:$0]  %s178, 32, %s180, [#allocation3]
    $region33: #{video_vit_forward.13} parent=1 // pred_fallthru
      _
    // Predicated region
    $region34: #{video_vit_forward.13} parent=1 // pred_check
      _
    $region35: #{video_vit_forward.13} parent=1 // pred_check_branch
      %184 = sbr.rel (0) target = $region37
    $region36: #{video_vit_forward.13} parent=1 // pred_region
      %186 = dma.done [#allocation3], 32
    $region37: #{video_vit_forward.13} parent=1 // pred_fallthru
      _
    %187 = vsyncpa [#allocation3], 1

// kernel: video_vit_forward.10
$region0: #{video_vit_forward.10}
  #allocation0 [shape = 'u32[]', space=smem, size = 0x4, offset = 0x4, fixed_abs, tag = 'smem constant byte address 0x4 - core index']
  #allocation1 [shape = 'u32[72,128]{1,0:T(1,128)}', space=vmem, size = 0x9000, scoped, tag = 'internal scratch']
  %s0 = inlined_call_operand.vmem [shape: f32[10,4,32], index: 0, kind: input, shape index: {}]
  %s1 = inlined_call_operand.vmem [shape: f32[1,32], index: 1, kind: input, shape index: {}]
  %s2 = inlined_call_operand.vmem [shape: f32[1,32], index: 2, kind: input, shape index: {}]
  %s3 = inlined_call_operand.vmem [shape: bf16[32,96], index: 3, kind: input, shape index: {}]
  %s4 = inlined_call_operand.vmem [shape: bf16[32,32], index: 4, kind: input, shape index: {}]
  %s5 = inlined_call_operand.vmem [shape: f32[1,32], index: 5, kind: input, shape index: {}]
  %s6 = inlined_call_operand.vmem [shape: f32[10,4,32], index: 6, kind: output, shape index: {}]
  %s7 = sld [smem:[#allocation0]]
  $region57: #{video_vit_forward.10} parent=0
    _
  %s9 = ssub.s32 1, %s7
  %s10 = scalar_select 0, %s9, %s7
  loop: start=0, step=1, limit=4
  $region2: #{video_vit_forward.10} parent=0 // loop_pre_header
    _
  $region3: #{video_vit_forward.10} parent=0 // loop_header
    %s12 = sphi 0, %s16
    %p13 = scmp.ge.s32.totalorder %s12, 4
    %s22 = sphi 0, %s24
    %s25 = sphi 0, %s22
    %s26 = sphi 0, %s25
    %s42 = sphi 0, %s26
    %s46 = sphi 0, %s46
    %s48 = sphi 0, %s46
    %s49 = sphi 0, %s48
    %s63 = sphi 0, %s49
    %s67 = sphi 0, %s67
    %s69 = sphi 0, %s67
    %s70 = sphi 0, %s69
    %s84 = sphi 0, %s70
    %s88 = sphi 0, %s88
    %s90 = sphi 0, %s88
    %s91 = sphi 0, %s90
    %s105 = sphi 0, %s91
    %s109 = sphi 0, %s109
    %s111 = sphi 0, %s109
    %s112 = sphi 0, %s111
    %s126 = sphi 0, %s112
    %s130 = sphi 0, %s130
    %s132 = sphi 0, %s130
    %s133 = sphi 0, %s132
    %s147 = sphi 0, %s133
    %s153 = sphi 0, %s155
    %s156 = sphi 0, %s153
    %s157 = sphi 0, %s156
    %s173 = sphi 0, %s157
  $region4: #{video_vit_forward.10} parent=0 // loop_header_branch
    %15 = sbr.rel (%p13) target = $region8
  $region5: #{video_vit_forward.10} parent=0 // loop_body
    %s17 = ssub.s32 %s12, 1
    %s18 = ssub.s32 %s12, 2
    %s19 = sadd.s32 %s12, 1
    %s20 = ssub.s32 %s12, %s19
    %p21 = scmp.eq.s32.totalorder %s20, 0
    %s23 = sadd.s32 %s22, 1
    %s24 = scalar_select %p21, %s22, %s23
    %p27 = pneg %p21
    %p28 = scmp.eq.s32.totalorder %s12, 1
    %p29 = por %p27, %p28
    %p30 = scmp.ne.s32.totalorder %s22, %s25
    %p31 = scmp.eq.s32.totalorder %s12, 0
    %p32 = por %p30, %p31
    %p33 = scmp.ne.s32.totalorder %s22, %s25
    %p34 = scmp.eq.s32.totalorder %s17, 1
    %p35 = por %p33, %p34
    %p36 = scmp.ne.s32.totalorder %s25, %s26
    %p37 = scmp.eq.s32.totalorder %s17, 0
    %p38 = por %p36, %p37
    %p39 = scmp.ne.s32.totalorder %s25, %s26
    %p40 = scmp.eq.s32.totalorder %s18, 1
    %p41 = por %p39, %p40
    %p43 = scmp.ne.s32.totalorder %s26, %s42
    %p44 = scmp.eq.s32.totalorder %s18, 0
    %p45 = por %p43, %p44
    %s47 = sadd.s32 %s46, 1
    %p50 = scmp.eq.s32.totalorder %s12, 1
    %p51 = scmp.ne.s32.totalorder %s46, %s48
    %p52 = scmp.eq.s32.totalorder %s12, 0
    %p53 = por %p51, %p52
    %p54 = scmp.ne.s32.totalorder %s46, %s48
    %p55 = scmp.eq.s32.totalorder %s17, 1
    %p56 = por %p54, %p55
    %p57 = scmp.ne.s32.totalorder %s48, %s49
    %p58 = scmp.eq.s32.totalorder %s17, 0
    %p59 = por %p57, %p58
    %p60 = scmp.ne.s32.totalorder %s48, %s49
    %p61 = scmp.eq.s32.totalorder %s18, 1
    %p62 = por %p60, %p61
    %p64 = scmp.ne.s32.totalorder %s49, %s63
    %p65 = scmp.eq.s32.totalorder %s18, 0
    %p66 = por %p64, %p65
    %s68 = sadd.s32 %s67, 1
    %p71 = scmp.eq.s32.totalorder %s12, 1
    %p72 = scmp.ne.s32.totalorder %s67, %s69
    %p73 = scmp.eq.s32.totalorder %s12, 0
    %p74 = por %p72, %p73
    %p75 = scmp.ne.s32.totalorder %s67, %s69
    %p76 = scmp.eq.s32.totalorder %s17, 1
    %p77 = por %p75, %p76
    %p78 = scmp.ne.s32.totalorder %s69, %s70
    %p79 = scmp.eq.s32.totalorder %s17, 0
    %p80 = por %p78, %p79
    %p81 = scmp.ne.s32.totalorder %s69, %s70
    %p82 = scmp.eq.s32.totalorder %s18, 1
    %p83 = por %p81, %p82
    %p85 = scmp.ne.s32.totalorder %s70, %s84
    %p86 = scmp.eq.s32.totalorder %s18, 0
    %p87 = por %p85, %p86
    %s89 = sadd.s32 %s88, 1
    %p92 = scmp.eq.s32.totalorder %s12, 1
    %p93 = scmp.ne.s32.totalorder %s88, %s90
    %p94 = scmp.eq.s32.totalorder %s12, 0
    %p95 = por %p93, %p94
    %p96 = scmp.ne.s32.totalorder %s88, %s90
    %p97 = scmp.eq.s32.totalorder %s17, 1
    %p98 = por %p96, %p97
    %p99 = scmp.ne.s32.totalorder %s90, %s91
    %p100 = scmp.eq.s32.totalorder %s17, 0
    %p101 = por %p99, %p100
    %p102 = scmp.ne.s32.totalorder %s90, %s91
    %p103 = scmp.eq.s32.totalorder %s18, 1
    %p104 = por %p102, %p103
    %p106 = scmp.ne.s32.totalorder %s91, %s105
    %p107 = scmp.eq.s32.totalorder %s18, 0
    %p108 = por %p106, %p107
    %s110 = sadd.s32 %s109, 1
    %p113 = scmp.eq.s32.totalorder %s12, 1
    %p114 = scmp.ne.s32.totalorder %s109, %s111
    %p115 = scmp.eq.s32.totalorder %s12, 0
    %p116 = por %p114, %p115
    %p117 = scmp.ne.s32.totalorder %s109, %s111
    %p118 = scmp.eq.s32.totalorder %s17, 1
    %p119 = por %p117, %p118
    %p120 = scmp.ne.s32.totalorder %s111, %s112
    %p121 = scmp.eq.s32.totalorder %s17, 0
    %p122 = por %p120, %p121
    %p123 = scmp.ne.s32.totalorder %s111, %s112
    %p124 = scmp.eq.s32.totalorder %s18, 1
    %p125 = por %p123, %p124
    %p127 = scmp.ne.s32.totalorder %s112, %s126
    %p128 = scmp.eq.s32.totalorder %s18, 0
    %p129 = por %p127, %p128
    %s131 = sadd.s32 %s130, 1
    %p134 = scmp.eq.s32.totalorder %s12, 1
    %p135 = scmp.ne.s32.totalorder %s130, %s132
    %p136 = scmp.eq.s32.totalorder %s12, 0
    %p137 = por %p135, %p136
    %p138 = scmp.ne.s32.totalorder %s130, %s132
    %p139 = scmp.eq.s32.totalorder %s17, 1
    %p140 = por %p138, %p139
    %p141 = scmp.ne.s32.totalorder %s132, %s133
    %p142 = scmp.eq.s32.totalorder %s17, 0
    %p143 = por %p141, %p142
    %p144 = scmp.ne.s32.totalorder %s132, %s133
    %p145 = scmp.eq.s32.totalorder %s18, 1
    %p146 = por %p144, %p145
    %p148 = scmp.ne.s32.totalorder %s133, %s147
    %p149 = scmp.eq.s32.totalorder %s18, 0
    %p150 = por %p148, %p149
    %s151 = ssub.s32 %s12, %s19
    %p152 = scmp.eq.s32.totalorder %s151, 0
    %s154 = sadd.s32 %s153, 1
    %s155 = scalar_select %p152, %s153, %s154
    %p158 = pneg %p152
    %p159 = scmp.eq.s32.totalorder %s12, 1
    %p160 = por %p158, %p159
    %p161 = scmp.ne.s32.totalorder %s153, %s156
    %p162 = scmp.eq.s32.totalorder %s12, 0
    %p163 = por %p161, %p162
    %p164 = scmp.ne.s32.totalorder %s153, %s156
    %p165 = scmp.eq.s32.totalorder %s17, 1
    %p166 = por %p164, %p165
    %p167 = scmp.ne.s32.totalorder %s156, %s157
    %p168 = scmp.eq.s32.totalorder %s17, 0
    %p169 = por %p167, %p168
    %p170 = scmp.ne.s32.totalorder %s156, %s157
    %p171 = scmp.eq.s32.totalorder %s18, 1
    %p172 = por %p170, %p171
    %p174 = scmp.ne.s32.totalorder %s157, %s173
    %p175 = scmp.eq.s32.totalorder %s18, 0
    %p176 = por %p174, %p175
    %p177 = scmp.le.s32.totalorder 1, %s12
    %p178 = scmp.lt.s32.totalorder %s12, 3
    %p179 = pnand %p177, %p178
    %p180 = pneg %p179
    // Predicated region
    $region9: #{video_vit_forward.10} parent=5 // pred_check
      _
    $region10: #{video_vit_forward.10} parent=5 // pred_check_branch
      %182 = sbr.rel (%p179) target = $region12
    $region11: #{video_vit_forward.10} parent=5 // pred_region
      %s183 = ssub.s32 %s12, 1
      // Predicated region
      $region13: #{video_vit_forward.10} parent=11 // pred_check
        %p184 = pneg %p59
      $region14: #{video_vit_forward.10} parent=11 // pred_check_branch
        %186 = sbr.rel (%p184) target = $region16
      $region15: #{video_vit_forward.10} parent=11 // pred_region
        _
      $region16: #{video_vit_forward.10} parent=11 // pred_fallthru
        _
      // Predicated region
      $region17: #{video_vit_forward.10} parent=11 // pred_check
        %p187 = pneg %p80
      $region18: #{video_vit_forward.10} parent=11 // pred_check_branch
        %189 = sbr.rel (%p187) target = $region20
      $region19: #{video_vit_forward.10} parent=11 // pred_region
        _
      $region20: #{video_vit_forward.10} parent=11 // pred_fallthru
        _
      // Predicated region
      $region21: #{video_vit_forward.10} parent=11 // pred_check
        %p190 = pneg %p101
      $region22: #{video_vit_forward.10} parent=11 // pred_check_branch
        %192 = sbr.rel (%p190) target = $region24
      $region23: #{video_vit_forward.10} parent=11 // pred_region
        _
      $region24: #{video_vit_forward.10} parent=11 // pred_fallthru
        _
      // Predicated region
      $region25: #{video_vit_forward.10} parent=11 // pred_check
        %p193 = pneg %p122
      $region26: #{video_vit_forward.10} parent=11 // pred_check_branch
        %195 = sbr.rel (%p193) target = $region28
      $region27: #{video_vit_forward.10} parent=11 // pred_region
        _
      $region28: #{video_vit_forward.10} parent=11 // pred_fallthru
        _
      // Predicated region
      $region29: #{video_vit_forward.10} parent=11 // pred_check
        %p196 = pneg %p143
      $region30: #{video_vit_forward.10} parent=11 // pred_check_branch
        %198 = sbr.rel (%p196) target = $region32
      $region31: #{video_vit_forward.10} parent=11 // pred_region
        _
      $region32: #{video_vit_forward.10} parent=11 // pred_fallthru
        _
    $region12: #{video_vit_forward.10} parent=5 // pred_fallthru
      _
    %p199 = scmp.lt.s32.totalorder %s12, 2
    // Predicated region
    $region33: #{video_vit_forward.10} parent=5 // pred_check
      %p200 = pneg %p199
    $region34: #{video_vit_forward.10} parent=5 // pred_check_branch
      %202 = sbr.rel (%p200) target = $region36
    $region35: #{video_vit_forward.10} parent=5 // pred_region
      // Predicated region
      $region37: #{video_vit_forward.10} parent=35 // pred_check
        %p203 = pneg %p32
      $region38: #{video_vit_forward.10} parent=35 // pred_check_branch
        %205 = sbr.rel (%p203) target = $region40
      $region39: #{video_vit_forward.10} parent=35 // pred_region
        %s206 = smul.u32 5, %s12
        %p207 = scmp.lt.s32.totalorder %s206, 9
        %s208 = scalar_select %p207, %s206, 9
        %s209 = smul.addr %s208, 4
        %s210 = scalar_lea.vmem %s0, %s209
        %s211 = smul.u32 5, %s12
      $region40: #{video_vit_forward.10} parent=35 // pred_fallthru
        _
    $region36: #{video_vit_forward.10} parent=5 // pred_fallthru
      _
    %p212 = scmp.le.s32.totalorder 1, %s12
    %p213 = scmp.lt.s32.totalorder %s12, 3
    %p214 = pnand %p212, %p213
    %p215 = pneg %p214
    // Predicated region
    $region41: #{video_vit_forward.10} parent=5 // pred_check
      _
    $region42: #{video_vit_forward.10} parent=5 // pred_check_branch
      %217 = sbr.rel (%p214) target = $region44
    $region43: #{video_vit_forward.10} parent=5 // pred_region
      %s218 = ssub.s32 %s12, 1
      %s219 = smul.u32 5, %s17
      %p220 = scmp.lt.s32.totalorder %s219, 9
      %s221 = scalar_select %p220, %s219, 9
      %s222 = smul.addr %s221, 4
      %s223 = scalar_lea.vmem %s0, %s222
      %p224 = pneg %p38
      %p225 = pneg %p35
      %p226 = pneg %p59
      %p227 = pneg %p56
      %p228 = pneg %p80
      %p229 = pneg %p77
      %p230 = pneg %p101
      %p231 = pneg %p98
      %p232 = pneg %p122
      %p233 = pneg %p119
      %p234 = pneg %p143
      %p235 = pneg %p140
      %p236 = pneg %p169
      %p237 = pneg %p166
      %s238 = smul.u32 5, %s17
      %p239 = scmp.lt.s32.totalorder %s238, 9
      %s240 = scalar_select %p239, %s238, 9
      %s241 = smul.addr %s240, 4
      %s242 = scalar_lea.vmem %s6, %s241
      %s243 = smul.u32 5, %s17
      %p244 = scmp.lt.s32.totalorder %s243, 9
      %s245 = scalar_select %p244, %s243, 9
      %s246 = smul.addr %s245, 4
      %s247 = scalar_lea.vmem %s0, %s246
      %s248 = smul.u32 5, %s17
      %s249 = smul.u32 5, %s17
      %p250 = scmp.lt.s32.totalorder %s249, 9
      %s251 = scalar_select %p250, %s249, 9
      %s252 = smul.addr %s251, 4
      %s253 = scalar_lea.vmem %s6, %s252
      %s254 = smul.u32 5, %s17
      %v256 = vld [vmem:[%s247] sm:$0xf]
      %v257 = vld [vmem:[%s247 + $0x4] sm:$0xf]
      %v258 = vld [vmem:[%s247 + $0x8] sm:$0xf]
      %v259 = vld [vmem:[%s247 + $0xc] sm:$0xf]
      %v260 = vld [vmem:[%s247 + $0x10] sm:$0xf]
      %v261 = vld [vmem:[%s1] sm:$0x1]
      %v262 = vld [vmem:[%s2] sm:$0x1]
      %vm263 = vcmask 257024
      %v264 = vsel %vm263, %v256, 0.0
      %265 = vadd.xlane.f32.xlu0 %v264
      %v266 = vpop.xlane.xlu0 %265
      %v267 = vsel %vm263, %v257, 0.0
      %268 = vadd.xlane.f32.xlu0 %v267
      %v269 = vpop.xlane.xlu0 %268
      %v270 = vsel %vm263, %v258, 0.0
      %271 = vadd.xlane.f32.xlu0 %v270
      %v272 = vpop.xlane.xlu0 %271
      %v273 = vsel %vm263, %v259, 0.0
      %274 = vadd.xlane.f32.xlu0 %v273
      %v275 = vpop.xlane.xlu0 %274
      %v276 = vsel %vm263, %v260, 0.0
      %277 = vadd.xlane.f32.xlu0 %v276
      %v278 = vpop.xlane.xlu0 %277
      %v279 = vrcp.pop 32.0
      %v280 = vmul.f32 32.0, %v279
      %v281 = vsub.f32 1.0, %v280
      %v282 = vmul.f32 %v279, %v281
      %v283 = vadd.f32 %v279, %v282
      %vm284 = vweird.f32 %v279
      %v285 = vsel %vm284, %v279, %v283
      %v286 = vmul.f32 %v266, %v285
      %v287 = vmul.f32 %v269, %v285
      %v288 = vmul.f32 %v272, %v285
      %v289 = vmul.f32 %v275, %v285
      %v290 = vmul.f32 %v278, %v285
      %v291 = vsub.f32 %v256, %v286
      %v292 = vsub.f32 %v257, %v287
      %v293 = vsub.f32 %v258, %v288
      %v294 = vsub.f32 %v259, %v289
      %v295 = vsub.f32 %v260, %v290
      %v296 = vmul.f32 %v291, %v291
      %v297 = vmul.f32 %v292, %v292
      %v298 = vmul.f32 %v293, %v293
      %v299 = vmul.f32 %v294, %v294
      %v300 = vmul.f32 %v295, %v295
      %v301 = vsel %vm263, %v296, 0.0
      %302 = vadd.xlane.f32.xlu0 %v301
      %v303 = vpop.xlane.xlu0 %302
      %v304 = vsel %vm263, %v297, 0.0
      %305 = vadd.xlane.f32.xlu0 %v304
      %v306 = vpop.xlane.xlu0 %305
      %v307 = vsel %vm263, %v298, 0.0
      %308 = vadd.xlane.f32.xlu0 %v307
      %v309 = vpop.xlane.xlu0 %308
      %v310 = vsel %vm263, %v299, 0.0
      %311 = vadd.xlane.f32.xlu0 %v310
      %v312 = vpop.xlane.xlu0 %311
      %v313 = vsel %vm263, %v300, 0.0
      %314 = vadd.xlane.f32.xlu0 %v313
      %v315 = vpop.xlane.xlu0 %314
      %v316 = vmul.f32 %v303, %v285
      %v317 = vmul.f32 %v306, %v285
      %v318 = vmul.f32 %v309, %v285
      %v319 = vmul.f32 %v312, %v285
      %v320 = vmul.f32 %v315, %v285
      %v321 = vadd.f32 %v316, 1e-05
      %v322 = vadd.f32 %v317, 1e-05
      %v323 = vadd.f32 %v318, 1e-05
      %v324 = vadd.f32 %v319, 1e-05
      %v325 = vadd.f32 %v320, 1e-05
      %v326 = vrsqrt.pop %v321
      %v327 = vmul.f32 %v326, %v321
      %v328 = vmul.f32 %v327, %v326
      %v329 = vmul.f32 0.5, %v328
      %v330 = vsub.f32 1.5, %v329
      %v331 = vmul.f32 %v326, %v330
      %vm332 = vweird.f32 %v321
      %vm333 = vweird.f32 %v326
      %vm334 = vmor %vm332, %vm333
      %v335 = vsel %vm334, %v326, %v331
      %v336 = vrsqrt.pop %v322
      %v337 = vmul.f32 %v336, %v322
      %v338 = vmul.f32 %v337, %v336
      %v339 = vmul.f32 0.5, %v338
      %v340 = vsub.f32 1.5, %v339
      %v341 = vmul.f32 %v336, %v340
      %vm342 = vweird.f32 %v322
      %vm343 = vweird.f32 %v336
      %vm344 = vmor %vm342, %vm343
      %v345 = vsel %vm344, %v336, %v341
      %v346 = vrsqrt.pop %v323
      %v347 = vmul.f32 %v346, %v323
      %v348 = vmul.f32 %v347, %v346
      %v349 = vmul.f32 0.5, %v348
      %v350 = vsub.f32 1.5, %v349
      %v351 = vmul.f32 %v346, %v350
      %vm352 = vweird.f32 %v323
      %vm353 = vweird.f32 %v346
      %vm354 = vmor %vm352, %vm353
      %v355 = vsel %vm354, %v346, %v351
      %v356 = vrsqrt.pop %v324
      %v357 = vmul.f32 %v356, %v324
      %v358 = vmul.f32 %v357, %v356
      %v359 = vmul.f32 0.5, %v358
      %v360 = vsub.f32 1.5, %v359
      %v361 = vmul.f32 %v356, %v360
      %vm362 = vweird.f32 %v324
      %vm363 = vweird.f32 %v356
      %vm364 = vmor %vm362, %vm363
      %v365 = vsel %vm364, %v356, %v361
      %v366 = vrsqrt.pop %v325
      %v367 = vmul.f32 %v366, %v325
      %v368 = vmul.f32 %v367, %v366
      %v369 = vmul.f32 0.5, %v368
      %v370 = vsub.f32 1.5, %v369
      %v371 = vmul.f32 %v366, %v370
      %vm372 = vweird.f32 %v325
      %vm373 = vweird.f32 %v366
      %vm374 = vmor %vm372, %vm373
      %v375 = vsel %vm374, %v366, %v371
      %v376 = vmul.f32 %v291, %v335
      %v377 = vmul.f32 %v292, %v345
      %v378 = vmul.f32 %v293, %v355
      %v379 = vmul.f32 %v294, %v365
      %v380 = vmul.f32 %v295, %v375
      %v382 = vperm.slane %v261, 0
      %v384 = vmul.f32 %v376, %v382
      %v385 = vmul.f32 %v377, %v382
      %v386 = vmul.f32 %v378, %v382
      %v387 = vmul.f32 %v379, %v382
      %v388 = vmul.f32 %v380, %v382
      %v390 = vperm.slane %v262, 0
      %v392 = vadd.f32 %v384, %v390
      %v393 = vadd.f32 %v385, %v390
      %v394 = vadd.f32 %v386, %v390
      %v395 = vadd.f32 %v387, %v390
      %v396 = vadd.f32 %v388, %v390
      %v397 = vld [vmem:[%s3] sm:$0xf]
      %v398 = vld [vmem:[%s3 + $0x4] sm:$0xf]
      %v399 = vld [vmem:[%s3 + $0x8] sm:$0xf]
      %v400 = vld [vmem:[%s3 + $0xc] sm:$0xf]
      %v401 = vld [vmem:[%s4] sm:$0xf]
      %v402 = vld [vmem:[%s4 + $0x4] sm:$0xf]
      %v403 = vld [vmem:[%s4 + $0x8] sm:$0xf]
      %v404 = vld [vmem:[%s4 + $0xc] sm:$0xf]
      %v405 = vld [vmem:[%s5] sm:$0x1]
      %v406 = vpack.c.bf16 %v392, %v392
      %v407 = vpack.c.bf16 %v393, %v393
      %v408 = vpack.c.bf16 %v394, %v394
      %v409 = vpack.c.bf16 %v395, %v395
      %v410 = vpack.c.bf16 %v396, %v396
      %412 = vst [vmem:[#allocation1] ss:$4 sm:$0xff] %v406
      %s414 = scalar_lea.vmem [#allocation1], 1
      %415 = vst [vmem:[%s414] ss:$4 sm:$0xff] %v407
      %s417 = scalar_lea.vmem [#allocation1], 2
      %418 = vst [vmem:[%s417] ss:$4 sm:$0xff] %v408
      %s420 = scalar_lea.vmem [#allocation1], 3
      %421 = vst [vmem:[%s420] ss:$4 sm:$0xff] %v409
      %s423 = scalar_lea.vmem [#allocation1], 32
      %424 = vst [vmem:[%s423] ss:$4 sm:$0xff] %v410
      %v425 = vld.sshfl [vmem:[#allocation1] sm:$0xff pattern:$0x73625140]
      %v426 = vld.sshfl [vmem:[#allocation1 + $0x20] sm:$0xff pattern:$0x73625140]
      %v431 = vunpack.c.l.b16 %v397
      %v432 = vunpack.c.l.b16 %v398
      %v433 = vunpack.c.l.b16 %v399
      %v434 = vunpack.c.l.b16 %v400
      %v435 = vpack.c.b16 %v432, %v431
      %v436 = vpack.c.b16 %v434, %v433
      %vm439 = vcmask 261120
      %v440 = vsel %vm439, %v425, 0
      %v442 = vsel %vm439, %v426, 0
      %444 = vmatpush.bf16.msra.mxu0 0
      %445 = vmatpush.bf16.msra.mxu0 0
      %446 = vmatpush.bf16.msra.mxu0 0
      %447 = vmatpush.bf16.msra.mxu0 0
      %448 = vmatpush.bf16.msra.mxu0 0
      %449 = vmatpush.bf16.msra.mxu0 0
      %450 = vmatpush.bf16.msra.mxu0 %v436
      %451 = vmatpush.bf16.msra.mxu0 %v435
      %452 = vmatmul.bf16.gmra.mxu0 %v440
      %v453 = vpop.f32.mrf.mxu0
      %v454 = vadd.f32 0.0, %v453
      %v455 = vpop.f32.mrf.mxu0
      %v456 = vadd.f32 0.0, %v455
      %457 = vmatmul.bf16.gmra.mxu0 %v442
      %v458 = vpop.f32.mrf.mxu0
      %v459 = vadd.f32 0.0, %v458
      %v460 = vpop.f32.mrf.mxu0
      %461 = vdwg.mxu0
      %v464 = vrot.slane %v454, 4
      %v465 = vrot.slane %v456, 4
      %v468 = vpack.c.bf16 %v454, %v454
      %v469 = vpack.c.bf16 %v464, %v464
      %v470 = vpack.c.bf16 %v456, %v456
      %v471 = vpack.c.bf16 %v465, %v465
      %v472 = vpack.c.bf16 %v459, %v459
      %v474 = vunpack.c.l.b16 %v468
      %v475 = vpack.c.b16 %v474, %v474
      %476 = vrot.lane.b32.xlu0 %v475, 96
      %v477 = vpop.permute.xlu0 %476
      %vm478 = vcmask 64512
      %v480 = vsel %vm478, %v468, 0
      %v483 = vsel %vm478, %v477, 0
      %485 = vmatpush.bf16.xpose.msra.mxu0 0
      %486 = vmatpush.bf16.xpose.msra.mxu0 0
      %487 = vmatpush.bf16.xpose.msra.mxu0 0
      %488 = vmatpush.bf16.xpose.msra.mxu0 0
      %489 = vmatpush.bf16.xpose.msra.mxu0 0
      %490 = vmatpush.bf16.xpose.msra.mxu0 0
      %491 = vmatpush.bf16.xpose.msra.mxu0 0
      %492 = vmatpush.bf16.xpose.msra.mxu0 %v483
      %493 = vmatmul.bf16.gmra.mxu0 %v480
      %v494 = vpop.f32.mrf.mxu0
      %v495 = vadd.f32 0.0, %v494
      %v496 = vpop.f32.mrf.mxu0
      %497 = vdwg.mxu0
      %v499 = vunpack.c.l.b16 %v469
      %v500 = vpack.c.b16 %v499, %v499
      %501 = vrot.lane.b32.xlu0 %v500, 96
      %v502 = vpop.permute.xlu0 %501
      %v504 = vsel %vm478, %v469, 0
      %v507 = vsel %vm478, %v502, 0
      %509 = vmatpush.bf16.xpose.msra.mxu0 0
      %510 = vmatpush.bf16.xpose.msra.mxu0 0
      %511 = vmatpush.bf16.xpose.msra.mxu0 0
      %512 = vmatpush.bf16.xpose.msra.mxu0 0
      %513 = vmatpush.bf16.xpose.msra.mxu0 0
      %514 = vmatpush.bf16.xpose.msra.mxu0 0
      %515 = vmatpush.bf16.xpose.msra.mxu0 0
      %516 = vmatpush.bf16.xpose.msra.mxu0 %v507
      %517 = vmatmul.bf16.gmra.mxu0 %v504
      %v518 = vpop.f32.mrf.mxu0
      %v519 = vadd.f32 0.0, %v518
      %v520 = vpop.f32.mrf.mxu0
      %521 = vdwg.mxu0
      %v523 = vunpack.c.l.b16 %v470
      %v524 = vpack.c.b16 %v523, %v523
      %525 = vrot.lane.b32.xlu0 %v524, 96
      %v526 = vpop.permute.xlu0 %525
      %v528 = vsel %vm478, %v470, 0
      %v531 = vsel %vm478, %v526, 0
      %533 = vmatpush.bf16.xpose.msra.mxu0 0
      %534 = vmatpush.bf16.xpose.msra.mxu0 0
      %535 = vmatpush.bf16.xpose.msra.mxu0 0
      %536 = vmatpush.bf16.xpose.msra.mxu0 0
      %537 = vmatpush.bf16.xpose.msra.mxu0 0
      %538 = vmatpush.bf16.xpose.msra.mxu0 0
      %539 = vmatpush.bf16.xpose.msra.mxu0 0
      %540 = vmatpush.bf16.xpose.msra.mxu0 %v531
      %541 = vmatmul.bf16.gmra.mxu0 %v528
      %v542 = vpop.f32.mrf.mxu0
      %v543 = vadd.f32 0.0, %v542
      %v544 = vpop.f32.mrf.mxu0
      %545 = vdwg.mxu0
      %v547 = vunpack.c.l.b16 %v471
      %v548 = vpack.c.b16 %v547, %v547
      %549 = vrot.lane.b32.xlu0 %v548, 96
      %v550 = vpop.permute.xlu0 %549
      %v552 = vsel %vm478, %v471, 0
      %v555 = vsel %vm478, %v550, 0
      %557 = vmatpush.bf16.xpose.msra.mxu0 0
      %558 = vmatpush.bf16.xpose.msra.mxu0 0
      %559 = vmatpush.bf16.xpose.msra.mxu0 0
      %560 = vmatpush.bf16.xpose.msra.mxu0 0
      %561 = vmatpush.bf16.xpose.msra.mxu0 0
      %562 = vmatpush.bf16.xpose.msra.mxu0 0
      %563 = vmatpush.bf16.xpose.msra.mxu0 0
      %564 = vmatpush.bf16.xpose.msra.mxu0 %v555
      %565 = vmatmul.bf16.gmra.mxu0 %v552
      %v566 = vpop.f32.mrf.mxu0
      %v567 = vadd.f32 0.0, %v566
      %v568 = vpop.f32.mrf.mxu0
      %569 = vdwg.mxu0
      %v571 = vunpack.c.l.b16 %v472
      %v572 = vpack.c.b16 %v571, %v571
      %573 = vrot.lane.b32.xlu0 %v572, 96
      %v574 = vpop.permute.xlu0 %573
      %v576 = vsel %vm478, %v472, 0
      %v579 = vsel %vm478, %v574, 0
      %581 = vmatpush.bf16.xpose.msra.mxu0 0
      %582 = vmatpush.bf16.xpose.msra.mxu0 0
      %583 = vmatpush.bf16.xpose.msra.mxu0 0
      %584 = vmatpush.bf16.xpose.msra.mxu0 0
      %585 = vmatpush.bf16.xpose.msra.mxu0 0
      %586 = vmatpush.bf16.xpose.msra.mxu0 0
      %587 = vmatpush.bf16.xpose.msra.mxu0 0
      %588 = vmatpush.bf16.xpose.msra.mxu0 %v579
      %589 = vmatmul.bf16.gmra.mxu0 %v576
      %v590 = vpop.f32.mrf.mxu0
      %v591 = vadd.f32 0.0, %v590
      %v592 = vpop.f32.mrf.mxu0
      %593 = vdwg.mxu0
      %vm594 = vcmask 27648
      %v595 = vsel %vm594, %v495, -inf
      %596 = vmax.xlane.f32.xlu0 %v595
      %v597 = vpop.xlane.xlu0 %596
      %v598 = vsel %vm594, %v519, -inf
      %599 = vmax.xlane.f32.xlu0 %v598
      %v600 = vpop.xlane.xlu0 %599
      %v601 = vsel %vm594, %v543, -inf
      %602 = vmax.xlane.f32.xlu0 %v601
      %v603 = vpop.xlane.xlu0 %602
      %v604 = vsel %vm594, %v567, -inf
      %605 = vmax.xlane.f32.xlu0 %v604
      %v606 = vpop.xlane.xlu0 %605
      %v607 = vsel %vm594, %v591, -inf
      %608 = vmax.xlane.f32.xlu0 %v607
      %v609 = vpop.xlane.xlu0 %608
      %v610 = vsub.f32 %v495, %v597
      %v611 = vsub.f32 %v519, %v600
      %v612 = vsub.f32 %v543, %v603
      %v613 = vsub.f32 %v567, %v606
      %v614 = vsub.f32 %v591, %v609
      %v615 = vmul.f32 %v610, 1.442695
      %v616 = vpow.pop %v615
      %v617 = vmul.f32 %v611, 1.442695
      %v618 = vpow.pop %v617
      %v619 = vmul.f32 %v612, 1.442695
      %v620 = vpow.pop %v619
      %v621 = vmul.f32 %v613, 1.442695
      %v622 = vpow.pop %v621
      %v623 = vmul.f32 %v614, 1.442695
      %v624 = vpow.pop %v623
      %v625 = vsel %vm594, %v616, 0.0
      %626 = vadd.xlane.f32.xlu0 %v625
      %v627 = vpop.xlane.xlu0 %626
      %v628 = vsel %vm594, %v618, 0.0
      %629 = vadd.xlane.f32.xlu0 %v628
      %v630 = vpop.xlane.xlu0 %629
      %v631 = vsel %vm594, %v620, 0.0
      %632 = vadd.xlane.f32.xlu0 %v631
      %v633 = vpop.xlane.xlu0 %632
      %v634 = vsel %vm594, %v622, 0.0
      %635 = vadd.xlane.f32.xlu0 %v634
      %v636 = vpop.xlane.xlu0 %635
      %v637 = vsel %vm594, %v624, 0.0
      %638 = vadd.xlane.f32.xlu0 %v637
      %v639 = vpop.xlane.xlu0 %638
      %v640 = vrcp.pop %v627
      %v641 = vrcp.pop %v630
      %v642 = vrcp.pop %v633
      %v643 = vrcp.pop %v636
      %v644 = vrcp.pop %v639
      %v645 = vmul.f32 %v616, %v640
      %v646 = vmul.f32 %v618, %v641
      %v647 = vmul.f32 %v620, %v642
      %v648 = vmul.f32 %v622, %v643
      %v649 = vmul.f32 %v624, %v644
      %v650 = vpack.c.bf16 %v645, %v645
      %v651 = vpack.c.bf16 %v646, %v646
      %v652 = vpack.c.bf16 %v647, %v647
      %v653 = vpack.c.bf16 %v648, %v648
      %v654 = vpack.c.bf16 %v649, %v649
      %655 = vrot.lane.b32.xlu0 %v475, 64
      %v656 = vpop.permute.xlu0 %655
      %vm657 = vcmask 31744
      %v659 = vsel %vm657, %v650, 0
      %vm661 = vcmask 1041408
      %v663 = vsel %vm661, %v656, 0
      %665 = vmatpush.bf16.msra.mxu0 0
      %666 = vmatpush.bf16.msra.mxu0 0
      %667 = vmatpush.bf16.msra.mxu0 0
      %668 = vmatpush.bf16.msra.mxu0 0
      %669 = vmatpush.bf16.msra.mxu0 0
      %670 = vmatpush.bf16.msra.mxu0 0
      %671 = vmatpush.bf16.msra.mxu0 0
      %672 = vmatpush.bf16.msra.mxu0 %v663
      %673 = vmatmul.bf16.gmra.mxu0 %v659
      %v674 = vpop.f32.mrf.mxu0
      %v675 = vadd.f32 0.0, %v674
      %v676 = vpop.f32.mrf.mxu0
      %677 = vdwg.mxu0
      %678 = vrot.lane.b32.xlu0 %v500, 64
      %v679 = vpop.permute.xlu0 %678
      %v681 = vsel %vm657, %v651, 0
      %v684 = vsel %vm661, %v679, 0
      %686 = vmatpush.bf16.msra.mxu0 0
      %687 = vmatpush.bf16.msra.mxu0 0
      %688 = vmatpush.bf16.msra.mxu0 0
      %689 = vmatpush.bf16.msra.mxu0 0
      %690 = vmatpush.bf16.msra.mxu0 0
      %691 = vmatpush.bf16.msra.mxu0 0
      %692 = vmatpush.bf16.msra.mxu0 0
      %693 = vmatpush.bf16.msra.mxu0 %v684
      %694 = vmatmul.bf16.gmra.mxu0 %v681
      %v695 = vpop.f32.mrf.mxu0
      %v696 = vadd.f32 0.0, %v695
      %v697 = vpop.f32.mrf.mxu0
      %698 = vdwg.mxu0
      %699 = vrot.lane.b32.xlu0 %v524, 64
      %v700 = vpop.permute.xlu0 %699
      %v702 = vsel %vm657, %v652, 0
      %v705 = vsel %vm661, %v700, 0
      %707 = vmatpush.bf16.msra.mxu0 0
      %708 = vmatpush.bf16.msra.mxu0 0
      %709 = vmatpush.bf16.msra.mxu0 0
      %710 = vmatpush.bf16.msra.mxu0 0
      %711 = vmatpush.bf16.msra.mxu0 0
      %712 = vmatpush.bf16.msra.mxu0 0
      %713 = vmatpush.bf16.msra.mxu0 0
      %714 = vmatpush.bf16.msra.mxu0 %v705
      %715 = vmatmul.bf16.gmra.mxu0 %v702
      %v716 = vpop.f32.mrf.mxu0
      %v717 = vadd.f32 0.0, %v716
      %v718 = vpop.f32.mrf.mxu0
      %719 = vdwg.mxu0
      %720 = vrot.lane.b32.xlu0 %v548, 64
      %v721 = vpop.permute.xlu0 %720
      %v723 = vsel %vm657, %v653, 0
      %v726 = vsel %vm661, %v721, 0
      %728 = vmatpush.bf16.msra.mxu0 0
      %729 = vmatpush.bf16.msra.mxu0 0
      %730 = vmatpush.bf16.msra.mxu0 0
      %731 = vmatpush.bf16.msra.mxu0 0
      %732 = vmatpush.bf16.msra.mxu0 0
      %733 = vmatpush.bf16.msra.mxu0 0
      %734 = vmatpush.bf16.msra.mxu0 0
      %735 = vmatpush.bf16.msra.mxu0 %v726
      %736 = vmatmul.bf16.gmra.mxu0 %v723
      %v737 = vpop.f32.mrf.mxu0
      %v738 = vadd.f32 0.0, %v737
      %v739 = vpop.f32.mrf.mxu0
      %740 = vdwg.mxu0
      %741 = vrot.lane.b32.xlu0 %v572, 64
      %v742 = vpop.permute.xlu0 %741
      %v744 = vsel %vm657, %v654, 0
      %v747 = vsel %vm661, %v742, 0
      %749 = vmatpush.bf16.msra.mxu0 0
      %750 = vmatpush.bf16.msra.mxu0 0
      %751 = vmatpush.bf16.msra.mxu0 0
      %752 = vmatpush.bf16.msra.mxu0 0
      %753 = vmatpush.bf16.msra.mxu0 0
      %754 = vmatpush.bf16.msra.mxu0 0
      %755 = vmatpush.bf16.msra.mxu0 0
      %756 = vmatpush.bf16.msra.mxu0 %v747
      %757 = vmatmul.bf16.gmra.mxu0 %v744
      %v758 = vpop.f32.mrf.mxu0
      %v759 = vadd.f32 0.0, %v758
      %v760 = vpop.f32.mrf.mxu0
      %761 = vdwg.mxu0
      %762 = vrot.lane.b32.xlu0 %v475, 120
      %v763 = vpop.permute.xlu0 %762
      %764 = vrot.lane.b32.xlu0 %v475, 88
      %v765 = vpop.permute.xlu0 %764
      %v767 = vsel %vm478, %v763, 0
      %v770 = vsel %vm478, %v765, 0
      %772 = vmatpush.bf16.xpose.msra.mxu0 0
      %773 = vmatpush.bf16.xpose.msra.mxu0 0
      %774 = vmatpush.bf16.xpose.msra.mxu0 0
      %775 = vmatpush.bf16.xpose.msra.mxu0 0
      %776 = vmatpush.bf16.xpose.msra.mxu0 0
      %777 = vmatpush.bf16.xpose.msra.mxu0 0
      %778 = vmatpush.bf16.xpose.msra.mxu0 0
      %779 = vmatpush.bf16.xpose.msra.mxu0 %v770
      %780 = vmatmul.bf16.gmra.mxu0 %v767
      %v781 = vpop.f32.mrf.mxu0
      %v782 = vadd.f32 0.0, %v781
      %v783 = vpop.f32.mrf.mxu0
      %784 = vdwg.mxu0
      %785 = vrot.lane.b32.xlu0 %v500, 120
      %v786 = vpop.permute.xlu0 %785
      %787 = vrot.lane.b32.xlu0 %v500, 88
      %v788 = vpop.permute.xlu0 %787
      %v790 = vsel %vm478, %v786, 0
      %v793 = vsel %vm478, %v788, 0
      %795 = vmatpush.bf16.xpose.msra.mxu0 0
      %796 = vmatpush.bf16.xpose.msra.mxu0 0
      %797 = vmatpush.bf16.xpose.msra.mxu0 0
      %798 = vmatpush.bf16.xpose.msra.mxu0 0
      %799 = vmatpush.bf16.xpose.msra.mxu0 0
      %800 = vmatpush.bf16.xpose.msra.mxu0 0
      %801 = vmatpush.bf16.xpose.msra.mxu0 0
      %802 = vmatpush.bf16.xpose.msra.mxu0 %v793
      %803 = vmatmul.bf16.gmra.mxu0 %v790
      %v804 = vpop.f32.mrf.mxu0
      %v805 = vadd.f32 0.0, %v804
      %v806 = vpop.f32.mrf.mxu0
      %807 = vdwg.mxu0
      %808 = vrot.lane.b32.xlu0 %v524, 120
      %v809 = vpop.permute.xlu0 %808
      %810 = vrot.lane.b32.xlu0 %v524, 88
      %v811 = vpop.permute.xlu0 %810
      %v813 = vsel %vm478, %v809, 0
      %v816 = vsel %vm478, %v811, 0
      %818 = vmatpush.bf16.xpose.msra.mxu0 0
      %819 = vmatpush.bf16.xpose.msra.mxu0 0
      %820 = vmatpush.bf16.xpose.msra.mxu0 0
      %821 = vmatpush.bf16.xpose.msra.mxu0 0
      %822 = vmatpush.bf16.xpose.msra.mxu0 0
      %823 = vmatpush.bf16.xpose.msra.mxu0 0
      %824 = vmatpush.bf16.xpose.msra.mxu0 0
      %825 = vmatpush.bf16.xpose.msra.mxu0 %v816
      %826 = vmatmul.bf16.gmra.mxu0 %v813
      %v827 = vpop.f32.mrf.mxu0
      %v828 = vadd.f32 0.0, %v827
      %v829 = vpop.f32.mrf.mxu0
      %830 = vdwg.mxu0
      %831 = vrot.lane.b32.xlu0 %v548, 120
      %v832 = vpop.permute.xlu0 %831
      %833 = vrot.lane.b32.xlu0 %v548, 88
      %v834 = vpop.permute.xlu0 %833
      %v836 = vsel %vm478, %v832, 0
      %v839 = vsel %vm478, %v834, 0
      %841 = vmatpush.bf16.xpose.msra.mxu0 0
      %842 = vmatpush.bf16.xpose.msra.mxu0 0
      %843 = vmatpush.bf16.xpose.msra.mxu0 0
      %844 = vmatpush.bf16.xpose.msra.mxu0 0
      %845 = vmatpush.bf16.xpose.msra.mxu0 0
      %846 = vmatpush.bf16.xpose.msra.mxu0 0
      %847 = vmatpush.bf16.xpose.msra.mxu0 0
      %848 = vmatpush.bf16.xpose.msra.mxu0 %v839
      %849 = vmatmul.bf16.gmra.mxu0 %v836
      %v850 = vpop.f32.mrf.mxu0
      %v851 = vadd.f32 0.0, %v850
      %v852 = vpop.f32.mrf.mxu0
      %853 = vdwg.mxu0
      %854 = vrot.lane.b32.xlu0 %v572, 120
      %v855 = vpop.permute.xlu0 %854
      %856 = vrot.lane.b32.xlu0 %v572, 88
      %v857 = vpop.permute.xlu0 %856
      %v859 = vsel %vm478, %v855, 0
      %v862 = vsel %vm478, %v857, 0
      %864 = vmatpush.bf16.xpose.msra.mxu0 0
      %865 = vmatpush.bf16.xpose.msra.mxu0 0
      %866 = vmatpush.bf16.xpose.msra.mxu0 0
      %867 = vmatpush.bf16.xpose.msra.mxu0 0
      %868 = vmatpush.bf16.xpose.msra.mxu0 0
      %869 = vmatpush.bf16.xpose.msra.mxu0 0
      %870 = vmatpush.bf16.xpose.msra.mxu0 0
      %871 = vmatpush.bf16.xpose.msra.mxu0 %v862
      %872 = vmatmul.bf16.gmra.mxu0 %v859
      %v873 = vpop.f32.mrf.mxu0
      %v874 = vadd.f32 0.0, %v873
      %v875 = vpop.f32.mrf.mxu0
      %876 = vdwg.mxu0
      %v877 = vsel %vm594, %v782, -inf
      %878 = vmax.xlane.f32.xlu0 %v877
      %v879 = vpop.xlane.xlu0 %878
      %v880 = vsel %vm594, %v805, -inf
      %881 = vmax.xlane.f32.xlu0 %v880
      %v882 = vpop.xlane.xlu0 %881
      %v883 = vsel %vm594, %v828, -inf
      %884 = vmax.xlane.f32.xlu0 %v883
      %v885 = vpop.xlane.xlu0 %884
      %v886 = vsel %vm594, %v851, -inf
      %887 = vmax.xlane.f32.xlu0 %v886
      %v888 = vpop.xlane.xlu0 %887
      %v889 = vsel %vm594, %v874, -inf
      %890 = vmax.xlane.f32.xlu0 %v889
      %v891 = vpop.xlane.xlu0 %890
      %v892 = vsub.f32 %v782, %v879
      %v893 = vsub.f32 %v805, %v882
      %v894 = vsub.f32 %v828, %v885
      %v895 = vsub.f32 %v851, %v888
      %v896 = vsub.f32 %v874, %v891
      %v897 = vmul.f32 %v892, 1.442695
      %v898 = vpow.pop %v897
      %v899 = vmul.f32 %v893, 1.442695
      %v900 = vpow.pop %v899
      %v901 = vmul.f32 %v894, 1.442695
      %v902 = vpow.pop %v901
      %v903 = vmul.f32 %v895, 1.442695
      %v904 = vpow.pop %v903
      %v905 = vmul.f32 %v896, 1.442695
      %v906 = vpow.pop %v905
      %v907 = vsel %vm594, %v898, 0.0
      %908 = vadd.xlane.f32.xlu0 %v907
      %v909 = vpop.xlane.xlu0 %908
      %v910 = vsel %vm594, %v900, 0.0
      %911 = vadd.xlane.f32.xlu0 %v910
      %v912 = vpop.xlane.xlu0 %911
      %v913 = vsel %vm594, %v902, 0.0
      %914 = vadd.xlane.f32.xlu0 %v913
      %v915 = vpop.xlane.xlu0 %914
      %v916 = vsel %vm594, %v904, 0.0
      %917 = vadd.xlane.f32.xlu0 %v916
      %v918 = vpop.xlane.xlu0 %917
      %v919 = vsel %vm594, %v906, 0.0
      %920 = vadd.xlane.f32.xlu0 %v919
      %v921 = vpop.xlane.xlu0 %920
      %v922 = vrcp.pop %v909
      %v923 = vrcp.pop %v912
      %v924 = vrcp.pop %v915
      %v925 = vrcp.pop %v918
      %v926 = vrcp.pop %v921
      %v927 = vmul.f32 %v898, %v922
      %v928 = vmul.f32 %v900, %v923
      %v929 = vmul.f32 %v902, %v924
      %v930 = vmul.f32 %v904, %v925
      %v931 = vmul.f32 %v906, %v926
      %v932 = vpack.c.bf16 %v927, %v927
      %v933 = vpack.c.bf16 %v928, %v928
      %v934 = vpack.c.bf16 %v929, %v929
      %v935 = vpack.c.bf16 %v930, %v930
      %v936 = vpack.c.bf16 %v931, %v931
      %937 = vrot.lane.b32.xlu0 %v475, 56
      %v938 = vpop.permute.xlu0 %937
      %v940 = vsel %vm657, %v932, 0
      %v943 = vsel %vm661, %v938, 0
      %945 = vmatpush.bf16.msra.mxu0 0
      %946 = vmatpush.bf16.msra.mxu0 0
      %947 = vmatpush.bf16.msra.mxu0 0
      %948 = vmatpush.bf16.msra.mxu0 0
      %949 = vmatpush.bf16.msra.mxu0 0
      %950 = vmatpush.bf16.msra.mxu0 0
      %951 = vmatpush.bf16.msra.mxu0 0
      %952 = vmatpush.bf16.msra.mxu0 %v943
      %953 = vmatmul.bf16.gmra.mxu0 %v940
      %v954 = vpop.f32.mrf.mxu0
      %v955 = vadd.f32 0.0, %v954
      %v956 = vpop.f32.mrf.mxu0
      %957 = vdwg.mxu0
      %958 = vrot.lane.b32.xlu0 %v500, 56
      %v959 = vpop.permute.xlu0 %958
      %v961 = vsel %vm657, %v933, 0
      %v964 = vsel %vm661, %v959, 0
      %966 = vmatpush.bf16.msra.mxu0 0
      %967 = vmatpush.bf16.msra.mxu0 0
      %968 = vmatpush.bf16.msra.mxu0 0
      %969 = vmatpush.bf16.msra.mxu0 0
      %970 = vmatpush.bf16.msra.mxu0 0
      %971 = vmatpush.bf16.msra.mxu0 0
      %972 = vmatpush.bf16.msra.mxu0 0
      %973 = vmatpush.bf16.msra.mxu0 %v964
      %974 = vmatmul.bf16.gmra.mxu0 %v961
      %v975 = vpop.f32.mrf.mxu0
      %v976 = vadd.f32 0.0, %v975
      %v977 = vpop.f32.mrf.mxu0
      %978 = vdwg.mxu0
      %979 = vrot.lane.b32.xlu0 %v524, 56
      %v980 = vpop.permute.xlu0 %979
      %v982 = vsel %vm657, %v934, 0
      %v985 = vsel %vm661, %v980, 0
      %987 = vmatpush.bf16.msra.mxu0 0
      %988 = vmatpush.bf16.msra.mxu0 0
      %989 = vmatpush.bf16.msra.mxu0 0
      %990 = vmatpush.bf16.msra.mxu0 0
      %991 = vmatpush.bf16.msra.mxu0 0
      %992 = vmatpush.bf16.msra.mxu0 0
      %993 = vmatpush.bf16.msra.mxu0 0
      %994 = vmatpush.bf16.msra.mxu0 %v985
      %995 = vmatmul.bf16.gmra.mxu0 %v982
      %v996 = vpop.f32.mrf.mxu0
      %v997 = vadd.f32 0.0, %v996
      %v998 = vpop.f32.mrf.mxu0
      %999 = vdwg.mxu0
      %1000 = vrot.lane.b32.xlu0 %v548, 56
      %v1001 = vpop.permute.xlu0 %1000
      %v1003 = vsel %vm657, %v935, 0
      %v1006 = vsel %vm661, %v1001, 0
      %1008 = vmatpush.bf16.msra.mxu0 0
      %1009 = vmatpush.bf16.msra.mxu0 0
      %1010 = vmatpush.bf16.msra.mxu0 0
      %1011 = vmatpush.bf16.msra.mxu0 0
      %1012 = vmatpush.bf16.msra.mxu0 0
      %1013 = vmatpush.bf16.msra.mxu0 0
      %1014 = vmatpush.bf16.msra.mxu0 0
      %1015 = vmatpush.bf16.msra.mxu0 %v1006
      %1016 = vmatmul.bf16.gmra.mxu0 %v1003
      %v1017 = vpop.f32.mrf.mxu0
      %v1018 = vadd.f32 0.0, %v1017
      %v1019 = vpop.f32.mrf.mxu0
      %1020 = vdwg.mxu0
      %1021 = vrot.lane.b32.xlu0 %v572, 56
      %v1022 = vpop.permute.xlu0 %1021
      %v1024 = vsel %vm657, %v936, 0
      %v1027 = vsel %vm661, %v1022, 0
      %1029 = vmatpush.bf16.msra.mxu0 0
      %1030 = vmatpush.bf16.msra.mxu0 0
      %1031 = vmatpush.bf16.msra.mxu0 0
      %1032 = vmatpush.bf16.msra.mxu0 0
      %1033 = vmatpush.bf16.msra.mxu0 0
      %1034 = vmatpush.bf16.msra.mxu0 0
      %1035 = vmatpush.bf16.msra.mxu0 0
      %1036 = vmatpush.bf16.msra.mxu0 %v1027
      %1037 = vmatmul.bf16.gmra.mxu0 %v1024
      %v1038 = vpop.f32.mrf.mxu0
      %v1039 = vadd.f32 0.0, %v1038
      %v1040 = vpop.f32.mrf.mxu0
      %1041 = vdwg.mxu0
      %1042 = vrot.lane.b32.xlu0 %v475, 112
      %v1043 = vpop.permute.xlu0 %1042
      %1044 = vrot.lane.b32.xlu0 %v475, 80
      %v1045 = vpop.permute.xlu0 %1044
      %v1047 = vsel %vm478, %v1043, 0
      %v1050 = vsel %vm478, %v1045, 0
      %1052 = vmatpush.bf16.xpose.msra.mxu0 0
      %1053 = vmatpush.bf16.xpose.msra.mxu0 0
      %1054 = vmatpush.bf16.xpose.msra.mxu0 0
      %1055 = vmatpush.bf16.xpose.msra.mxu0 0
      %1056 = vmatpush.bf16.xpose.msra.mxu0 0
      %1057 = vmatpush.bf16.xpose.msra.mxu0 0
      %1058 = vmatpush.bf16.xpose.msra.mxu0 0
      %1059 = vmatpush.bf16.xpose.msra.mxu0 %v1050
      %1060 = vmatmul.bf16.gmra.mxu0 %v1047
      %v1061 = vpop.f32.mrf.mxu0
      %v1062 = vadd.f32 0.0, %v1061
      %v1063 = vpop.f32.mrf.mxu0
      %1064 = vdwg.mxu0
      %1065 = vrot.lane.b32.xlu0 %v500, 112
      %v1066 = vpop.permute.xlu0 %1065
      %1067 = vrot.lane.b32.xlu0 %v500, 80
      %v1068 = vpop.permute.xlu0 %1067
      %v1070 = vsel %vm478, %v1066, 0
      %v1073 = vsel %vm478, %v1068, 0
      %1075 = vmatpush.bf16.xpose.msra.mxu0 0
      %1076 = vmatpush.bf16.xpose.msra.mxu0 0
      %1077 = vmatpush.bf16.xpose.msra.mxu0 0
      %1078 = vmatpush.bf16.xpose.msra.mxu0 0
      %1079 = vmatpush.bf16.xpose.msra.mxu0 0
      %1080 = vmatpush.bf16.xpose.msra.mxu0 0
      %1081 = vmatpush.bf16.xpose.msra.mxu0 0
      %1082 = vmatpush.bf16.xpose.msra.mxu0 %v1073
      %1083 = vmatmul.bf16.gmra.mxu0 %v1070
      %v1084 = vpop.f32.mrf.mxu0
      %v1085 = vadd.f32 0.0, %v1084
      %v1086 = vpop.f32.mrf.mxu0
      %1087 = vdwg.mxu0
      %1088 = vrot.lane.b32.xlu0 %v524, 112
      %v1089 = vpop.permute.xlu0 %1088
      %1090 = vrot.lane.b32.xlu0 %v524, 80
      %v1091 = vpop.permute.xlu0 %1090
      %v1093 = vsel %vm478, %v1089, 0
      %v1096 = vsel %vm478, %v1091, 0
      %1098 = vmatpush.bf16.xpose.msra.mxu0 0
      %1099 = vmatpush.bf16.xpose.msra.mxu0 0
      %1100 = vmatpush.bf16.xpose.msra.mxu0 0
      %1101 = vmatpush.bf16.xpose.msra.mxu0 0
      %1102 = vmatpush.bf16.xpose.msra.mxu0 0
      %1103 = vmatpush.bf16.xpose.msra.mxu0 0
      %1104 = vmatpush.bf16.xpose.msra.mxu0 0
      %1105 = vmatpush.bf16.xpose.msra.mxu0 %v1096
      %1106 = vmatmul.bf16.gmra.mxu0 %v1093
      %v1107 = vpop.f32.mrf.mxu0
      %v1108 = vadd.f32 0.0, %v1107
      %v1109 = vpop.f32.mrf.mxu0
      %1110 = vdwg.mxu0
      %1111 = vrot.lane.b32.xlu0 %v548, 112
      %v1112 = vpop.permute.xlu0 %1111
      %1113 = vrot.lane.b32.xlu0 %v548, 80
      %v1114 = vpop.permute.xlu0 %1113
      %v1116 = vsel %vm478, %v1112, 0
      %v1119 = vsel %vm478, %v1114, 0
      %1121 = vmatpush.bf16.xpose.msra.mxu0 0
      %1122 = vmatpush.bf16.xpose.msra.mxu0 0
      %1123 = vmatpush.bf16.xpose.msra.mxu0 0
      %1124 = vmatpush.bf16.xpose.msra.mxu0 0
      %1125 = vmatpush.bf16.xpose.msra.mxu0 0
      %1126 = vmatpush.bf16.xpose.msra.mxu0 0
      %1127 = vmatpush.bf16.xpose.msra.mxu0 0
      %1128 = vmatpush.bf16.xpose.msra.mxu0 %v1119
      %1129 = vmatmul.bf16.gmra.mxu0 %v1116
      %v1130 = vpop.f32.mrf.mxu0
      %v1131 = vadd.f32 0.0, %v1130
      %v1132 = vpop.f32.mrf.mxu0
      %1133 = vdwg.mxu0
      %1134 = vrot.lane.b32.xlu0 %v572, 112
      %v1135 = vpop.permute.xlu0 %1134
      %1136 = vrot.lane.b32.xlu0 %v572, 80
      %v1137 = vpop.permute.xlu0 %1136
      %v1139 = vsel %vm478, %v1135, 0
      %v1142 = vsel %vm478, %v1137, 0
      %1144 = vmatpush.bf16.xpose.msra.mxu0 0
      %1145 = vmatpush.bf16.xpose.msra.mxu0 0
      %1146 = vmatpush.bf16.xpose.msra.mxu0 0
      %1147 = vmatpush.bf16.xpose.msra.mxu0 0
      %1148 = vmatpush.bf16.xpose.msra.mxu0 0
      %1149 = vmatpush.bf16.xpose.msra.mxu0 0
      %1150 = vmatpush.bf16.xpose.msra.mxu0 0
      %1151 = vmatpush.bf16.xpose.msra.mxu0 %v1142
      %1152 = vmatmul.bf16.gmra.mxu0 %v1139
      %v1153 = vpop.f32.mrf.mxu0
      %v1154 = vadd.f32 0.0, %v1153
      %v1155 = vpop.f32.mrf.mxu0
      %1156 = vdwg.mxu0
      %v1157 = vsel %vm594, %v1062, -inf
      %1158 = vmax.xlane.f32.xlu0 %v1157
      %v1159 = vpop.xlane.xlu0 %1158
      %v1160 = vsel %vm594, %v1085, -inf
      %1161 = vmax.xlane.f32.xlu0 %v1160
      %v1162 = vpop.xlane.xlu0 %1161
      %v1163 = vsel %vm594, %v1108, -inf
      %1164 = vmax.xlane.f32.xlu0 %v1163
      %v1165 = vpop.xlane.xlu0 %1164
      %v1166 = vsel %vm594, %v1131, -inf
      %1167 = vmax.xlane.f32.xlu0 %v1166
      %v1168 = vpop.xlane.xlu0 %1167
      %v1169 = vsel %vm594, %v1154, -inf
      %1170 = vmax.xlane.f32.xlu0 %v1169
      %v1171 = vpop.xlane.xlu0 %1170
      %v1172 = vsub.f32 %v1062, %v1159
      %v1173 = vsub.f32 %v1085, %v1162
      %v1174 = vsub.f32 %v1108, %v1165
      %v1175 = vsub.f32 %v1131, %v1168
      %v1176 = vsub.f32 %v1154, %v1171
      %v1177 = vmul.f32 %v1172, 1.442695
      %v1178 = vpow.pop %v1177
      %v1179 = vmul.f32 %v1173, 1.442695
      %v1180 = vpow.pop %v1179
      %v1181 = vmul.f32 %v1174, 1.442695
      %v1182 = vpow.pop %v1181
      %v1183 = vmul.f32 %v1175, 1.442695
      %v1184 = vpow.pop %v1183
      %v1185 = vmul.f32 %v1176, 1.442695
      %v1186 = vpow.pop %v1185
      %v1187 = vsel %vm594, %v1178, 0.0
      %1188 = vadd.xlane.f32.xlu0 %v1187
      %v1189 = vpop.xlane.xlu0 %1188
      %v1190 = vsel %vm594, %v1180, 0.0
      %1191 = vadd.xlane.f32.xlu0 %v1190
      %v1192 = vpop.xlane.xlu0 %1191
      %v1193 = vsel %vm594, %v1182, 0.0
      %1194 = vadd.xlane.f32.xlu0 %v1193
      %v1195 = vpop.xlane.xlu0 %1194
      %v1196 = vsel %vm594, %v1184, 0.0
      %1197 = vadd.xlane.f32.xlu0 %v1196
      %v1198 = vpop.xlane.xlu0 %1197
      %v1199 = vsel %vm594, %v1186, 0.0
      %1200 = vadd.xlane.f32.xlu0 %v1199
      %v1201 = vpop.xlane.xlu0 %1200
      %v1202 = vrcp.pop %v1189
      %v1203 = vrcp.pop %v1192
      %v1204 = vrcp.pop %v1195
      %v1205 = vrcp.pop %v1198
      %v1206 = vrcp.pop %v1201
      %v1207 = vmul.f32 %v1178, %v1202
      %v1208 = vmul.f32 %v1180, %v1203
      %v1209 = vmul.f32 %v1182, %v1204
      %v1210 = vmul.f32 %v1184, %v1205
      %v1211 = vmul.f32 %v1186, %v1206
      %v1212 = vpack.c.bf16 %v1207, %v1207
      %v1213 = vpack.c.bf16 %v1208, %v1208
      %v1214 = vpack.c.bf16 %v1209, %v1209
      %v1215 = vpack.c.bf16 %v1210, %v1210
      %v1216 = vpack.c.bf16 %v1211, %v1211
      %1217 = vrot.lane.b32.xlu0 %v475, 48
      %v1218 = vpop.permute.xlu0 %1217
      %v1220 = vsel %vm657, %v1212, 0
      %v1223 = vsel %vm661, %v1218, 0
      %1225 = vmatpush.bf16.msra.mxu0 0
      %1226 = vmatpush.bf16.msra.mxu0 0
      %1227 = vmatpush.bf16.msra.mxu0 0
      %1228 = vmatpush.bf16.msra.mxu0 0
      %1229 = vmatpush.bf16.msra.mxu0 0
      %1230 = vmatpush.bf16.msra.mxu0 0
      %1231 = vmatpush.bf16.msra.mxu0 0
      %1232 = vmatpush.bf16.msra.mxu0 %v1223
      %1233 = vmatmul.bf16.gmra.mxu0 %v1220
      %v1234 = vpop.f32.mrf.mxu0
      %v1235 = vadd.f32 0.0, %v1234
      %v1236 = vpop.f32.mrf.mxu0
      %1237 = vdwg.mxu0
      %1238 = vrot.lane.b32.xlu0 %v500, 48
      %v1239 = vpop.permute.xlu0 %1238
      %v1241 = vsel %vm657, %v1213, 0
      %v1244 = vsel %vm661, %v1239, 0
      %1246 = vmatpush.bf16.msra.mxu0 0
      %1247 = vmatpush.bf16.msra.mxu0 0
      %1248 = vmatpush.bf16.msra.mxu0 0
      %1249 = vmatpush.bf16.msra.mxu0 0
      %1250 = vmatpush.bf16.msra.mxu0 0
      %1251 = vmatpush.bf16.msra.mxu0 0
      %1252 = vmatpush.bf16.msra.mxu0 0
      %1253 = vmatpush.bf16.msra.mxu0 %v1244
      %1254 = vmatmul.bf16.gmra.mxu0 %v1241
      %v1255 = vpop.f32.mrf.mxu0
      %v1256 = vadd.f32 0.0, %v1255
      %v1257 = vpop.f32.mrf.mxu0
      %1258 = vdwg.mxu0
      %1259 = vrot.lane.b32.xlu0 %v524, 48
      %v1260 = vpop.permute.xlu0 %1259
      %v1262 = vsel %vm657, %v1214, 0
      %v1265 = vsel %vm661, %v1260, 0
      %1267 = vmatpush.bf16.msra.mxu0 0
      %1268 = vmatpush.bf16.msra.mxu0 0
      %1269 = vmatpush.bf16.msra.mxu0 0
      %1270 = vmatpush.bf16.msra.mxu0 0
      %1271 = vmatpush.bf16.msra.mxu0 0
      %1272 = vmatpush.bf16.msra.mxu0 0
      %1273 = vmatpush.bf16.msra.mxu0 0
      %1274 = vmatpush.bf16.msra.mxu0 %v1265
      %1275 = vmatmul.bf16.gmra.mxu0 %v1262
      %v1276 = vpop.f32.mrf.mxu0
      %v1277 = vadd.f32 0.0, %v1276
      %v1278 = vpop.f32.mrf.mxu0
      %1279 = vdwg.mxu0
      %1280 = vrot.lane.b32.xlu0 %v548, 48
      %v1281 = vpop.permute.xlu0 %1280
      %v1283 = vsel %vm657, %v1215, 0
      %v1286 = vsel %vm661, %v1281, 0
      %1288 = vmatpush.bf16.msra.mxu0 0
      %1289 = vmatpush.bf16.msra.mxu0 0
      %1290 = vmatpush.bf16.msra.mxu0 0
      %1291 = vmatpush.bf16.msra.mxu0 0
      %1292 = vmatpush.bf16.msra.mxu0 0
      %1293 = vmatpush.bf16.msra.mxu0 0
      %1294 = vmatpush.bf16.msra.mxu0 0
      %1295 = vmatpush.bf16.msra.mxu0 %v1286
      %1296 = vmatmul.bf16.gmra.mxu0 %v1283
      %v1297 = vpop.f32.mrf.mxu0
      %v1298 = vadd.f32 0.0, %v1297
      %v1299 = vpop.f32.mrf.mxu0
      %1300 = vdwg.mxu0
      %1301 = vrot.lane.b32.xlu0 %v572, 48
      %v1302 = vpop.permute.xlu0 %1301
      %v1304 = vsel %vm657, %v1216, 0
      %v1307 = vsel %vm661, %v1302, 0
      %1309 = vmatpush.bf16.msra.mxu0 0
      %1310 = vmatpush.bf16.msra.mxu0 0
      %1311 = vmatpush.bf16.msra.mxu0 0
      %1312 = vmatpush.bf16.msra.mxu0 0
      %1313 = vmatpush.bf16.msra.mxu0 0
      %1314 = vmatpush.bf16.msra.mxu0 0
      %1315 = vmatpush.bf16.msra.mxu0 0
      %1316 = vmatpush.bf16.msra.mxu0 %v1307
      %1317 = vmatmul.bf16.gmra.mxu0 %v1304
      %v1318 = vpop.f32.mrf.mxu0
      %v1319 = vadd.f32 0.0, %v1318
      %v1320 = vpop.f32.mrf.mxu0
      %1321 = vdwg.mxu0
      %1322 = vrot.lane.b32.xlu0 %v475, 104
      %v1323 = vpop.permute.xlu0 %1322
      %1324 = vrot.lane.b32.xlu0 %v475, 72
      %v1325 = vpop.permute.xlu0 %1324
      %v1327 = vsel %vm478, %v1323, 0
      %v1330 = vsel %vm478, %v1325, 0
      %1332 = vmatpush.bf16.xpose.msra.mxu0 0
      %1333 = vmatpush.bf16.xpose.msra.mxu0 0
      %1334 = vmatpush.bf16.xpose.msra.mxu0 0
      %1335 = vmatpush.bf16.xpose.msra.mxu0 0
      %1336 = vmatpush.bf16.xpose.msra.mxu0 0
      %1337 = vmatpush.bf16.xpose.msra.mxu0 0
      %1338 = vmatpush.bf16.xpose.msra.mxu0 0
      %1339 = vmatpush.bf16.xpose.msra.mxu0 %v1330
      %1340 = vmatmul.bf16.gmra.mxu0 %v1327
      %v1341 = vpop.f32.mrf.mxu0
      %v1342 = vadd.f32 0.0, %v1341
      %v1343 = vpop.f32.mrf.mxu0
      %1344 = vdwg.mxu0
      %1345 = vrot.lane.b32.xlu0 %v500, 104
      %v1346 = vpop.permute.xlu0 %1345
      %1347 = vrot.lane.b32.xlu0 %v500, 72
      %v1348 = vpop.permute.xlu0 %1347
      %v1350 = vsel %vm478, %v1346, 0
      %v1353 = vsel %vm478, %v1348, 0
      %1355 = vmatpush.bf16.xpose.msra.mxu0 0
      %1356 = vmatpush.bf16.xpose.msra.mxu0 0
      %1357 = vmatpush.bf16.xpose.msra.mxu0 0
      %1358 = vmatpush.bf16.xpose.msra.mxu0 0
      %1359 = vmatpush.bf16.xpose.msra.mxu0 0
      %1360 = vmatpush.bf16.xpose.msra.mxu0 0
      %1361 = vmatpush.bf16.xpose.msra.mxu0 0
      %1362 = vmatpush.bf16.xpose.msra.mxu0 %v1353
      %1363 = vmatmul.bf16.gmra.mxu0 %v1350
      %v1364 = vpop.f32.mrf.mxu0
      %v1365 = vadd.f32 0.0, %v1364
      %v1366 = vpop.f32.mrf.mxu0
      %1367 = vdwg.mxu0
      %1368 = vrot.lane.b32.xlu0 %v524, 104
      %v1369 = vpop.permute.xlu0 %1368
      %1370 = vrot.lane.b32.xlu0 %v524, 72
      %v1371 = vpop.permute.xlu0 %1370
      %v1373 = vsel %vm478, %v1369, 0
      %v1376 = vsel %vm478, %v1371, 0
      %1378 = vmatpush.bf16.xpose.msra.mxu0 0
      %1379 = vmatpush.bf16.xpose.msra.mxu0 0
      %1380 = vmatpush.bf16.xpose.msra.mxu0 0
      %1381 = vmatpush.bf16.xpose.msra.mxu0 0
      %1382 = vmatpush.bf16.xpose.msra.mxu0 0
      %1383 = vmatpush.bf16.xpose.msra.mxu0 0
      %1384 = vmatpush.bf16.xpose.msra.mxu0 0
      %1385 = vmatpush.bf16.xpose.msra.mxu0 %v1376
      %1386 = vmatmul.bf16.gmra.mxu0 %v1373
      %v1387 = vpop.f32.mrf.mxu0
      %v1388 = vadd.f32 0.0, %v1387
      %v1389 = vpop.f32.mrf.mxu0
      %1390 = vdwg.mxu0
      %1391 = vrot.lane.b32.xlu0 %v548, 104
      %v1392 = vpop.permute.xlu0 %1391
      %1393 = vrot.lane.b32.xlu0 %v548, 72
      %v1394 = vpop.permute.xlu0 %1393
      %v1396 = vsel %vm478, %v1392, 0
      %v1399 = vsel %vm478, %v1394, 0
      %1401 = vmatpush.bf16.xpose.msra.mxu0 0
      %1402 = vmatpush.bf16.xpose.msra.mxu0 0
      %1403 = vmatpush.bf16.xpose.msra.mxu0 0
      %1404 = vmatpush.bf16.xpose.msra.mxu0 0
      %1405 = vmatpush.bf16.xpose.msra.mxu0 0
      %1406 = vmatpush.bf16.xpose.msra.mxu0 0
      %1407 = vmatpush.bf16.xpose.msra.mxu0 0
      %1408 = vmatpush.bf16.xpose.msra.mxu0 %v1399
      %1409 = vmatmul.bf16.gmra.mxu0 %v1396
      %v1410 = vpop.f32.mrf.mxu0
      %v1411 = vadd.f32 0.0, %v1410
      %v1412 = vpop.f32.mrf.mxu0
      %1413 = vdwg.mxu0
      %1414 = vrot.lane.b32.xlu0 %v572, 104
      %v1415 = vpop.permute.xlu0 %1414
      %1416 = vrot.lane.b32.xlu0 %v572, 72
      %v1417 = vpop.permute.xlu0 %1416
      %v1419 = vsel %vm478, %v1415, 0
      %v1422 = vsel %vm478, %v1417, 0
      %1424 = vmatpush.bf16.xpose.msra.mxu0 0
      %1425 = vmatpush.bf16.xpose.msra.mxu0 0
      %1426 = vmatpush.bf16.xpose.msra.mxu0 0
      %1427 = vmatpush.bf16.xpose.msra.mxu0 0
      %1428 = vmatpush.bf16.xpose.msra.mxu0 0
      %1429 = vmatpush.bf16.xpose.msra.mxu0 0
      %1430 = vmatpush.bf16.xpose.msra.mxu0 0
      %1431 = vmatpush.bf16.xpose.msra.mxu0 %v1422
      %1432 = vmatmul.bf16.gmra.mxu0 %v1419
      %v1433 = vpop.f32.mrf.mxu0
      %v1434 = vadd.f32 0.0, %v1433
      %v1435 = vpop.f32.mrf.mxu0
      %1436 = vdwg.mxu0
      %v1437 = vsel %vm594, %v1342, -inf
      %1438 = vmax.xlane.f32.xlu0 %v1437
      %v1439 = vpop.xlane.xlu0 %1438
      %v1440 = vsel %vm594, %v1365, -inf
      %1441 = vmax.xlane.f32.xlu0 %v1440
      %v1442 = vpop.xlane.xlu0 %1441
      %v1443 = vsel %vm594, %v1388, -inf
      %1444 = vmax.xlane.f32.xlu0 %v1443
      %v1445 = vpop.xlane.xlu0 %1444
      %v1446 = vsel %vm594, %v1411, -inf
      %1447 = vmax.xlane.f32.xlu0 %v1446
      %v1448 = vpop.xlane.xlu0 %1447
      %v1449 = vsel %vm594, %v1434, -inf
      %1450 = vmax.xlane.f32.xlu0 %v1449
      %v1451 = vpop.xlane.xlu0 %1450
      %v1452 = vsub.f32 %v1342, %v1439
      %v1453 = vsub.f32 %v1365, %v1442
      %v1454 = vsub.f32 %v1388, %v1445
      %v1455 = vsub.f32 %v1411, %v1448
      %v1456 = vsub.f32 %v1434, %v1451
      %v1457 = vmul.f32 %v1452, 1.442695
      %v1458 = vpow.pop %v1457
      %v1459 = vmul.f32 %v1453, 1.442695
      %v1460 = vpow.pop %v1459
      %v1461 = vmul.f32 %v1454, 1.442695
      %v1462 = vpow.pop %v1461
      %v1463 = vmul.f32 %v1455, 1.442695
      %v1464 = vpow.pop %v1463
      %v1465 = vmul.f32 %v1456, 1.442695
      %v1466 = vpow.pop %v1465
      %v1467 = vsel %vm594, %v1458, 0.0
      %1468 = vadd.xlane.f32.xlu0 %v1467
      %v1469 = vpop.xlane.xlu0 %1468
      %v1470 = vsel %vm594, %v1460, 0.0
      %1471 = vadd.xlane.f32.xlu0 %v1470
      %v1472 = vpop.xlane.xlu0 %1471
      %v1473 = vsel %vm594, %v1462, 0.0
      %1474 = vadd.xlane.f32.xlu0 %v1473
      %v1475 = vpop.xlane.xlu0 %1474
      %v1476 = vsel %vm594, %v1464, 0.0
      %1477 = vadd.xlane.f32.xlu0 %v1476
      %v1478 = vpop.xlane.xlu0 %1477
      %v1479 = vsel %vm594, %v1466, 0.0
      %1480 = vadd.xlane.f32.xlu0 %v1479
      %v1481 = vpop.xlane.xlu0 %1480
      %v1482 = vrcp.pop %v1469
      %v1483 = vrcp.pop %v1472
      %v1484 = vrcp.pop %v1475
      %v1485 = vrcp.pop %v1478
      %v1486 = vrcp.pop %v1481
      %v1487 = vmul.f32 %v1458, %v1482
      %v1488 = vmul.f32 %v1460, %v1483
      %v1489 = vmul.f32 %v1462, %v1484
      %v1490 = vmul.f32 %v1464, %v1485
      %v1491 = vmul.f32 %v1466, %v1486
      %v1492 = vpack.c.bf16 %v1487, %v1487
      %v1493 = vpack.c.bf16 %v1488, %v1488
      %v1494 = vpack.c.bf16 %v1489, %v1489
      %v1495 = vpack.c.bf16 %v1490, %v1490
      %v1496 = vpack.c.bf16 %v1491, %v1491
      %1497 = vrot.lane.b32.xlu0 %v475, 40
      %v1498 = vpop.permute.xlu0 %1497
      %v1500 = vsel %vm657, %v1492, 0
      %v1503 = vsel %vm661, %v1498, 0
      %1505 = vmatpush.bf16.msra.mxu0 0
      %1506 = vmatpush.bf16.msra.mxu0 0
      %1507 = vmatpush.bf16.msra.mxu0 0
      %1508 = vmatpush.bf16.msra.mxu0 0
      %1509 = vmatpush.bf16.msra.mxu0 0
      %1510 = vmatpush.bf16.msra.mxu0 0
      %1511 = vmatpush.bf16.msra.mxu0 0
      %1512 = vmatpush.bf16.msra.mxu0 %v1503
      %1513 = vmatmul.bf16.gmra.mxu0 %v1500
      %v1514 = vpop.f32.mrf.mxu0
      %v1515 = vadd.f32 0.0, %v1514
      %v1516 = vpop.f32.mrf.mxu0
      %1517 = vdwg.mxu0
      %1518 = vrot.lane.b32.xlu0 %v500, 40
      %v1519 = vpop.permute.xlu0 %1518
      %v1521 = vsel %vm657, %v1493, 0
      %v1524 = vsel %vm661, %v1519, 0
      %1526 = vmatpush.bf16.msra.mxu0 0
      %1527 = vmatpush.bf16.msra.mxu0 0
      %1528 = vmatpush.bf16.msra.mxu0 0
      %1529 = vmatpush.bf16.msra.mxu0 0
      %1530 = vmatpush.bf16.msra.mxu0 0
      %1531 = vmatpush.bf16.msra.mxu0 0
      %1532 = vmatpush.bf16.msra.mxu0 0
      %1533 = vmatpush.bf16.msra.mxu0 %v1524
      %1534 = vmatmul.bf16.gmra.mxu0 %v1521
      %v1535 = vpop.f32.mrf.mxu0
      %v1536 = vadd.f32 0.0, %v1535
      %v1537 = vpop.f32.mrf.mxu0
      %1538 = vdwg.mxu0
      %1539 = vrot.lane.b32.xlu0 %v524, 40
      %v1540 = vpop.permute.xlu0 %1539
      %v1542 = vsel %vm657, %v1494, 0
      %v1545 = vsel %vm661, %v1540, 0
      %1547 = vmatpush.bf16.msra.mxu0 0
      %1548 = vmatpush.bf16.msra.mxu0 0
      %1549 = vmatpush.bf16.msra.mxu0 0
      %1550 = vmatpush.bf16.msra.mxu0 0
      %1551 = vmatpush.bf16.msra.mxu0 0
      %1552 = vmatpush.bf16.msra.mxu0 0
      %1553 = vmatpush.bf16.msra.mxu0 0
      %1554 = vmatpush.bf16.msra.mxu0 %v1545
      %1555 = vmatmul.bf16.gmra.mxu0 %v1542
      %v1556 = vpop.f32.mrf.mxu0
      %v1557 = vadd.f32 0.0, %v1556
      %v1558 = vpop.f32.mrf.mxu0
      %1559 = vdwg.mxu0
      %1560 = vrot.lane.b32.xlu0 %v548, 40
      %v1561 = vpop.permute.xlu0 %1560
      %v1563 = vsel %vm657, %v1495, 0
      %v1566 = vsel %vm661, %v1561, 0
      %1568 = vmatpush.bf16.msra.mxu0 0
      %1569 = vmatpush.bf16.msra.mxu0 0
      %1570 = vmatpush.bf16.msra.mxu0 0
      %1571 = vmatpush.bf16.msra.mxu0 0
      %1572 = vmatpush.bf16.msra.mxu0 0
      %1573 = vmatpush.bf16.msra.mxu0 0
      %1574 = vmatpush.bf16.msra.mxu0 0
      %1575 = vmatpush.bf16.msra.mxu0 %v1566
      %1576 = vmatmul.bf16.gmra.mxu0 %v1563
      %v1577 = vpop.f32.mrf.mxu0
      %v1578 = vadd.f32 0.0, %v1577
      %v1579 = vpop.f32.mrf.mxu0
      %1580 = vdwg.mxu0
      %1581 = vrot.lane.b32.xlu0 %v572, 40
      %v1582 = vpop.permute.xlu0 %1581
      %v1584 = vsel %vm657, %v1496, 0
      %v1587 = vsel %vm661, %v1582, 0
      %1589 = vmatpush.bf16.msra.mxu0 0
      %1590 = vmatpush.bf16.msra.mxu0 0
      %1591 = vmatpush.bf16.msra.mxu0 0
      %1592 = vmatpush.bf16.msra.mxu0 0
      %1593 = vmatpush.bf16.msra.mxu0 0
      %1594 = vmatpush.bf16.msra.mxu0 0
      %1595 = vmatpush.bf16.msra.mxu0 0
      %1596 = vmatpush.bf16.msra.mxu0 %v1587
      %1597 = vmatmul.bf16.gmra.mxu0 %v1584
      %v1598 = vpop.f32.mrf.mxu0
      %v1599 = vadd.f32 0.0, %v1598
      %v1600 = vpop.f32.mrf.mxu0
      %1601 = vdwg.mxu0
      %1607 = vrot.lane.b32.xlu0 %v955, 8
      %v1608 = vpop.permute.xlu0 %1607
      %1609 = vrot.lane.b32.xlu0 %v976, 8
      %v1610 = vpop.permute.xlu0 %1609
      %1611 = vrot.lane.b32.xlu0 %v997, 8
      %v1612 = vpop.permute.xlu0 %1611
      %1613 = vrot.lane.b32.xlu0 %v1018, 8
      %v1614 = vpop.permute.xlu0 %1613
      %1615 = vrot.lane.b32.xlu0 %v1039, 8
      %v1616 = vpop.permute.xlu0 %1615
      %1627 = vrot.lane.b32.xlu0 %v1235, 16
      %v1628 = vpop.permute.xlu0 %1627
      %1629 = vrot.lane.b32.xlu0 %v1256, 16
      %v1630 = vpop.permute.xlu0 %1629
      %1631 = vrot.lane.b32.xlu0 %v1277, 16
      %v1632 = vpop.permute.xlu0 %1631
      %1633 = vrot.lane.b32.xlu0 %v1298, 16
      %v1634 = vpop.permute.xlu0 %1633
      %1635 = vrot.lane.b32.xlu0 %v1319, 16
      %v1636 = vpop.permute.xlu0 %1635
      %1647 = vrot.lane.b32.xlu0 %v1515, 24
      %v1648 = vpop.permute.xlu0 %1647
      %1649 = vrot.lane.b32.xlu0 %v1536, 24
      %v1650 = vpop.permute.xlu0 %1649
      %1651 = vrot.lane.b32.xlu0 %v1557, 24
      %v1652 = vpop.permute.xlu0 %1651
      %1653 = vrot.lane.b32.xlu0 %v1578, 24
      %v1654 = vpop.permute.xlu0 %1653
      %1655 = vrot.lane.b32.xlu0 %v1599, 24
      %v1656 = vpop.permute.xlu0 %1655
      %v1662 = vsel %vm478, %v675, %v1608
      %v1663 = vsel %vm478, %v696, %v1610
      %v1664 = vsel %vm478, %v717, %v1612
      %v1665 = vsel %vm478, %v738, %v1614
      %v1666 = vsel %vm478, %v759, %v1616
      %vm1667 = vcmask 130048
      %v1668 = vsel %vm1667, %v1662, %v1628
      %v1669 = vsel %vm1667, %v1663, %v1630
      %v1670 = vsel %vm1667, %v1664, %v1632
      %v1671 = vsel %vm1667, %v1665, %v1634
      %v1672 = vsel %vm1667, %v1666, %v1636
      %vm1673 = vcmask 195584
      %v1674 = vsel %vm1673, %v1668, %v1648
      %v1675 = vsel %vm1673, %v1669, %v1650
      %v1676 = vsel %vm1673, %v1670, %v1652
      %v1677 = vsel %vm1673, %v1671, %v1654
      %v1678 = vsel %vm1673, %v1672, %v1656
      %v1679 = vpack.c.bf16 %v1674, %v1674
      %v1680 = vpack.c.bf16 %v1675, %v1675
      %v1681 = vpack.c.bf16 %v1676, %v1676
      %v1682 = vpack.c.bf16 %v1677, %v1677
      %v1683 = vpack.c.bf16 %v1678, %v1678
      %v1685 = vperm.slane %v405, 0
      %1687 = vst [vmem:[#allocation1] ss:$4 sm:$0xff] %v1679
      %s1689 = scalar_lea.vmem [#allocation1], 1
      %1690 = vst [vmem:[%s1689] ss:$4 sm:$0xff] %v1680
      %s1692 = scalar_lea.vmem [#allocation1], 2
      %1693 = vst [vmem:[%s1692] ss:$4 sm:$0xff] %v1681
      %s1695 = scalar_lea.vmem [#allocation1], 3
      %1696 = vst [vmem:[%s1695] ss:$4 sm:$0xff] %v1682
      %s1698 = scalar_lea.vmem [#allocation1], 32
      %1699 = vst [vmem:[%s1698] ss:$4 sm:$0xff] %v1683
      %v1700 = vld.sshfl [vmem:[#allocation1] sm:$0xff pattern:$0x73625140]
      %v1701 = vld.sshfl [vmem:[#allocation1 + $0x20] sm:$0xff pattern:$0x73625140]
      %v1706 = vunpack.c.l.b16 %v401
      %v1707 = vunpack.c.l.b16 %v402
      %v1708 = vunpack.c.l.b16 %v403
      %v1709 = vunpack.c.l.b16 %v404
      %v1710 = vpack.c.b16 %v1707, %v1706
      %v1711 = vpack.c.b16 %v1709, %v1708
      %1714 = vst [vmem:[#allocation1] ss:$2 sm:$0xff] %v1685
      %s1715 = scalar_lea.vmem [#allocation1], 1
      %1716 = vst [vmem:[%s1715] ss:$2 sm:$0xff] %v1685
      %s1717 = scalar_lea.vmem [#allocation1], 16
      %1718 = vst [vmem:[%s1717] ss:$2 sm:$0xff] %v1685
      %s1719 = scalar_lea.vmem [#allocation1], 17
      %1720 = vst [vmem:[%s1719] ss:$2 sm:$0xff] %v1685
      %s1721 = scalar_lea.vmem [#allocation1], 32
      %1722 = vst [vmem:[%s1721] ss:$2 sm:$0xff] %v1685
      %v1723 = vld.sshfl [vmem:[#allocation1] sm:$0xff pattern:$0x75316420]
      %v1724 = vld.sshfl [vmem:[#allocation1 + $0x10] sm:$0xff pattern:$0x75316420]
      %v1725 = vld.sshfl [vmem:[#allocation1 + $0x20] sm:$0xff pattern:$0x75316420]
      %v1729 = vsel %vm439, %v1700, 0
      %v1731 = vsel %vm439, %v1701, 0
      %1733 = vmatpush.bf16.msra.mxu0 0
      %1734 = vmatpush.bf16.msra.mxu0 0
      %1735 = vmatpush.bf16.msra.mxu0 0
      %1736 = vmatpush.bf16.msra.mxu0 0
      %1737 = vmatpush.bf16.msra.mxu0 0
      %1738 = vmatpush.bf16.msra.mxu0 0
      %1739 = vmatpush.bf16.msra.mxu0 %v1711
      %1740 = vmatpush.bf16.msra.mxu0 %v1710
      %1741 = vmatmul.bf16.gmra.mxu0 %v1729
      %v1742 = vpop.f32.mrf.mxu0
      %v1743 = vadd.f32 %v1723, %v1742
      %v1744 = vpop.f32.mrf.mxu0
      %v1745 = vadd.f32 %v1724, %v1744
      %1746 = vmatmul.bf16.gmra.mxu0 %v1731
      %v1747 = vpop.f32.mrf.mxu0
      %v1748 = vadd.f32 %v1725, %v1747
      %v1749 = vpop.f32.mrf.mxu0
      %1750 = vdwg.mxu0
      %v1753 = vrot.slane %v1743, 4
      %v1754 = vrot.slane %v1745, 4
      %v1757 = vadd.f32 %v256, %v1743
      %v1758 = vadd.f32 %v257, %v1753
      %v1759 = vadd.f32 %v258, %v1745
      %v1760 = vadd.f32 %v259, %v1754
      %v1761 = vadd.f32 %v260, %v1748
      %1762 = vst.msk [vmem:[%s253] sm:$0xf] %vm263, %v1757
      %1763 = vst.msk [vmem:[%s253 + $0x4] sm:$0xf] %vm263, %v1758
      %1764 = vst.msk [vmem:[%s253 + $0x8] sm:$0xf] %vm263, %v1759
      %1765 = vst.msk [vmem:[%s253 + $0xc] sm:$0xf] %vm263, %v1760
      %1766 = vst.msk [vmem:[%s253 + $0x10] sm:$0xf] %vm263, %v1761
      %s1767 = smul.u32 5, %s17
      %p1768 = scmp.lt.s32.totalorder %s1767, 9
      %s1769 = scalar_select %p1768, %s1767, 9
      %s1770 = smul.addr %s1769, 4
      %s1771 = scalar_lea.vmem %s6, %s1770
      // Predicated region
      $region45: #{video_vit_forward.10} parent=43 // pred_check
        %p1772 = pneg %p166
      $region46: #{video_vit_forward.10} parent=43 // pred_check_branch
        %1774 = sbr.rel (%p1772) target = $region48
      $region47: #{video_vit_forward.10} parent=43 // pred_region
        %s1775 = smul.u32 5, %s17
      $region48: #{video_vit_forward.10} parent=43 // pred_fallthru
        _
    $region44: #{video_vit_forward.10} parent=5 // pred_fallthru
      _
    %p1776 = scmp.le.s32.totalorder 2, %s12
    // Predicated region
    $region49: #{video_vit_forward.10} parent=5 // pred_check
      %p1777 = pneg %p1776
    $region50: #{video_vit_forward.10} parent=5 // pred_check_branch
      %1779 = sbr.rel (%p1777) target = $region52
    $region51: #{video_vit_forward.10} parent=5 // pred_region
      %s1780 = ssub.s32 %s12, 2
      // Predicated region
      $region53: #{video_vit_forward.10} parent=51 // pred_check
        %p1781 = pneg %p172
      $region54: #{video_vit_forward.10} parent=51 // pred_check_branch
        %1783 = sbr.rel (%p1781) target = $region56
      $region55: #{video_vit_forward.10} parent=51 // pred_region
        %s1784 = smul.u32 5, %s18
        %p1785 = scmp.lt.s32.totalorder %s1784, 9
        %s1786 = scalar_select %p1785, %s1784, 9
        %s1787 = smul.addr %s1786, 4
        %s1788 = scalar_lea.vmem %s6, %s1787
      $region56: #{video_vit_forward.10} parent=51 // pred_fallthru
        _
    $region52: #{video_vit_forward.10} parent=5 // pred_fallthru
      _
  $region6: #{video_vit_forward.10} parent=0 // loop_footer
    %s16 = sadd.s32 1, %s12
  $region7: #{video_vit_forward.10} parent=0 // loop_footer_branch
    %11 = sbr.rel target = $region3
  $region8: #{video_vit_forward.10} parent=0 // loop_exit
    _

// kernel: video_vit_forward.8
$region0: #{video_vit_forward.8}
  #allocation0 [shape = 'u32[]', space=smem, size = 0x4, offset = 0x4, fixed_abs, tag = 'smem constant byte address 0x4 - core index']
  #allocation1 [shape = 'u32[72,128]{1,0:T(1,128)}', space=vmem, size = 0x9000, scoped, tag = 'internal scratch']
  %s0 = inlined_call_operand.vmem [shape: f32[8,5,32], index: 0, kind: input, shape index: {}]
  %s1 = inlined_call_operand.vmem [shape: f32[1,32], index: 1, kind: input, shape index: {}]
  %s2 = inlined_call_operand.vmem [shape: f32[1,32], index: 2, kind: input, shape index: {}]
  %s3 = inlined_call_operand.vmem [shape: bf16[32,96], index: 3, kind: input, shape index: {}]
  %s4 = inlined_call_operand.vmem [shape: bf16[32,32], index: 4, kind: input, shape index: {}]
  %s5 = inlined_call_operand.vmem [shape: f32[1,32], index: 5, kind: input, shape index: {}]
  %s6 = inlined_call_operand.vmem [shape: f32[1,32], index: 6, kind: input, shape index: {}]
  %s7 = inlined_call_operand.vmem [shape: f32[1,32], index: 7, kind: input, shape index: {}]
  %s8 = inlined_call_operand.vmem [shape: bf16[32,64], index: 8, kind: input, shape index: {}]
  %s9 = inlined_call_operand.vmem [shape: f32[1,64], index: 9, kind: input, shape index: {}]
  %s10 = inlined_call_operand.vmem [shape: bf16[64,32], index: 10, kind: input, shape index: {}]
  %s11 = inlined_call_operand.vmem [shape: f32[1,32], index: 11, kind: input, shape index: {}]
  %s12 = inlined_call_operand.vmem [shape: f32[8,5,32], index: 12, kind: output, shape index: {}]
  %s13 = sld [smem:[#allocation0]]
  $region81: #{video_vit_forward.8} parent=0
    _
  %s15 = ssub.s32 1, %s13
  %s16 = scalar_select 0, %s15, %s13
  loop: start=0, step=1, limit=4
  $region2: #{video_vit_forward.8} parent=0 // loop_pre_header
    _
  $region3: #{video_vit_forward.8} parent=0 // loop_header
    %s18 = sphi 0, %s22
    %p19 = scmp.ge.s32.totalorder %s18, 4
    %s28 = sphi 0, %s30
    %s31 = sphi 0, %s28
    %s32 = sphi 0, %s31
    %s48 = sphi 0, %s32
    %s52 = sphi 0, %s52
    %s54 = sphi 0, %s52
    %s55 = sphi 0, %s54
    %s69 = sphi 0, %s55
    %s73 = sphi 0, %s73
    %s75 = sphi 0, %s73
    %s76 = sphi 0, %s75
    %s90 = sphi 0, %s76
    %s94 = sphi 0, %s94
    %s96 = sphi 0, %s94
    %s97 = sphi 0, %s96
    %s111 = sphi 0, %s97
    %s115 = sphi 0, %s115
    %s117 = sphi 0, %s115
    %s118 = sphi 0, %s117
    %s132 = sphi 0, %s118
    %s136 = sphi 0, %s136
    %s138 = sphi 0, %s136
    %s139 = sphi 0, %s138
    %s153 = sphi 0, %s139
    %s157 = sphi 0, %s157
    %s159 = sphi 0, %s157
    %s160 = sphi 0, %s159
    %s174 = sphi 0, %s160
    %s178 = sphi 0, %s178
    %s180 = sphi 0, %s178
    %s181 = sphi 0, %s180
    %s195 = sphi 0, %s181
    %s199 = sphi 0, %s199
    %s201 = sphi 0, %s199
    %s202 = sphi 0, %s201
    %s216 = sphi 0, %s202
    %s220 = sphi 0, %s220
    %s222 = sphi 0, %s220
    %s223 = sphi 0, %s222
    %s237 = sphi 0, %s223
    %s241 = sphi 0, %s241
    %s243 = sphi 0, %s241
    %s244 = sphi 0, %s243
    %s258 = sphi 0, %s244
    %s262 = sphi 0, %s262
    %s264 = sphi 0, %s262
    %s265 = sphi 0, %s264
    %s279 = sphi 0, %s265
    %s285 = sphi 0, %s287
    %s288 = sphi 0, %s285
    %s289 = sphi 0, %s288
    %s305 = sphi 0, %s289
  $region4: #{video_vit_forward.8} parent=0 // loop_header_branch
    %21 = sbr.rel (%p19) target = $region8
  $region5: #{video_vit_forward.8} parent=0 // loop_body
    %s23 = ssub.s32 %s18, 1
    %s24 = ssub.s32 %s18, 2
    %s25 = sadd.s32 %s18, 1
    %s26 = ssub.s32 %s18, %s25
    %p27 = scmp.eq.s32.totalorder %s26, 0
    %s29 = sadd.s32 %s28, 1
    %s30 = scalar_select %p27, %s28, %s29
    %p33 = pneg %p27
    %p34 = scmp.eq.s32.totalorder %s18, 1
    %p35 = por %p33, %p34
    %p36 = scmp.ne.s32.totalorder %s28, %s31
    %p37 = scmp.eq.s32.totalorder %s18, 0
    %p38 = por %p36, %p37
    %p39 = scmp.ne.s32.totalorder %s28, %s31
    %p40 = scmp.eq.s32.totalorder %s23, 1
    %p41 = por %p39, %p40
    %p42 = scmp.ne.s32.totalorder %s31, %s32
    %p43 = scmp.eq.s32.totalorder %s23, 0
    %p44 = por %p42, %p43
    %p45 = scmp.ne.s32.totalorder %s31, %s32
    %p46 = scmp.eq.s32.totalorder %s24, 1
    %p47 = por %p45, %p46
    %p49 = scmp.ne.s32.totalorder %s32, %s48
    %p50 = scmp.eq.s32.totalorder %s24, 0
    %p51 = por %p49, %p50
    %s53 = sadd.s32 %s52, 1
    %p56 = scmp.eq.s32.totalorder %s18, 1
    %p57 = scmp.ne.s32.totalorder %s52, %s54
    %p58 = scmp.eq.s32.totalorder %s18, 0
    %p59 = por %p57, %p58
    %p60 = scmp.ne.s32.totalorder %s52, %s54
    %p61 = scmp.eq.s32.totalorder %s23, 1
    %p62 = por %p60, %p61
    %p63 = scmp.ne.s32.totalorder %s54, %s55
    %p64 = scmp.eq.s32.totalorder %s23, 0
    %p65 = por %p63, %p64
    %p66 = scmp.ne.s32.totalorder %s54, %s55
    %p67 = scmp.eq.s32.totalorder %s24, 1
    %p68 = por %p66, %p67
    %p70 = scmp.ne.s32.totalorder %s55, %s69
    %p71 = scmp.eq.s32.totalorder %s24, 0
    %p72 = por %p70, %p71
    %s74 = sadd.s32 %s73, 1
    %p77 = scmp.eq.s32.totalorder %s18, 1
    %p78 = scmp.ne.s32.totalorder %s73, %s75
    %p79 = scmp.eq.s32.totalorder %s18, 0
    %p80 = por %p78, %p79
    %p81 = scmp.ne.s32.totalorder %s73, %s75
    %p82 = scmp.eq.s32.totalorder %s23, 1
    %p83 = por %p81, %p82
    %p84 = scmp.ne.s32.totalorder %s75, %s76
    %p85 = scmp.eq.s32.totalorder %s23, 0
    %p86 = por %p84, %p85
    %p87 = scmp.ne.s32.totalorder %s75, %s76
    %p88 = scmp.eq.s32.totalorder %s24, 1
    %p89 = por %p87, %p88
    %p91 = scmp.ne.s32.totalorder %s76, %s90
    %p92 = scmp.eq.s32.totalorder %s24, 0
    %p93 = por %p91, %p92
    %s95 = sadd.s32 %s94, 1
    %p98 = scmp.eq.s32.totalorder %s18, 1
    %p99 = scmp.ne.s32.totalorder %s94, %s96
    %p100 = scmp.eq.s32.totalorder %s18, 0
    %p101 = por %p99, %p100
    %p102 = scmp.ne.s32.totalorder %s94, %s96
    %p103 = scmp.eq.s32.totalorder %s23, 1
    %p104 = por %p102, %p103
    %p105 = scmp.ne.s32.totalorder %s96, %s97
    %p106 = scmp.eq.s32.totalorder %s23, 0
    %p107 = por %p105, %p106
    %p108 = scmp.ne.s32.totalorder %s96, %s97
    %p109 = scmp.eq.s32.totalorder %s24, 1
    %p110 = por %p108, %p109
    %p112 = scmp.ne.s32.totalorder %s97, %s111
    %p113 = scmp.eq.s32.totalorder %s24, 0
    %p114 = por %p112, %p113
    %s116 = sadd.s32 %s115, 1
    %p119 = scmp.eq.s32.totalorder %s18, 1
    %p120 = scmp.ne.s32.totalorder %s115, %s117
    %p121 = scmp.eq.s32.totalorder %s18, 0
    %p122 = por %p120, %p121
    %p123 = scmp.ne.s32.totalorder %s115, %s117
    %p124 = scmp.eq.s32.totalorder %s23, 1
    %p125 = por %p123, %p124
    %p126 = scmp.ne.s32.totalorder %s117, %s118
    %p127 = scmp.eq.s32.totalorder %s23, 0
    %p128 = por %p126, %p127
    %p129 = scmp.ne.s32.totalorder %s117, %s118
    %p130 = scmp.eq.s32.totalorder %s24, 1
    %p131 = por %p129, %p130
    %p133 = scmp.ne.s32.totalorder %s118, %s132
    %p134 = scmp.eq.s32.totalorder %s24, 0
    %p135 = por %p133, %p134
    %s137 = sadd.s32 %s136, 1
    %p140 = scmp.eq.s32.totalorder %s18, 1
    %p141 = scmp.ne.s32.totalorder %s136, %s138
    %p142 = scmp.eq.s32.totalorder %s18, 0
    %p143 = por %p141, %p142
    %p144 = scmp.ne.s32.totalorder %s136, %s138
    %p145 = scmp.eq.s32.totalorder %s23, 1
    %p146 = por %p144, %p145
    %p147 = scmp.ne.s32.totalorder %s138, %s139
    %p148 = scmp.eq.s32.totalorder %s23, 0
    %p149 = por %p147, %p148
    %p150 = scmp.ne.s32.totalorder %s138, %s139
    %p151 = scmp.eq.s32.totalorder %s24, 1
    %p152 = por %p150, %p151
    %p154 = scmp.ne.s32.totalorder %s139, %s153
    %p155 = scmp.eq.s32.totalorder %s24, 0
    %p156 = por %p154, %p155
    %s158 = sadd.s32 %s157, 1
    %p161 = scmp.eq.s32.totalorder %s18, 1
    %p162 = scmp.ne.s32.totalorder %s157, %s159
    %p163 = scmp.eq.s32.totalorder %s18, 0
    %p164 = por %p162, %p163
    %p165 = scmp.ne.s32.totalorder %s157, %s159
    %p166 = scmp.eq.s32.totalorder %s23, 1
    %p167 = por %p165, %p166
    %p168 = scmp.ne.s32.totalorder %s159, %s160
    %p169 = scmp.eq.s32.totalorder %s23, 0
    %p170 = por %p168, %p169
    %p171 = scmp.ne.s32.totalorder %s159, %s160
    %p172 = scmp.eq.s32.totalorder %s24, 1
    %p173 = por %p171, %p172
    %p175 = scmp.ne.s32.totalorder %s160, %s174
    %p176 = scmp.eq.s32.totalorder %s24, 0
    %p177 = por %p175, %p176
    %s179 = sadd.s32 %s178, 1
    %p182 = scmp.eq.s32.totalorder %s18, 1
    %p183 = scmp.ne.s32.totalorder %s178, %s180
    %p184 = scmp.eq.s32.totalorder %s18, 0
    %p185 = por %p183, %p184
    %p186 = scmp.ne.s32.totalorder %s178, %s180
    %p187 = scmp.eq.s32.totalorder %s23, 1
    %p188 = por %p186, %p187
    %p189 = scmp.ne.s32.totalorder %s180, %s181
    %p190 = scmp.eq.s32.totalorder %s23, 0
    %p191 = por %p189, %p190
    %p192 = scmp.ne.s32.totalorder %s180, %s181
    %p193 = scmp.eq.s32.totalorder %s24, 1
    %p194 = por %p192, %p193
    %p196 = scmp.ne.s32.totalorder %s181, %s195
    %p197 = scmp.eq.s32.totalorder %s24, 0
    %p198 = por %p196, %p197
    %s200 = sadd.s32 %s199, 1
    %p203 = scmp.eq.s32.totalorder %s18, 1
    %p204 = scmp.ne.s32.totalorder %s199, %s201
    %p205 = scmp.eq.s32.totalorder %s18, 0
    %p206 = por %p204, %p205
    %p207 = scmp.ne.s32.totalorder %s199, %s201
    %p208 = scmp.eq.s32.totalorder %s23, 1
    %p209 = por %p207, %p208
    %p210 = scmp.ne.s32.totalorder %s201, %s202
    %p211 = scmp.eq.s32.totalorder %s23, 0
    %p212 = por %p210, %p211
    %p213 = scmp.ne.s32.totalorder %s201, %s202
    %p214 = scmp.eq.s32.totalorder %s24, 1
    %p215 = por %p213, %p214
    %p217 = scmp.ne.s32.totalorder %s202, %s216
    %p218 = scmp.eq.s32.totalorder %s24, 0
    %p219 = por %p217, %p218
    %s221 = sadd.s32 %s220, 1
    %p224 = scmp.eq.s32.totalorder %s18, 1
    %p225 = scmp.ne.s32.totalorder %s220, %s222
    %p226 = scmp.eq.s32.totalorder %s18, 0
    %p227 = por %p225, %p226
    %p228 = scmp.ne.s32.totalorder %s220, %s222
    %p229 = scmp.eq.s32.totalorder %s23, 1
    %p230 = por %p228, %p229
    %p231 = scmp.ne.s32.totalorder %s222, %s223
    %p232 = scmp.eq.s32.totalorder %s23, 0
    %p233 = por %p231, %p232
    %p234 = scmp.ne.s32.totalorder %s222, %s223
    %p235 = scmp.eq.s32.totalorder %s24, 1
    %p236 = por %p234, %p235
    %p238 = scmp.ne.s32.totalorder %s223, %s237
    %p239 = scmp.eq.s32.totalorder %s24, 0
    %p240 = por %p238, %p239
    %s242 = sadd.s32 %s241, 1
    %p245 = scmp.eq.s32.totalorder %s18, 1
    %p246 = scmp.ne.s32.totalorder %s241, %s243
    %p247 = scmp.eq.s32.totalorder %s18, 0
    %p248 = por %p246, %p247
    %p249 = scmp.ne.s32.totalorder %s241, %s243
    %p250 = scmp.eq.s32.totalorder %s23, 1
    %p251 = por %p249, %p250
    %p252 = scmp.ne.s32.totalorder %s243, %s244
    %p253 = scmp.eq.s32.totalorder %s23, 0
    %p254 = por %p252, %p253
    %p255 = scmp.ne.s32.totalorder %s243, %s244
    %p256 = scmp.eq.s32.totalorder %s24, 1
    %p257 = por %p255, %p256
    %p259 = scmp.ne.s32.totalorder %s244, %s258
    %p260 = scmp.eq.s32.totalorder %s24, 0
    %p261 = por %p259, %p260
    %s263 = sadd.s32 %s262, 1
    %p266 = scmp.eq.s32.totalorder %s18, 1
    %p267 = scmp.ne.s32.totalorder %s262, %s264
    %p268 = scmp.eq.s32.totalorder %s18, 0
    %p269 = por %p267, %p268
    %p270 = scmp.ne.s32.totalorder %s262, %s264
    %p271 = scmp.eq.s32.totalorder %s23, 1
    %p272 = por %p270, %p271
    %p273 = scmp.ne.s32.totalorder %s264, %s265
    %p274 = scmp.eq.s32.totalorder %s23, 0
    %p275 = por %p273, %p274
    %p276 = scmp.ne.s32.totalorder %s264, %s265
    %p277 = scmp.eq.s32.totalorder %s24, 1
    %p278 = por %p276, %p277
    %p280 = scmp.ne.s32.totalorder %s265, %s279
    %p281 = scmp.eq.s32.totalorder %s24, 0
    %p282 = por %p280, %p281
    %s283 = ssub.s32 %s18, %s25
    %p284 = scmp.eq.s32.totalorder %s283, 0
    %s286 = sadd.s32 %s285, 1
    %s287 = scalar_select %p284, %s285, %s286
    %p290 = pneg %p284
    %p291 = scmp.eq.s32.totalorder %s18, 1
    %p292 = por %p290, %p291
    %p293 = scmp.ne.s32.totalorder %s285, %s288
    %p294 = scmp.eq.s32.totalorder %s18, 0
    %p295 = por %p293, %p294
    %p296 = scmp.ne.s32.totalorder %s285, %s288
    %p297 = scmp.eq.s32.totalorder %s23, 1
    %p298 = por %p296, %p297
    %p299 = scmp.ne.s32.totalorder %s288, %s289
    %p300 = scmp.eq.s32.totalorder %s23, 0
    %p301 = por %p299, %p300
    %p302 = scmp.ne.s32.totalorder %s288, %s289
    %p303 = scmp.eq.s32.totalorder %s24, 1
    %p304 = por %p302, %p303
    %p306 = scmp.ne.s32.totalorder %s289, %s305
    %p307 = scmp.eq.s32.totalorder %s24, 0
    %p308 = por %p306, %p307
    %p309 = scmp.le.s32.totalorder 1, %s18
    %p310 = scmp.lt.s32.totalorder %s18, 3
    %p311 = pnand %p309, %p310
    %p312 = pneg %p311
    // Predicated region
    $region9: #{video_vit_forward.8} parent=5 // pred_check
      _
    $region10: #{video_vit_forward.8} parent=5 // pred_check_branch
      %314 = sbr.rel (%p311) target = $region12
    $region11: #{video_vit_forward.8} parent=5 // pred_region
      %s315 = ssub.s32 %s18, 1
      // Predicated region
      $region13: #{video_vit_forward.8} parent=11 // pred_check
        %p316 = pneg %p65
      $region14: #{video_vit_forward.8} parent=11 // pred_check_branch
        %318 = sbr.rel (%p316) target = $region16
      $region15: #{video_vit_forward.8} parent=11 // pred_region
        _
      $region16: #{video_vit_forward.8} parent=11 // pred_fallthru
        _
      // Predicated region
      $region17: #{video_vit_forward.8} parent=11 // pred_check
        %p319 = pneg %p86
      $region18: #{video_vit_forward.8} parent=11 // pred_check_branch
        %321 = sbr.rel (%p319) target = $region20
      $region19: #{video_vit_forward.8} parent=11 // pred_region
        _
      $region20: #{video_vit_forward.8} parent=11 // pred_fallthru
        _
      // Predicated region
      $region21: #{video_vit_forward.8} parent=11 // pred_check
        %p322 = pneg %p107
      $region22: #{video_vit_forward.8} parent=11 // pred_check_branch
        %324 = sbr.rel (%p322) target = $region24
      $region23: #{video_vit_forward.8} parent=11 // pred_region
        _
      $region24: #{video_vit_forward.8} parent=11 // pred_fallthru
        _
      // Predicated region
      $region25: #{video_vit_forward.8} parent=11 // pred_check
        %p325 = pneg %p128
      $region26: #{video_vit_forward.8} parent=11 // pred_check_branch
        %327 = sbr.rel (%p325) target = $region28
      $region27: #{video_vit_forward.8} parent=11 // pred_region
        _
      $region28: #{video_vit_forward.8} parent=11 // pred_fallthru
        _
      // Predicated region
      $region29: #{video_vit_forward.8} parent=11 // pred_check
        %p328 = pneg %p149
      $region30: #{video_vit_forward.8} parent=11 // pred_check_branch
        %330 = sbr.rel (%p328) target = $region32
      $region31: #{video_vit_forward.8} parent=11 // pred_region
        _
      $region32: #{video_vit_forward.8} parent=11 // pred_fallthru
        _
      // Predicated region
      $region33: #{video_vit_forward.8} parent=11 // pred_check
        %p331 = pneg %p170
      $region34: #{video_vit_forward.8} parent=11 // pred_check_branch
        %333 = sbr.rel (%p331) target = $region36
      $region35: #{video_vit_forward.8} parent=11 // pred_region
        _
      $region36: #{video_vit_forward.8} parent=11 // pred_fallthru
        _
      // Predicated region
      $region37: #{video_vit_forward.8} parent=11 // pred_check
        %p334 = pneg %p191
      $region38: #{video_vit_forward.8} parent=11 // pred_check_branch
        %336 = sbr.rel (%p334) target = $region40
      $region39: #{video_vit_forward.8} parent=11 // pred_region
        _
      $region40: #{video_vit_forward.8} parent=11 // pred_fallthru
        _
      // Predicated region
      $region41: #{video_vit_forward.8} parent=11 // pred_check
        %p337 = pneg %p212
      $region42: #{video_vit_forward.8} parent=11 // pred_check_branch
        %339 = sbr.rel (%p337) target = $region44
      $region43: #{video_vit_forward.8} parent=11 // pred_region
        _
      $region44: #{video_vit_forward.8} parent=11 // pred_fallthru
        _
      // Predicated region
      $region45: #{video_vit_forward.8} parent=11 // pred_check
        %p340 = pneg %p233
      $region46: #{video_vit_forward.8} parent=11 // pred_check_branch
        %342 = sbr.rel (%p340) target = $region48
      $region47: #{video_vit_forward.8} parent=11 // pred_region
        _
      $region48: #{video_vit_forward.8} parent=11 // pred_fallthru
        _
      // Predicated region
      $region49: #{video_vit_forward.8} parent=11 // pred_check
        %p343 = pneg %p254
      $region50: #{video_vit_forward.8} parent=11 // pred_check_branch
        %345 = sbr.rel (%p343) target = $region52
      $region51: #{video_vit_forward.8} parent=11 // pred_region
        _
      $region52: #{video_vit_forward.8} parent=11 // pred_fallthru
        _
      // Predicated region
      $region53: #{video_vit_forward.8} parent=11 // pred_check
        %p346 = pneg %p275
      $region54: #{video_vit_forward.8} parent=11 // pred_check_branch
        %348 = sbr.rel (%p346) target = $region56
      $region55: #{video_vit_forward.8} parent=11 // pred_region
        _
      $region56: #{video_vit_forward.8} parent=11 // pred_fallthru
        _
    $region12: #{video_vit_forward.8} parent=5 // pred_fallthru
      _
    %p349 = scmp.lt.s32.totalorder %s18, 2
    // Predicated region
    $region57: #{video_vit_forward.8} parent=5 // pred_check
      %p350 = pneg %p349
    $region58: #{video_vit_forward.8} parent=5 // pred_check_branch
      %352 = sbr.rel (%p350) target = $region60
    $region59: #{video_vit_forward.8} parent=5 // pred_region
      // Predicated region
      $region61: #{video_vit_forward.8} parent=59 // pred_check
        %p353 = pneg %p38
      $region62: #{video_vit_forward.8} parent=59 // pred_check_branch
        %355 = sbr.rel (%p353) target = $region64
      $region63: #{video_vit_forward.8} parent=59 // pred_region
        %s356 = smul.u32 4, %s18
        %p357 = scmp.lt.s32.totalorder %s356, 7
        %s358 = scalar_select %p357, %s356, 7
        %s359 = smul.addr %s358, 8
        %s360 = scalar_lea.vmem %s0, %s359
        %s361 = smul.u32 4, %s18
      $region64: #{video_vit_forward.8} parent=59 // pred_fallthru
        _
    $region60: #{video_vit_forward.8} parent=5 // pred_fallthru
      _
    %p362 = scmp.le.s32.totalorder 1, %s18
    %p363 = scmp.lt.s32.totalorder %s18, 3
    %p364 = pnand %p362, %p363
    %p365 = pneg %p364
    // Predicated region
    $region65: #{video_vit_forward.8} parent=5 // pred_check
      _
    $region66: #{video_vit_forward.8} parent=5 // pred_check_branch
      %367 = sbr.rel (%p364) target = $region68
    $region67: #{video_vit_forward.8} parent=5 // pred_region
      %s368 = ssub.s32 %s18, 1
      %s369 = smul.u32 4, %s23
      %p370 = scmp.lt.s32.totalorder %s369, 7
      %s371 = scalar_select %p370, %s369, 7
      %s372 = smul.addr %s371, 8
      %s373 = scalar_lea.vmem %s0, %s372
      %p374 = pneg %p44
      %p375 = pneg %p41
      %p376 = pneg %p65
      %p377 = pneg %p62
      %p378 = pneg %p86
      %p379 = pneg %p83
      %p380 = pneg %p107
      %p381 = pneg %p104
      %p382 = pneg %p128
      %p383 = pneg %p125
      %p384 = pneg %p149
      %p385 = pneg %p146
      %p386 = pneg %p170
      %p387 = pneg %p167
      %p388 = pneg %p191
      %p389 = pneg %p188
      %p390 = pneg %p212
      %p391 = pneg %p209
      %p392 = pneg %p233
      %p393 = pneg %p230
      %p394 = pneg %p254
      %p395 = pneg %p251
      %p396 = pneg %p275
      %p397 = pneg %p272
      %p398 = pneg %p301
      %p399 = pneg %p298
      %s400 = smul.u32 4, %s23
      %p401 = scmp.lt.s32.totalorder %s400, 7
      %s402 = scalar_select %p401, %s400, 7
      %s403 = smul.addr %s402, 8
      %s404 = scalar_lea.vmem %s12, %s403
      %s405 = smul.u32 4, %s23
      %p406 = scmp.lt.s32.totalorder %s405, 7
      %s407 = scalar_select %p406, %s405, 7
      %s408 = smul.addr %s407, 8
      %s409 = scalar_lea.vmem %s0, %s408
      %s410 = smul.u32 4, %s23
      %s411 = smul.u32 4, %s23
      %p412 = scmp.lt.s32.totalorder %s411, 7
      %s413 = scalar_select %p412, %s411, 7
      %s414 = smul.addr %s413, 8
      %s415 = scalar_lea.vmem %s12, %s414
      %s416 = smul.u32 4, %s23
      %v418 = vld [vmem:[%s409] sm:$0x1f]
      %v419 = vld [vmem:[%s409 + $0x8] sm:$0x1f]
      %v420 = vld [vmem:[%s409 + $0x10] sm:$0x1f]
      %v421 = vld [vmem:[%s409 + $0x18] sm:$0x1f]
      %v422 = vld [vmem:[%s1] sm:$0x1]
      %v423 = vld [vmem:[%s2] sm:$0x1]
      %vm424 = vcmask 258048
      %v425 = vsel %vm424, %v418, 0.0
      %426 = vadd.xlane.f32.xlu0 %v425
      %v427 = vpop.xlane.xlu0 %426
      %v428 = vsel %vm424, %v419, 0.0
      %429 = vadd.xlane.f32.xlu0 %v428
      %v430 = vpop.xlane.xlu0 %429
      %v431 = vsel %vm424, %v420, 0.0
      %432 = vadd.xlane.f32.xlu0 %v431
      %v433 = vpop.xlane.xlu0 %432
      %v434 = vsel %vm424, %v421, 0.0
      %435 = vadd.xlane.f32.xlu0 %v434
      %v436 = vpop.xlane.xlu0 %435
      %v437 = vrcp.pop 32.0
      %v438 = vmul.f32 32.0, %v437
      %v439 = vsub.f32 1.0, %v438
      %v440 = vmul.f32 %v437, %v439
      %v441 = vadd.f32 %v437, %v440
      %vm442 = vweird.f32 %v437
      %v443 = vsel %vm442, %v437, %v441
      %v444 = vmul.f32 %v427, %v443
      %v445 = vmul.f32 %v430, %v443
      %v446 = vmul.f32 %v433, %v443
      %v447 = vmul.f32 %v436, %v443
      %v448 = vsub.f32 %v418, %v444
      %v449 = vsub.f32 %v419, %v445
      %v450 = vsub.f32 %v420, %v446
      %v451 = vsub.f32 %v421, %v447
      %v452 = vmul.f32 %v448, %v448
      %v453 = vmul.f32 %v449, %v449
      %v454 = vmul.f32 %v450, %v450
      %v455 = vmul.f32 %v451, %v451
      %v456 = vsel %vm424, %v452, 0.0
      %457 = vadd.xlane.f32.xlu0 %v456
      %v458 = vpop.xlane.xlu0 %457
      %v459 = vsel %vm424, %v453, 0.0
      %460 = vadd.xlane.f32.xlu0 %v459
      %v461 = vpop.xlane.xlu0 %460
      %v462 = vsel %vm424, %v454, 0.0
      %463 = vadd.xlane.f32.xlu0 %v462
      %v464 = vpop.xlane.xlu0 %463
      %v465 = vsel %vm424, %v455, 0.0
      %466 = vadd.xlane.f32.xlu0 %v465
      %v467 = vpop.xlane.xlu0 %466
      %v468 = vmul.f32 %v458, %v443
      %v469 = vmul.f32 %v461, %v443
      %v470 = vmul.f32 %v464, %v443
      %v471 = vmul.f32 %v467, %v443
      %v472 = vadd.f32 %v468, 1e-05
      %v473 = vadd.f32 %v469, 1e-05
      %v474 = vadd.f32 %v470, 1e-05
      %v475 = vadd.f32 %v471, 1e-05
      %v476 = vrsqrt.pop %v472
      %v477 = vmul.f32 %v476, %v472
      %v478 = vmul.f32 %v477, %v476
      %v479 = vmul.f32 0.5, %v478
      %v480 = vsub.f32 1.5, %v479
      %v481 = vmul.f32 %v476, %v480
      %vm482 = vweird.f32 %v472
      %vm483 = vweird.f32 %v476
      %vm484 = vmor %vm482, %vm483
      %v485 = vsel %vm484, %v476, %v481
      %v486 = vrsqrt.pop %v473
      %v487 = vmul.f32 %v486, %v473
      %v488 = vmul.f32 %v487, %v486
      %v489 = vmul.f32 0.5, %v488
      %v490 = vsub.f32 1.5, %v489
      %v491 = vmul.f32 %v486, %v490
      %vm492 = vweird.f32 %v473
      %vm493 = vweird.f32 %v486
      %vm494 = vmor %vm492, %vm493
      %v495 = vsel %vm494, %v486, %v491
      %v496 = vrsqrt.pop %v474
      %v497 = vmul.f32 %v496, %v474
      %v498 = vmul.f32 %v497, %v496
      %v499 = vmul.f32 0.5, %v498
      %v500 = vsub.f32 1.5, %v499
      %v501 = vmul.f32 %v496, %v500
      %vm502 = vweird.f32 %v474
      %vm503 = vweird.f32 %v496
      %vm504 = vmor %vm502, %vm503
      %v505 = vsel %vm504, %v496, %v501
      %v506 = vrsqrt.pop %v475
      %v507 = vmul.f32 %v506, %v475
      %v508 = vmul.f32 %v507, %v506
      %v509 = vmul.f32 0.5, %v508
      %v510 = vsub.f32 1.5, %v509
      %v511 = vmul.f32 %v506, %v510
      %vm512 = vweird.f32 %v475
      %vm513 = vweird.f32 %v506
      %vm514 = vmor %vm512, %vm513
      %v515 = vsel %vm514, %v506, %v511
      %v516 = vmul.f32 %v448, %v485
      %v517 = vmul.f32 %v449, %v495
      %v518 = vmul.f32 %v450, %v505
      %v519 = vmul.f32 %v451, %v515
      %v521 = vperm.slane %v422, 0
      %v523 = vmul.f32 %v516, %v521
      %v524 = vmul.f32 %v517, %v521
      %v525 = vmul.f32 %v518, %v521
      %v526 = vmul.f32 %v519, %v521
      %v528 = vperm.slane %v423, 0
      %v530 = vadd.f32 %v523, %v528
      %v531 = vadd.f32 %v524, %v528
      %v532 = vadd.f32 %v525, %v528
      %v533 = vadd.f32 %v526, %v528
      %v534 = vld [vmem:[%s3] sm:$0xf]
      %v535 = vld [vmem:[%s3 + $0x4] sm:$0xf]
      %v536 = vld [vmem:[%s3 + $0x8] sm:$0xf]
      %v537 = vld [vmem:[%s3 + $0xc] sm:$0xf]
      %v538 = vld [vmem:[%s4] sm:$0xf]
      %v539 = vld [vmem:[%s4 + $0x4] sm:$0xf]
      %v540 = vld [vmem:[%s4 + $0x8] sm:$0xf]
      %v541 = vld [vmem:[%s4 + $0xc] sm:$0xf]
      %v542 = vld [vmem:[%s5] sm:$0x1]
      %v543 = vpack.c.bf16 %v530, %v530
      %v544 = vpack.c.bf16 %v531, %v531
      %v545 = vpack.c.bf16 %v532, %v532
      %v546 = vpack.c.bf16 %v533, %v533
      %v551 = vrot.slane %v543, 3
      %v552 = vrot.slane %v544, 3
      %v553 = vrot.slane %v545, 3
      %v554 = vrot.slane %v546, 3
      %vm555 = vcmask 1040384
      %v558 = vsel %vm555, %v543, %v551
      %vm560 = vcmask 1041409
      %v561 = vsel %vm560, %v543, %v551
      %v563 = vrot.slane %v561, 1
      %vm564 = vcmask 1042434
      %v565 = vsel %vm564, %v543, %v551
      %v567 = vrot.slane %v565, 2
      %v570 = vsel %vm555, %v544, %v552
      %v572 = vsel %vm560, %v544, %v552
      %v574 = vrot.slane %v572, 1
      %v575 = vsel %vm564, %v544, %v552
      %v577 = vrot.slane %v575, 2
      %v580 = vsel %vm555, %v545, %v553
      %v582 = vsel %vm560, %v545, %v553
      %v584 = vrot.slane %v582, 1
      %v585 = vsel %vm564, %v545, %v553
      %v587 = vrot.slane %v585, 2
      %v590 = vsel %vm555, %v546, %v554
      %v592 = vsel %vm560, %v546, %v554
      %v594 = vrot.slane %v592, 1
      %v595 = vsel %vm564, %v546, %v554
      %v597 = vrot.slane %v595, 2
      %v598 = vunpack.i.l.s16 %v558
      %v599 = vunpack.i.h.s16 %v558
      %v600 = vunpack.i.l.s16 %v563
      %v601 = vunpack.i.h.s16 %v563
      %v602 = vunpack.i.l.s16 %v567
      %v603 = vunpack.i.l.s16 %v570
      %v604 = vunpack.i.h.s16 %v570
      %v605 = vunpack.i.l.s16 %v574
      %v606 = vunpack.i.h.s16 %v574
      %v607 = vunpack.i.l.s16 %v577
      %v608 = vunpack.i.l.s16 %v580
      %v609 = vunpack.i.h.s16 %v580
      %v610 = vunpack.i.l.s16 %v584
      %v611 = vunpack.i.h.s16 %v584
      %v612 = vunpack.i.l.s16 %v587
      %v613 = vunpack.i.l.s16 %v590
      %v614 = vunpack.i.h.s16 %v590
      %v615 = vunpack.i.l.s16 %v594
      %v616 = vunpack.i.h.s16 %v594
      %v617 = vunpack.i.l.s16 %v597
      %v618 = vpack.i.b16 %v599, %v598
      %v619 = vpack.i.b16 %v601, %v600
      %v620 = vpack.i.b16 %v603, %v602
      %v621 = vpack.i.b16 %v605, %v604
      %v622 = vpack.i.b16 %v607, %v606
      %v623 = vpack.i.b16 %v609, %v608
      %v624 = vpack.i.b16 %v611, %v610
      %v625 = vpack.i.b16 %v613, %v612
      %v626 = vpack.i.b16 %v615, %v614
      %v627 = vpack.i.b16 %v617, %v616
      %629 = vst [vmem:[#allocation1] ss:$9 sm:$0xff] %v618
      %s631 = scalar_lea.vmem [#allocation1], 1
      %632 = vst [vmem:[%s631] ss:$9 sm:$0xff] %v619
      %s634 = scalar_lea.vmem [#allocation1], 2
      %635 = vst [vmem:[%s634] ss:$9 sm:$0xff] %v620
      %s637 = scalar_lea.vmem [#allocation1], 3
      %638 = vst [vmem:[%s637] ss:$9 sm:$0xff] %v621
      %s640 = scalar_lea.vmem [#allocation1], 4
      %641 = vst [vmem:[%s640] ss:$9 sm:$0xff] %v622
      %s643 = scalar_lea.vmem [#allocation1], 5
      %644 = vst [vmem:[%s643] ss:$9 sm:$0xff] %v623
      %s646 = scalar_lea.vmem [#allocation1], 6
      %647 = vst [vmem:[%s646] ss:$9 sm:$0xff] %v624
      %s649 = scalar_lea.vmem [#allocation1], 7
      %650 = vst [vmem:[%s649] ss:$9 sm:$0xff] %v625
      %v651 = vld [vmem:[#allocation1] sm:$0xff]
      %653 = vst [vmem:[#allocation1] ss:$9 sm:$0xff] %v626
      %655 = vst [vmem:[%s631] ss:$9 sm:$0xff] %v627
      %v656 = vld [vmem:[#allocation1] sm:$0xff]
      %v661 = vunpack.c.l.b16 %v534
      %v662 = vunpack.c.l.b16 %v535
      %v663 = vunpack.c.l.b16 %v536
      %v664 = vunpack.c.l.b16 %v537
      %v665 = vpack.c.b16 %v662, %v661
      %v666 = vpack.c.b16 %v664, %v663
      %vm669 = vcmask 261120
      %v670 = vsel %vm669, %v651, 0
      %v672 = vsel %vm669, %v656, 0
      %674 = vmatpush.bf16.msra.mxu0 0
      %675 = vmatpush.bf16.msra.mxu0 0
      %676 = vmatpush.bf16.msra.mxu0 0
      %677 = vmatpush.bf16.msra.mxu0 0
      %678 = vmatpush.bf16.msra.mxu0 0
      %679 = vmatpush.bf16.msra.mxu0 0
      %680 = vmatpush.bf16.msra.mxu0 %v666
      %681 = vmatpush.bf16.msra.mxu0 %v665
      %682 = vmatmul.bf16.gmra.mxu0 %v670
      %v683 = vpop.f32.mrf.mxu0
      %v684 = vadd.f32 0.0, %v683
      %v685 = vpop.f32.mrf.mxu0
      %v686 = vadd.f32 0.0, %v685
      %687 = vmatmul.bf16.gmra.mxu0 %v672
      %v688 = vpop.f32.mrf.mxu0
      %v689 = vadd.f32 0.0, %v688
      %v690 = vpop.f32.mrf.mxu0
      %691 = vdwg.mxu0
      %v695 = vrot.slane %v684, 1
      %v696 = vrot.slane %v684, 2
      %v697 = vrot.slane %v684, 3
      %v698 = vrot.slane %v684, 4
      %v699 = vrot.slane %v684, 5
      %v700 = vrot.slane %v684, 6
      %v701 = vrot.slane %v684, 7
      %v702 = vrot.slane %v686, 1
      %v703 = vrot.slane %v686, 2
      %v704 = vrot.slane %v686, 3
      %v705 = vrot.slane %v686, 4
      %v706 = vrot.slane %v686, 5
      %v707 = vrot.slane %v686, 6
      %v708 = vrot.slane %v686, 7
      %v709 = vrot.slane %v689, 1
      %v710 = vrot.slane %v689, 2
      %v711 = vrot.slane %v689, 3
      %712 = vst [vmem:[#allocation1] ss:$9 sm:$0xff] %v684
      %s713 = scalar_lea.vmem [#allocation1], 1
      %714 = vst [vmem:[%s713] ss:$9 sm:$0xff] %v695
      %s715 = scalar_lea.vmem [#allocation1], 2
      %716 = vst [vmem:[%s715] ss:$9 sm:$0xff] %v696
      %s717 = scalar_lea.vmem [#allocation1], 3
      %718 = vst [vmem:[%s717] ss:$9 sm:$0xff] %v697
      %s719 = scalar_lea.vmem [#allocation1], 4
      %720 = vst [vmem:[%s719] ss:$9 sm:$0xff] %v698
      %v721 = vld [vmem:[#allocation1] sm:$0xff]
      %722 = vst [vmem:[#allocation1] ss:$9 sm:$0xff] %v699
      %723 = vst [vmem:[%s713] ss:$9 sm:$0xff] %v700
      %724 = vst [vmem:[%s715] ss:$9 sm:$0xff] %v701
      %725 = vst [vmem:[%s717] ss:$9 sm:$0xff] %v686
      %726 = vst [vmem:[%s719] ss:$9 sm:$0xff] %v702
      %v727 = vld [vmem:[#allocation1] sm:$0xff]
      %728 = vst [vmem:[#allocation1] ss:$9 sm:$0xff] %v703
      %729 = vst [vmem:[%s713] ss:$9 sm:$0xff] %v704
      %730 = vst [vmem:[%s715] ss:$9 sm:$0xff] %v705
      %731 = vst [vmem:[%s717] ss:$9 sm:$0xff] %v706
      %732 = vst [vmem:[%s719] ss:$9 sm:$0xff] %v707
      %v733 = vld [vmem:[#allocation1] sm:$0xff]
      %734 = vst [vmem:[#allocation1] ss:$9 sm:$0xff] %v708
      %735 = vst [vmem:[%s713] ss:$9 sm:$0xff] %v689
      %736 = vst [vmem:[%s715] ss:$9 sm:$0xff] %v709
      %737 = vst [vmem:[%s717] ss:$9 sm:$0xff] %v710
      %738 = vst [vmem:[%s719] ss:$9 sm:$0xff] %v711
      %v739 = vld [vmem:[#allocation1] sm:$0xff]
      %v744 = vpack.c.bf16 %v721, %v721
      %v745 = vpack.c.bf16 %v727, %v727
      %v746 = vpack.c.bf16 %v733, %v733
      %v747 = vpack.c.bf16 %v739, %v739
      %748 = vst [vmem:[#allocation1] ss:$9 sm:$0xff] %v684
      %s749 = scalar_lea.vmem [#allocation1], 1
      %750 = vst [vmem:[%s749] ss:$9 sm:$0xff] %v695
      %s751 = scalar_lea.vmem [#allocation1], 2
      %752 = vst [vmem:[%s751] ss:$9 sm:$0xff] %v696
      %s753 = scalar_lea.vmem [#allocation1], 3
      %754 = vst [vmem:[%s753] ss:$9 sm:$0xff] %v697
      %s755 = scalar_lea.vmem [#allocation1], 4
      %756 = vst [vmem:[%s755] ss:$9 sm:$0xff] %v698
      %v757 = vld [vmem:[#allocation1] sm:$0xff]
      %758 = vst [vmem:[#allocation1] ss:$9 sm:$0xff] %v699
      %759 = vst [vmem:[%s749] ss:$9 sm:$0xff] %v700
      %760 = vst [vmem:[%s751] ss:$9 sm:$0xff] %v701
      %761 = vst [vmem:[%s753] ss:$9 sm:$0xff] %v686
      %762 = vst [vmem:[%s755] ss:$9 sm:$0xff] %v702
      %v763 = vld [vmem:[#allocation1] sm:$0xff]
      %764 = vst [vmem:[#allocation1] ss:$9 sm:$0xff] %v703
      %765 = vst [vmem:[%s749] ss:$9 sm:$0xff] %v704
      %766 = vst [vmem:[%s751] ss:$9 sm:$0xff] %v705
      %767 = vst [vmem:[%s753] ss:$9 sm:$0xff] %v706
      %768 = vst [vmem:[%s755] ss:$9 sm:$0xff] %v707
      %v769 = vld [vmem:[#allocation1] sm:$0xff]
      %770 = vst [vmem:[#allocation1] ss:$9 sm:$0xff] %v708
      %771 = vst [vmem:[%s749] ss:$9 sm:$0xff] %v689
      %772 = vst [vmem:[%s751] ss:$9 sm:$0xff] %v709
      %773 = vst [vmem:[%s753] ss:$9 sm:$0xff] %v710
      %774 = vst [vmem:[%s755] ss:$9 sm:$0xff] %v711
      %v775 = vld [vmem:[#allocation1] sm:$0xff]
      %v780 = vpack.c.bf16 %v757, %v757
      %v781 = vpack.c.bf16 %v763, %v763
      %v782 = vpack.c.bf16 %v769, %v769
      %v783 = vpack.c.bf16 %v775, %v775
      %784 = vst [vmem:[#allocation1] ss:$9 sm:$0xff] %v684
      %s785 = scalar_lea.vmem [#allocation1], 1
      %786 = vst [vmem:[%s785] ss:$9 sm:$0xff] %v695
      %s787 = scalar_lea.vmem [#allocation1], 2
      %788 = vst [vmem:[%s787] ss:$9 sm:$0xff] %v696
      %s789 = scalar_lea.vmem [#allocation1], 3
      %790 = vst [vmem:[%s789] ss:$9 sm:$0xff] %v697
      %s791 = scalar_lea.vmem [#allocation1], 4
      %792 = vst [vmem:[%s791] ss:$9 sm:$0xff] %v698
      %v793 = vld [vmem:[#allocation1] sm:$0xff]
      %794 = vst [vmem:[#allocation1] ss:$9 sm:$0xff] %v699
      %795 = vst [vmem:[%s785] ss:$9 sm:$0xff] %v700
      %796 = vst [vmem:[%s787] ss:$9 sm:$0xff] %v701
      %797 = vst [vmem:[%s789] ss:$9 sm:$0xff] %v686
      %798 = vst [vmem:[%s791] ss:$9 sm:$0xff] %v702
      %v799 = vld [vmem:[#allocation1] sm:$0xff]
      %800 = vst [vmem:[#allocation1] ss:$9 sm:$0xff] %v703
      %801 = vst [vmem:[%s785] ss:$9 sm:$0xff] %v704
      %802 = vst [vmem:[%s787] ss:$9 sm:$0xff] %v705
      %803 = vst [vmem:[%s789] ss:$9 sm:$0xff] %v706
      %804 = vst [vmem:[%s791] ss:$9 sm:$0xff] %v707
      %v805 = vld [vmem:[#allocation1] sm:$0xff]
      %806 = vst [vmem:[#allocation1] ss:$9 sm:$0xff] %v708
      %807 = vst [vmem:[%s785] ss:$9 sm:$0xff] %v689
      %808 = vst [vmem:[%s787] ss:$9 sm:$0xff] %v709
      %809 = vst [vmem:[%s789] ss:$9 sm:$0xff] %v710
      %810 = vst [vmem:[%s791] ss:$9 sm:$0xff] %v711
      %v811 = vld [vmem:[#allocation1] sm:$0xff]
      %v816 = vpack.c.bf16 %v793, %v793
      %v817 = vpack.c.bf16 %v799, %v799
      %v818 = vpack.c.bf16 %v805, %v805
      %v819 = vpack.c.bf16 %v811, %v811
      %v821 = vunpack.c.l.b16 %v780
      %v822 = vpack.c.b16 %v821, %v821
      %823 = vrot.lane.b32.xlu0 %v822, 96
      %v824 = vpop.permute.xlu0 %823
      %vm825 = vcmask 64512
      %v827 = vsel %vm825, %v744, 0
      %v830 = vsel %vm825, %v824, 0
      %832 = vmatpush.bf16.xpose.msra.mxu0 0
      %833 = vmatpush.bf16.xpose.msra.mxu0 0
      %834 = vmatpush.bf16.xpose.msra.mxu0 0
      %835 = vmatpush.bf16.xpose.msra.mxu0 0
      %836 = vmatpush.bf16.xpose.msra.mxu0 0
      %837 = vmatpush.bf16.xpose.msra.mxu0 0
      %838 = vmatpush.bf16.xpose.msra.mxu0 0
      %839 = vmatpush.bf16.xpose.msra.mxu0 %v830
      %840 = vmatmul.bf16.gmra.mxu0 %v827
      %v841 = vpop.f32.mrf.mxu0
      %v842 = vadd.f32 0.0, %v841
      %v843 = vpop.f32.mrf.mxu0
      %844 = vdwg.mxu0
      %v846 = vunpack.c.l.b16 %v781
      %v847 = vpack.c.b16 %v846, %v846
      %848 = vrot.lane.b32.xlu0 %v847, 96
      %v849 = vpop.permute.xlu0 %848
      %v851 = vsel %vm825, %v745, 0
      %v854 = vsel %vm825, %v849, 0
      %856 = vmatpush.bf16.xpose.msra.mxu0 0
      %857 = vmatpush.bf16.xpose.msra.mxu0 0
      %858 = vmatpush.bf16.xpose.msra.mxu0 0
      %859 = vmatpush.bf16.xpose.msra.mxu0 0
      %860 = vmatpush.bf16.xpose.msra.mxu0 0
      %861 = vmatpush.bf16.xpose.msra.mxu0 0
      %862 = vmatpush.bf16.xpose.msra.mxu0 0
      %863 = vmatpush.bf16.xpose.msra.mxu0 %v854
      %864 = vmatmul.bf16.gmra.mxu0 %v851
      %v865 = vpop.f32.mrf.mxu0
      %v866 = vadd.f32 0.0, %v865
      %v867 = vpop.f32.mrf.mxu0
      %868 = vdwg.mxu0
      %v870 = vunpack.c.l.b16 %v782
      %v871 = vpack.c.b16 %v870, %v870
      %872 = vrot.lane.b32.xlu0 %v871, 96
      %v873 = vpop.permute.xlu0 %872
      %v875 = vsel %vm825, %v746, 0
      %v878 = vsel %vm825, %v873, 0
      %880 = vmatpush.bf16.xpose.msra.mxu0 0
      %881 = vmatpush.bf16.xpose.msra.mxu0 0
      %882 = vmatpush.bf16.xpose.msra.mxu0 0
      %883 = vmatpush.bf16.xpose.msra.mxu0 0
      %884 = vmatpush.bf16.xpose.msra.mxu0 0
      %885 = vmatpush.bf16.xpose.msra.mxu0 0
      %886 = vmatpush.bf16.xpose.msra.mxu0 0
      %887 = vmatpush.bf16.xpose.msra.mxu0 %v878
      %888 = vmatmul.bf16.gmra.mxu0 %v875
      %v889 = vpop.f32.mrf.mxu0
      %v890 = vadd.f32 0.0, %v889
      %v891 = vpop.f32.mrf.mxu0
      %892 = vdwg.mxu0
      %v894 = vunpack.c.l.b16 %v783
      %v895 = vpack.c.b16 %v894, %v894
      %896 = vrot.lane.b32.xlu0 %v895, 96
      %v897 = vpop.permute.xlu0 %896
      %v899 = vsel %vm825, %v747, 0
      %v902 = vsel %vm825, %v897, 0
      %904 = vmatpush.bf16.xpose.msra.mxu0 0
      %905 = vmatpush.bf16.xpose.msra.mxu0 0
      %906 = vmatpush.bf16.xpose.msra.mxu0 0
      %907 = vmatpush.bf16.xpose.msra.mxu0 0
      %908 = vmatpush.bf16.xpose.msra.mxu0 0
      %909 = vmatpush.bf16.xpose.msra.mxu0 0
      %910 = vmatpush.bf16.xpose.msra.mxu0 0
      %911 = vmatpush.bf16.xpose.msra.mxu0 %v902
      %912 = vmatmul.bf16.gmra.mxu0 %v899
      %v913 = vpop.f32.mrf.mxu0
      %v914 = vadd.f32 0.0, %v913
      %v915 = vpop.f32.mrf.mxu0
      %916 = vdwg.mxu0
      %vm917 = vcmask 36864
      %v918 = vsel %vm917, %v842, -inf
      %919 = vmax.xlane.f32.xlu0 %v918
      %v920 = vpop.xlane.xlu0 %919
      %v921 = vsel %vm917, %v866, -inf
      %922 = vmax.xlane.f32.xlu0 %v921
      %v923 = vpop.xlane.xlu0 %922
      %v924 = vsel %vm917, %v890, -inf
      %925 = vmax.xlane.f32.xlu0 %v924
      %v926 = vpop.xlane.xlu0 %925
      %v927 = vsel %vm917, %v914, -inf
      %928 = vmax.xlane.f32.xlu0 %v927
      %v929 = vpop.xlane.xlu0 %928
      %v930 = vsub.f32 %v842, %v920
      %v931 = vsub.f32 %v866, %v923
      %v932 = vsub.f32 %v890, %v926
      %v933 = vsub.f32 %v914, %v929
      %v934 = vmul.f32 %v930, 1.442695
      %v935 = vpow.pop %v934
      %v936 = vmul.f32 %v931, 1.442695
      %v937 = vpow.pop %v936
      %v938 = vmul.f32 %v932, 1.442695
      %v939 = vpow.pop %v938
      %v940 = vmul.f32 %v933, 1.442695
      %v941 = vpow.pop %v940
      %v942 = vsel %vm917, %v935, 0.0
      %943 = vadd.xlane.f32.xlu0 %v942
      %v944 = vpop.xlane.xlu0 %943
      %v945 = vsel %vm917, %v937, 0.0
      %946 = vadd.xlane.f32.xlu0 %v945
      %v947 = vpop.xlane.xlu0 %946
      %v948 = vsel %vm917, %v939, 0.0
      %949 = vadd.xlane.f32.xlu0 %v948
      %v950 = vpop.xlane.xlu0 %949
      %v951 = vsel %vm917, %v941, 0.0
      %952 = vadd.xlane.f32.xlu0 %v951
      %v953 = vpop.xlane.xlu0 %952
      %v954 = vrcp.pop %v944
      %v955 = vrcp.pop %v947
      %v956 = vrcp.pop %v950
      %v957 = vrcp.pop %v953
      %v958 = vmul.f32 %v935, %v954
      %v959 = vmul.f32 %v937, %v955
      %v960 = vmul.f32 %v939, %v956
      %v961 = vmul.f32 %v941, %v957
      %v962 = vpack.c.bf16 %v958, %v958
      %v963 = vpack.c.bf16 %v959, %v959
      %v964 = vpack.c.bf16 %v960, %v960
      %v965 = vpack.c.bf16 %v961, %v961
      %v967 = vunpack.c.l.b16 %v816
      %v968 = vpack.c.b16 %v967, %v967
      %969 = vrot.lane.b32.xlu0 %v968, 64
      %v970 = vpop.permute.xlu0 %969
      %vm971 = vcmask 39936
      %v973 = vsel %vm971, %v962, 0
      %vm975 = vcmask 1041408
      %vm976 = vcmask 1042432
      %v977 = vsel %vm975, 4294967295, 65535
      %v978 = vsel %vm976, %v977, 0
      %v980 = vand.u32 %v970, %v978
      %982 = vmatpush.bf16.msra.mxu0 0
      %983 = vmatpush.bf16.msra.mxu0 0
      %984 = vmatpush.bf16.msra.mxu0 0
      %985 = vmatpush.bf16.msra.mxu0 0
      %986 = vmatpush.bf16.msra.mxu0 0
      %987 = vmatpush.bf16.msra.mxu0 0
      %988 = vmatpush.bf16.msra.mxu0 0
      %989 = vmatpush.bf16.msra.mxu0 %v980
      %990 = vmatmul.bf16.gmra.mxu0 %v973
      %v991 = vpop.f32.mrf.mxu0
      %v992 = vadd.f32 0.0, %v991
      %v993 = vpop.f32.mrf.mxu0
      %994 = vdwg.mxu0
      %v996 = vunpack.c.l.b16 %v817
      %v997 = vpack.c.b16 %v996, %v996
      %998 = vrot.lane.b32.xlu0 %v997, 64
      %v999 = vpop.permute.xlu0 %998
      %v1001 = vsel %vm971, %v963, 0
      %v1004 = vand.u32 %v999, %v978
      %1006 = vmatpush.bf16.msra.mxu0 0
      %1007 = vmatpush.bf16.msra.mxu0 0
      %1008 = vmatpush.bf16.msra.mxu0 0
      %1009 = vmatpush.bf16.msra.mxu0 0
      %1010 = vmatpush.bf16.msra.mxu0 0
      %1011 = vmatpush.bf16.msra.mxu0 0
      %1012 = vmatpush.bf16.msra.mxu0 0
      %1013 = vmatpush.bf16.msra.mxu0 %v1004
      %1014 = vmatmul.bf16.gmra.mxu0 %v1001
      %v1015 = vpop.f32.mrf.mxu0
      %v1016 = vadd.f32 0.0, %v1015
      %v1017 = vpop.f32.mrf.mxu0
      %1018 = vdwg.mxu0
      %v1020 = vunpack.c.l.b16 %v818
      %v1021 = vpack.c.b16 %v1020, %v1020
      %1022 = vrot.lane.b32.xlu0 %v1021, 64
      %v1023 = vpop.permute.xlu0 %1022
      %v1025 = vsel %vm971, %v964, 0
      %v1028 = vand.u32 %v1023, %v978
      %1030 = vmatpush.bf16.msra.mxu0 0
      %1031 = vmatpush.bf16.msra.mxu0 0
      %1032 = vmatpush.bf16.msra.mxu0 0
      %1033 = vmatpush.bf16.msra.mxu0 0
      %1034 = vmatpush.bf16.msra.mxu0 0
      %1035 = vmatpush.bf16.msra.mxu0 0
      %1036 = vmatpush.bf16.msra.mxu0 0
      %1037 = vmatpush.bf16.msra.mxu0 %v1028
      %1038 = vmatmul.bf16.gmra.mxu0 %v1025
      %v1039 = vpop.f32.mrf.mxu0
      %v1040 = vadd.f32 0.0, %v1039
      %v1041 = vpop.f32.mrf.mxu0
      %1042 = vdwg.mxu0
      %v1044 = vunpack.c.l.b16 %v819
      %v1045 = vpack.c.b16 %v1044, %v1044
      %1046 = vrot.lane.b32.xlu0 %v1045, 64
      %v1047 = vpop.permute.xlu0 %1046
      %v1049 = vsel %vm971, %v965, 0
      %v1052 = vand.u32 %v1047, %v978
      %1054 = vmatpush.bf16.msra.mxu0 0
      %1055 = vmatpush.bf16.msra.mxu0 0
      %1056 = vmatpush.bf16.msra.mxu0 0
      %1057 = vmatpush.bf16.msra.mxu0 0
      %1058 = vmatpush.bf16.msra.mxu0 0
      %1059 = vmatpush.bf16.msra.mxu0 0
      %1060 = vmatpush.bf16.msra.mxu0 0
      %1061 = vmatpush.bf16.msra.mxu0 %v1052
      %1062 = vmatmul.bf16.gmra.mxu0 %v1049
      %v1063 = vpop.f32.mrf.mxu0
      %v1064 = vadd.f32 0.0, %v1063
      %v1065 = vpop.f32.mrf.mxu0
      %1066 = vdwg.mxu0
      %1067 = vst [vmem:[#allocation1] ss:$9 sm:$0xff] %v684
      %s1068 = scalar_lea.vmem [#allocation1], 1
      %1069 = vst [vmem:[%s1068] ss:$9 sm:$0xff] %v695
      %s1070 = scalar_lea.vmem [#allocation1], 2
      %1071 = vst [vmem:[%s1070] ss:$9 sm:$0xff] %v696
      %s1072 = scalar_lea.vmem [#allocation1], 3
      %1073 = vst [vmem:[%s1072] ss:$9 sm:$0xff] %v697
      %s1074 = scalar_lea.vmem [#allocation1], 4
      %1075 = vst [vmem:[%s1074] ss:$9 sm:$0xff] %v698
      %v1076 = vld [vmem:[#allocation1] sm:$0xff]
      %1077 = vst [vmem:[#allocation1] ss:$9 sm:$0xff] %v699
      %1078 = vst [vmem:[%s1068] ss:$9 sm:$0xff] %v700
      %1079 = vst [vmem:[%s1070] ss:$9 sm:$0xff] %v701
      %1080 = vst [vmem:[%s1072] ss:$9 sm:$0xff] %v686
      %1081 = vst [vmem:[%s1074] ss:$9 sm:$0xff] %v702
      %v1082 = vld [vmem:[#allocation1] sm:$0xff]
      %1083 = vst [vmem:[#allocation1] ss:$9 sm:$0xff] %v703
      %1084 = vst [vmem:[%s1068] ss:$9 sm:$0xff] %v704
      %1085 = vst [vmem:[%s1070] ss:$9 sm:$0xff] %v705
      %1086 = vst [vmem:[%s1072] ss:$9 sm:$0xff] %v706
      %1087 = vst [vmem:[%s1074] ss:$9 sm:$0xff] %v707
      %v1088 = vld [vmem:[#allocation1] sm:$0xff]
      %1089 = vst [vmem:[#allocation1] ss:$9 sm:$0xff] %v708
      %1090 = vst [vmem:[%s1068] ss:$9 sm:$0xff] %v689
      %1091 = vst [vmem:[%s1070] ss:$9 sm:$0xff] %v709
      %1092 = vst [vmem:[%s1072] ss:$9 sm:$0xff] %v710
      %1093 = vst [vmem:[%s1074] ss:$9 sm:$0xff] %v711
      %v1094 = vld [vmem:[#allocation1] sm:$0xff]
      %v1099 = vpack.c.bf16 %v1076, %v1076
      %v1100 = vpack.c.bf16 %v1082, %v1082
      %v1101 = vpack.c.bf16 %v1088, %v1088
      %v1102 = vpack.c.bf16 %v1094, %v1094
      %1103 = vst [vmem:[#allocation1] ss:$9 sm:$0xff] %v684
      %s1104 = scalar_lea.vmem [#allocation1], 1
      %1105 = vst [vmem:[%s1104] ss:$9 sm:$0xff] %v695
      %s1106 = scalar_lea.vmem [#allocation1], 2
      %1107 = vst [vmem:[%s1106] ss:$9 sm:$0xff] %v696
      %s1108 = scalar_lea.vmem [#allocation1], 3
      %1109 = vst [vmem:[%s1108] ss:$9 sm:$0xff] %v697
      %s1110 = scalar_lea.vmem [#allocation1], 4
      %1111 = vst [vmem:[%s1110] ss:$9 sm:$0xff] %v698
      %v1112 = vld [vmem:[#allocation1] sm:$0xff]
      %1113 = vst [vmem:[#allocation1] ss:$9 sm:$0xff] %v699
      %1114 = vst [vmem:[%s1104] ss:$9 sm:$0xff] %v700
      %1115 = vst [vmem:[%s1106] ss:$9 sm:$0xff] %v701
      %1116 = vst [vmem:[%s1108] ss:$9 sm:$0xff] %v686
      %1117 = vst [vmem:[%s1110] ss:$9 sm:$0xff] %v702
      %v1118 = vld [vmem:[#allocation1] sm:$0xff]
      %1119 = vst [vmem:[#allocation1] ss:$9 sm:$0xff] %v703
      %1120 = vst [vmem:[%s1104] ss:$9 sm:$0xff] %v704
      %1121 = vst [vmem:[%s1106] ss:$9 sm:$0xff] %v705
      %1122 = vst [vmem:[%s1108] ss:$9 sm:$0xff] %v706
      %1123 = vst [vmem:[%s1110] ss:$9 sm:$0xff] %v707
      %v1124 = vld [vmem:[#allocation1] sm:$0xff]
      %1125 = vst [vmem:[#allocation1] ss:$9 sm:$0xff] %v708
      %1126 = vst [vmem:[%s1104] ss:$9 sm:$0xff] %v689
      %1127 = vst [vmem:[%s1106] ss:$9 sm:$0xff] %v709
      %1128 = vst [vmem:[%s1108] ss:$9 sm:$0xff] %v710
      %1129 = vst [vmem:[%s1110] ss:$9 sm:$0xff] %v711
      %v1130 = vld [vmem:[#allocation1] sm:$0xff]
      %v1135 = vpack.c.bf16 %v1112, %v1112
      %v1136 = vpack.c.bf16 %v1118, %v1118
      %v1137 = vpack.c.bf16 %v1124, %v1124
      %v1138 = vpack.c.bf16 %v1130, %v1130
      %1139 = vst [vmem:[#allocation1] ss:$9 sm:$0xff] %v684
      %s1140 = scalar_lea.vmem [#allocation1], 1
      %1141 = vst [vmem:[%s1140] ss:$9 sm:$0xff] %v695
      %s1142 = scalar_lea.vmem [#allocation1], 2
      %1143 = vst [vmem:[%s1142] ss:$9 sm:$0xff] %v696
      %s1144 = scalar_lea.vmem [#allocation1], 3
      %1145 = vst [vmem:[%s1144] ss:$9 sm:$0xff] %v697
      %s1146 = scalar_lea.vmem [#allocation1], 4
      %1147 = vst [vmem:[%s1146] ss:$9 sm:$0xff] %v698
      %v1148 = vld [vmem:[#allocation1] sm:$0xff]
      %1149 = vst [vmem:[#allocation1] ss:$9 sm:$0xff] %v699
      %1150 = vst [vmem:[%s1140] ss:$9 sm:$0xff] %v700
      %1151 = vst [vmem:[%s1142] ss:$9 sm:$0xff] %v701
      %1152 = vst [vmem:[%s1144] ss:$9 sm:$0xff] %v686
      %1153 = vst [vmem:[%s1146] ss:$9 sm:$0xff] %v702
      %v1154 = vld [vmem:[#allocation1] sm:$0xff]
      %1155 = vst [vmem:[#allocation1] ss:$9 sm:$0xff] %v703
      %1156 = vst [vmem:[%s1140] ss:$9 sm:$0xff] %v704
      %1157 = vst [vmem:[%s1142] ss:$9 sm:$0xff] %v705
      %1158 = vst [vmem:[%s1144] ss:$9 sm:$0xff] %v706
      %1159 = vst [vmem:[%s1146] ss:$9 sm:$0xff] %v707
      %v1160 = vld [vmem:[#allocation1] sm:$0xff]
      %1161 = vst [vmem:[#allocation1] ss:$9 sm:$0xff] %v708
      %1162 = vst [vmem:[%s1140] ss:$9 sm:$0xff] %v689
      %1163 = vst [vmem:[%s1142] ss:$9 sm:$0xff] %v709
      %1164 = vst [vmem:[%s1144] ss:$9 sm:$0xff] %v710
      %1165 = vst [vmem:[%s1146] ss:$9 sm:$0xff] %v711
      %v1166 = vld [vmem:[#allocation1] sm:$0xff]
      %v1171 = vpack.c.bf16 %v1148, %v1148
      %v1172 = vpack.c.bf16 %v1154, %v1154
      %v1173 = vpack.c.bf16 %v1160, %v1160
      %v1174 = vpack.c.bf16 %v1166, %v1166
      %v1176 = vunpack.c.l.b16 %v1099
      %v1177 = vpack.c.b16 %v1176, %v1176
      %1178 = vrot.lane.b32.xlu0 %v1177, 120
      %v1179 = vpop.permute.xlu0 %1178
      %v1181 = vunpack.c.l.b16 %v1135
      %v1182 = vpack.c.b16 %v1181, %v1181
      %1183 = vrot.lane.b32.xlu0 %v1182, 88
      %v1184 = vpop.permute.xlu0 %1183
      %v1186 = vsel %vm825, %v1179, 0
      %v1189 = vsel %vm825, %v1184, 0
      %1191 = vmatpush.bf16.xpose.msra.mxu0 0
      %1192 = vmatpush.bf16.xpose.msra.mxu0 0
      %1193 = vmatpush.bf16.xpose.msra.mxu0 0
      %1194 = vmatpush.bf16.xpose.msra.mxu0 0
      %1195 = vmatpush.bf16.xpose.msra.mxu0 0
      %1196 = vmatpush.bf16.xpose.msra.mxu0 0
      %1197 = vmatpush.bf16.xpose.msra.mxu0 0
      %1198 = vmatpush.bf16.xpose.msra.mxu0 %v1189
      %1199 = vmatmul.bf16.gmra.mxu0 %v1186
      %v1200 = vpop.f32.mrf.mxu0
      %v1201 = vadd.f32 0.0, %v1200
      %v1202 = vpop.f32.mrf.mxu0
      %1203 = vdwg.mxu0
      %v1205 = vunpack.c.l.b16 %v1100
      %v1206 = vpack.c.b16 %v1205, %v1205
      %1207 = vrot.lane.b32.xlu0 %v1206, 120
      %v1208 = vpop.permute.xlu0 %1207
      %v1210 = vunpack.c.l.b16 %v1136
      %v1211 = vpack.c.b16 %v1210, %v1210
      %1212 = vrot.lane.b32.xlu0 %v1211, 88
      %v1213 = vpop.permute.xlu0 %1212
      %v1215 = vsel %vm825, %v1208, 0
      %v1218 = vsel %vm825, %v1213, 0
      %1220 = vmatpush.bf16.xpose.msra.mxu0 0
      %1221 = vmatpush.bf16.xpose.msra.mxu0 0
      %1222 = vmatpush.bf16.xpose.msra.mxu0 0
      %1223 = vmatpush.bf16.xpose.msra.mxu0 0
      %1224 = vmatpush.bf16.xpose.msra.mxu0 0
      %1225 = vmatpush.bf16.xpose.msra.mxu0 0
      %1226 = vmatpush.bf16.xpose.msra.mxu0 0
      %1227 = vmatpush.bf16.xpose.msra.mxu0 %v1218
      %1228 = vmatmul.bf16.gmra.mxu0 %v1215
      %v1229 = vpop.f32.mrf.mxu0
      %v1230 = vadd.f32 0.0, %v1229
      %v1231 = vpop.f32.mrf.mxu0
      %1232 = vdwg.mxu0
      %v1234 = vunpack.c.l.b16 %v1101
      %v1235 = vpack.c.b16 %v1234, %v1234
      %1236 = vrot.lane.b32.xlu0 %v1235, 120
      %v1237 = vpop.permute.xlu0 %1236
      %v1239 = vunpack.c.l.b16 %v1137
      %v1240 = vpack.c.b16 %v1239, %v1239
      %1241 = vrot.lane.b32.xlu0 %v1240, 88
      %v1242 = vpop.permute.xlu0 %1241
      %v1244 = vsel %vm825, %v1237, 0
      %v1247 = vsel %vm825, %v1242, 0
      %1249 = vmatpush.bf16.xpose.msra.mxu0 0
      %1250 = vmatpush.bf16.xpose.msra.mxu0 0
      %1251 = vmatpush.bf16.xpose.msra.mxu0 0
      %1252 = vmatpush.bf16.xpose.msra.mxu0 0
      %1253 = vmatpush.bf16.xpose.msra.mxu0 0
      %1254 = vmatpush.bf16.xpose.msra.mxu0 0
      %1255 = vmatpush.bf16.xpose.msra.mxu0 0
      %1256 = vmatpush.bf16.xpose.msra.mxu0 %v1247
      %1257 = vmatmul.bf16.gmra.mxu0 %v1244
      %v1258 = vpop.f32.mrf.mxu0
      %v1259 = vadd.f32 0.0, %v1258
      %v1260 = vpop.f32.mrf.mxu0
      %1261 = vdwg.mxu0
      %v1263 = vunpack.c.l.b16 %v1102
      %v1264 = vpack.c.b16 %v1263, %v1263
      %1265 = vrot.lane.b32.xlu0 %v1264, 120
      %v1266 = vpop.permute.xlu0 %1265
      %v1268 = vunpack.c.l.b16 %v1138
      %v1269 = vpack.c.b16 %v1268, %v1268
      %1270 = vrot.lane.b32.xlu0 %v1269, 88
      %v1271 = vpop.permute.xlu0 %1270
      %v1273 = vsel %vm825, %v1266, 0
      %v1276 = vsel %vm825, %v1271, 0
      %1278 = vmatpush.bf16.xpose.msra.mxu0 0
      %1279 = vmatpush.bf16.xpose.msra.mxu0 0
      %1280 = vmatpush.bf16.xpose.msra.mxu0 0
      %1281 = vmatpush.bf16.xpose.msra.mxu0 0
      %1282 = vmatpush.bf16.xpose.msra.mxu0 0
      %1283 = vmatpush.bf16.xpose.msra.mxu0 0
      %1284 = vmatpush.bf16.xpose.msra.mxu0 0
      %1285 = vmatpush.bf16.xpose.msra.mxu0 %v1276
      %1286 = vmatmul.bf16.gmra.mxu0 %v1273
      %v1287 = vpop.f32.mrf.mxu0
      %v1288 = vadd.f32 0.0, %v1287
      %v1289 = vpop.f32.mrf.mxu0
      %1290 = vdwg.mxu0
      %v1291 = vsel %vm917, %v1201, -inf
      %1292 = vmax.xlane.f32.xlu0 %v1291
      %v1293 = vpop.xlane.xlu0 %1292
      %v1294 = vsel %vm917, %v1230, -inf
      %1295 = vmax.xlane.f32.xlu0 %v1294
      %v1296 = vpop.xlane.xlu0 %1295
      %v1297 = vsel %vm917, %v1259, -inf
      %1298 = vmax.xlane.f32.xlu0 %v1297
      %v1299 = vpop.xlane.xlu0 %1298
      %v1300 = vsel %vm917, %v1288, -inf
      %1301 = vmax.xlane.f32.xlu0 %v1300
      %v1302 = vpop.xlane.xlu0 %1301
      %v1303 = vsub.f32 %v1201, %v1293
      %v1304 = vsub.f32 %v1230, %v1296
      %v1305 = vsub.f32 %v1259, %v1299
      %v1306 = vsub.f32 %v1288, %v1302
      %v1307 = vmul.f32 %v1303, 1.442695
      %v1308 = vpow.pop %v1307
      %v1309 = vmul.f32 %v1304, 1.442695
      %v1310 = vpow.pop %v1309
      %v1311 = vmul.f32 %v1305, 1.442695
      %v1312 = vpow.pop %v1311
      %v1313 = vmul.f32 %v1306, 1.442695
      %v1314 = vpow.pop %v1313
      %v1315 = vsel %vm917, %v1308, 0.0
      %1316 = vadd.xlane.f32.xlu0 %v1315
      %v1317 = vpop.xlane.xlu0 %1316
      %v1318 = vsel %vm917, %v1310, 0.0
      %1319 = vadd.xlane.f32.xlu0 %v1318
      %v1320 = vpop.xlane.xlu0 %1319
      %v1321 = vsel %vm917, %v1312, 0.0
      %1322 = vadd.xlane.f32.xlu0 %v1321
      %v1323 = vpop.xlane.xlu0 %1322
      %v1324 = vsel %vm917, %v1314, 0.0
      %1325 = vadd.xlane.f32.xlu0 %v1324
      %v1326 = vpop.xlane.xlu0 %1325
      %v1327 = vrcp.pop %v1317
      %v1328 = vrcp.pop %v1320
      %v1329 = vrcp.pop %v1323
      %v1330 = vrcp.pop %v1326
      %v1331 = vmul.f32 %v1308, %v1327
      %v1332 = vmul.f32 %v1310, %v1328
      %v1333 = vmul.f32 %v1312, %v1329
      %v1334 = vmul.f32 %v1314, %v1330
      %v1335 = vpack.c.bf16 %v1331, %v1331
      %v1336 = vpack.c.bf16 %v1332, %v1332
      %v1337 = vpack.c.bf16 %v1333, %v1333
      %v1338 = vpack.c.bf16 %v1334, %v1334
      %v1340 = vunpack.c.l.b16 %v1171
      %v1341 = vpack.c.b16 %v1340, %v1340
      %1342 = vrot.lane.b32.xlu0 %v1341, 56
      %v1343 = vpop.permute.xlu0 %1342
      %v1345 = vsel %vm971, %v1335, 0
      %v1348 = vand.u32 %v1343, %v978
      %1350 = vmatpush.bf16.msra.mxu0 0
      %1351 = vmatpush.bf16.msra.mxu0 0
      %1352 = vmatpush.bf16.msra.mxu0 0
      %1353 = vmatpush.bf16.msra.mxu0 0
      %1354 = vmatpush.bf16.msra.mxu0 0
      %1355 = vmatpush.bf16.msra.mxu0 0
      %1356 = vmatpush.bf16.msra.mxu0 0
      %1357 = vmatpush.bf16.msra.mxu0 %v1348
      %1358 = vmatmul.bf16.gmra.mxu0 %v1345
      %v1359 = vpop.f32.mrf.mxu0
      %v1360 = vadd.f32 0.0, %v1359
      %v1361 = vpop.f32.mrf.mxu0
      %1362 = vdwg.mxu0
      %v1364 = vunpack.c.l.b16 %v1172
      %v1365 = vpack.c.b16 %v1364, %v1364
      %1366 = vrot.lane.b32.xlu0 %v1365, 56
      %v1367 = vpop.permute.xlu0 %1366
      %v1369 = vsel %vm971, %v1336, 0
      %v1372 = vand.u32 %v1367, %v978
      %1374 = vmatpush.bf16.msra.mxu0 0
      %1375 = vmatpush.bf16.msra.mxu0 0
      %1376 = vmatpush.bf16.msra.mxu0 0
      %1377 = vmatpush.bf16.msra.mxu0 0
      %1378 = vmatpush.bf16.msra.mxu0 0
      %1379 = vmatpush.bf16.msra.mxu0 0
      %1380 = vmatpush.bf16.msra.mxu0 0
      %1381 = vmatpush.bf16.msra.mxu0 %v1372
      %1382 = vmatmul.bf16.gmra.mxu0 %v1369
      %v1383 = vpop.f32.mrf.mxu0
      %v1384 = vadd.f32 0.0, %v1383
      %v1385 = vpop.f32.mrf.mxu0
      %1386 = vdwg.mxu0
      %v1388 = vunpack.c.l.b16 %v1173
      %v1389 = vpack.c.b16 %v1388, %v1388
      %1390 = vrot.lane.b32.xlu0 %v1389, 56
      %v1391 = vpop.permute.xlu0 %1390
      %v1393 = vsel %vm971, %v1337, 0
      %v1396 = vand.u32 %v1391, %v978
      %1398 = vmatpush.bf16.msra.mxu0 0
      %1399 = vmatpush.bf16.msra.mxu0 0
      %1400 = vmatpush.bf16.msra.mxu0 0
      %1401 = vmatpush.bf16.msra.mxu0 0
      %1402 = vmatpush.bf16.msra.mxu0 0
      %1403 = vmatpush.bf16.msra.mxu0 0
      %1404 = vmatpush.bf16.msra.mxu0 0
      %1405 = vmatpush.bf16.msra.mxu0 %v1396
      %1406 = vmatmul.bf16.gmra.mxu0 %v1393
      %v1407 = vpop.f32.mrf.mxu0
      %v1408 = vadd.f32 0.0, %v1407
      %v1409 = vpop.f32.mrf.mxu0
      %1410 = vdwg.mxu0
      %v1412 = vunpack.c.l.b16 %v1174
      %v1413 = vpack.c.b16 %v1412, %v1412
      %1414 = vrot.lane.b32.xlu0 %v1413, 56
      %v1415 = vpop.permute.xlu0 %1414
      %v1417 = vsel %vm971, %v1338, 0
      %v1420 = vand.u32 %v1415, %v978
      %1422 = vmatpush.bf16.msra.mxu0 0
      %1423 = vmatpush.bf16.msra.mxu0 0
      %1424 = vmatpush.bf16.msra.mxu0 0
      %1425 = vmatpush.bf16.msra.mxu0 0
      %1426 = vmatpush.bf16.msra.mxu0 0
      %1427 = vmatpush.bf16.msra.mxu0 0
      %1428 = vmatpush.bf16.msra.mxu0 0
      %1429 = vmatpush.bf16.msra.mxu0 %v1420
      %1430 = vmatmul.bf16.gmra.mxu0 %v1417
      %v1431 = vpop.f32.mrf.mxu0
      %v1432 = vadd.f32 0.0, %v1431
      %v1433 = vpop.f32.mrf.mxu0
      %1434 = vdwg.mxu0
      %1435 = vst [vmem:[#allocation1] ss:$9 sm:$0xff] %v684
      %s1436 = scalar_lea.vmem [#allocation1], 1
      %1437 = vst [vmem:[%s1436] ss:$9 sm:$0xff] %v695
      %s1438 = scalar_lea.vmem [#allocation1], 2
      %1439 = vst [vmem:[%s1438] ss:$9 sm:$0xff] %v696
      %s1440 = scalar_lea.vmem [#allocation1], 3
      %1441 = vst [vmem:[%s1440] ss:$9 sm:$0xff] %v697
      %s1442 = scalar_lea.vmem [#allocation1], 4
      %1443 = vst [vmem:[%s1442] ss:$9 sm:$0xff] %v698
      %v1444 = vld [vmem:[#allocation1] sm:$0xff]
      %1445 = vst [vmem:[#allocation1] ss:$9 sm:$0xff] %v699
      %1446 = vst [vmem:[%s1436] ss:$9 sm:$0xff] %v700
      %1447 = vst [vmem:[%s1438] ss:$9 sm:$0xff] %v701
      %1448 = vst [vmem:[%s1440] ss:$9 sm:$0xff] %v686
      %1449 = vst [vmem:[%s1442] ss:$9 sm:$0xff] %v702
      %v1450 = vld [vmem:[#allocation1] sm:$0xff]
      %1451 = vst [vmem:[#allocation1] ss:$9 sm:$0xff] %v703
      %1452 = vst [vmem:[%s1436] ss:$9 sm:$0xff] %v704
      %1453 = vst [vmem:[%s1438] ss:$9 sm:$0xff] %v705
      %1454 = vst [vmem:[%s1440] ss:$9 sm:$0xff] %v706
      %1455 = vst [vmem:[%s1442] ss:$9 sm:$0xff] %v707
      %v1456 = vld [vmem:[#allocation1] sm:$0xff]
      %1457 = vst [vmem:[#allocation1] ss:$9 sm:$0xff] %v708
      %1458 = vst [vmem:[%s1436] ss:$9 sm:$0xff] %v689
      %1459 = vst [vmem:[%s1438] ss:$9 sm:$0xff] %v709
      %1460 = vst [vmem:[%s1440] ss:$9 sm:$0xff] %v710
      %1461 = vst [vmem:[%s1442] ss:$9 sm:$0xff] %v711
      %v1462 = vld [vmem:[#allocation1] sm:$0xff]
      %v1467 = vpack.c.bf16 %v1444, %v1444
      %v1468 = vpack.c.bf16 %v1450, %v1450
      %v1469 = vpack.c.bf16 %v1456, %v1456
      %v1470 = vpack.c.bf16 %v1462, %v1462
      %1471 = vst [vmem:[#allocation1] ss:$9 sm:$0xff] %v684
      %s1472 = scalar_lea.vmem [#allocation1], 1
      %1473 = vst [vmem:[%s1472] ss:$9 sm:$0xff] %v695
      %s1474 = scalar_lea.vmem [#allocation1], 2
      %1475 = vst [vmem:[%s1474] ss:$9 sm:$0xff] %v696
      %s1476 = scalar_lea.vmem [#allocation1], 3
      %1477 = vst [vmem:[%s1476] ss:$9 sm:$0xff] %v697
      %s1478 = scalar_lea.vmem [#allocation1], 4
      %1479 = vst [vmem:[%s1478] ss:$9 sm:$0xff] %v698
      %v1480 = vld [vmem:[#allocation1] sm:$0xff]
      %1481 = vst [vmem:[#allocation1] ss:$9 sm:$0xff] %v699
      %1482 = vst [vmem:[%s1472] ss:$9 sm:$0xff] %v700
      %1483 = vst [vmem:[%s1474] ss:$9 sm:$0xff] %v701
      %1484 = vst [vmem:[%s1476] ss:$9 sm:$0xff] %v686
      %1485 = vst [vmem:[%s1478] ss:$9 sm:$0xff] %v702
      %v1486 = vld [vmem:[#allocation1] sm:$0xff]
      %1487 = vst [vmem:[#allocation1] ss:$9 sm:$0xff] %v703
      %1488 = vst [vmem:[%s1472] ss:$9 sm:$0xff] %v704
      %1489 = vst [vmem:[%s1474] ss:$9 sm:$0xff] %v705
      %1490 = vst [vmem:[%s1476] ss:$9 sm:$0xff] %v706
      %1491 = vst [vmem:[%s1478] ss:$9 sm:$0xff] %v707
      %v1492 = vld [vmem:[#allocation1] sm:$0xff]
      %1493 = vst [vmem:[#allocation1] ss:$9 sm:$0xff] %v708
      %1494 = vst [vmem:[%s1472] ss:$9 sm:$0xff] %v689
      %1495 = vst [vmem:[%s1474] ss:$9 sm:$0xff] %v709
      %1496 = vst [vmem:[%s1476] ss:$9 sm:$0xff] %v710
      %1497 = vst [vmem:[%s1478] ss:$9 sm:$0xff] %v711
      %v1498 = vld [vmem:[#allocation1] sm:$0xff]
      %v1503 = vpack.c.bf16 %v1480, %v1480
      %v1504 = vpack.c.bf16 %v1486, %v1486
      %v1505 = vpack.c.bf16 %v1492, %v1492
      %v1506 = vpack.c.bf16 %v1498, %v1498
      %1507 = vst [vmem:[#allocation1] ss:$9 sm:$0xff] %v684
      %s1508 = scalar_lea.vmem [#allocation1], 1
      %1509 = vst [vmem:[%s1508] ss:$9 sm:$0xff] %v695
      %s1510 = scalar_lea.vmem [#allocation1], 2
      %1511 = vst [vmem:[%s1510] ss:$9 sm:$0xff] %v696
      %s1512 = scalar_lea.vmem [#allocation1], 3
      %1513 = vst [vmem:[%s1512] ss:$9 sm:$0xff] %v697
      %s1514 = scalar_lea.vmem [#allocation1], 4
      %1515 = vst [vmem:[%s1514] ss:$9 sm:$0xff] %v698
      %v1516 = vld [vmem:[#allocation1] sm:$0xff]
      %1517 = vst [vmem:[#allocation1] ss:$9 sm:$0xff] %v699
      %1518 = vst [vmem:[%s1508] ss:$9 sm:$0xff] %v700
      %1519 = vst [vmem:[%s1510] ss:$9 sm:$0xff] %v701
      %1520 = vst [vmem:[%s1512] ss:$9 sm:$0xff] %v686
      %1521 = vst [vmem:[%s1514] ss:$9 sm:$0xff] %v702
      %v1522 = vld [vmem:[#allocation1] sm:$0xff]
      %1523 = vst [vmem:[#allocation1] ss:$9 sm:$0xff] %v703
      %1524 = vst [vmem:[%s1508] ss:$9 sm:$0xff] %v704
      %1525 = vst [vmem:[%s1510] ss:$9 sm:$0xff] %v705
      %1526 = vst [vmem:[%s1512] ss:$9 sm:$0xff] %v706
      %1527 = vst [vmem:[%s1514] ss:$9 sm:$0xff] %v707
      %v1528 = vld [vmem:[#allocation1] sm:$0xff]
      %1529 = vst [vmem:[#allocation1] ss:$9 sm:$0xff] %v708
      %1530 = vst [vmem:[%s1508] ss:$9 sm:$0xff] %v689
      %1531 = vst [vmem:[%s1510] ss:$9 sm:$0xff] %v709
      %1532 = vst [vmem:[%s1512] ss:$9 sm:$0xff] %v710
      %1533 = vst [vmem:[%s1514] ss:$9 sm:$0xff] %v711
      %v1534 = vld [vmem:[#allocation1] sm:$0xff]
      %v1539 = vpack.c.bf16 %v1516, %v1516
      %v1540 = vpack.c.bf16 %v1522, %v1522
      %v1541 = vpack.c.bf16 %v1528, %v1528
      %v1542 = vpack.c.bf16 %v1534, %v1534
      %v1544 = vunpack.c.l.b16 %v1467
      %v1545 = vpack.c.b16 %v1544, %v1544
      %1546 = vrot.lane.b32.xlu0 %v1545, 112
      %v1547 = vpop.permute.xlu0 %1546
      %v1549 = vunpack.c.l.b16 %v1503
      %v1550 = vpack.c.b16 %v1549, %v1549
      %1551 = vrot.lane.b32.xlu0 %v1550, 80
      %v1552 = vpop.permute.xlu0 %1551
      %v1554 = vsel %vm825, %v1547, 0
      %v1557 = vsel %vm825, %v1552, 0
      %1559 = vmatpush.bf16.xpose.msra.mxu0 0
      %1560 = vmatpush.bf16.xpose.msra.mxu0 0
      %1561 = vmatpush.bf16.xpose.msra.mxu0 0
      %1562 = vmatpush.bf16.xpose.msra.mxu0 0
      %1563 = vmatpush.bf16.xpose.msra.mxu0 0
      %1564 = vmatpush.bf16.xpose.msra.mxu0 0
      %1565 = vmatpush.bf16.xpose.msra.mxu0 0
      %1566 = vmatpush.bf16.xpose.msra.mxu0 %v1557
      %1567 = vmatmul.bf16.gmra.mxu0 %v1554
      %v1568 = vpop.f32.mrf.mxu0
      %v1569 = vadd.f32 0.0, %v1568
      %v1570 = vpop.f32.mrf.mxu0
      %1571 = vdwg.mxu0
      %v1573 = vunpack.c.l.b16 %v1468
      %v1574 = vpack.c.b16 %v1573, %v1573
      %1575 = vrot.lane.b32.xlu0 %v1574, 112
      %v1576 = vpop.permute.xlu0 %1575
      %v1578 = vunpack.c.l.b16 %v1504
      %v1579 = vpack.c.b16 %v1578, %v1578
      %1580 = vrot.lane.b32.xlu0 %v1579, 80
      %v1581 = vpop.permute.xlu0 %1580
      %v1583 = vsel %vm825, %v1576, 0
      %v1586 = vsel %vm825, %v1581, 0
      %1588 = vmatpush.bf16.xpose.msra.mxu0 0
      %1589 = vmatpush.bf16.xpose.msra.mxu0 0
      %1590 = vmatpush.bf16.xpose.msra.mxu0 0
      %1591 = vmatpush.bf16.xpose.msra.mxu0 0
      %1592 = vmatpush.bf16.xpose.msra.mxu0 0
      %1593 = vmatpush.bf16.xpose.msra.mxu0 0
      %1594 = vmatpush.bf16.xpose.msra.mxu0 0
      %1595 = vmatpush.bf16.xpose.msra.mxu0 %v1586
      %1596 = vmatmul.bf16.gmra.mxu0 %v1583
      %v1597 = vpop.f32.mrf.mxu0
      %v1598 = vadd.f32 0.0, %v1597
      %v1599 = vpop.f32.mrf.mxu0
      %1600 = vdwg.mxu0
      %v1602 = vunpack.c.l.b16 %v1469
      %v1603 = vpack.c.b16 %v1602, %v1602
      %1604 = vrot.lane.b32.xlu0 %v1603, 112
      %v1605 = vpop.permute.xlu0 %1604
      %v1607 = vunpack.c.l.b16 %v1505
      %v1608 = vpack.c.b16 %v1607, %v1607
      %1609 = vrot.lane.b32.xlu0 %v1608, 80
      %v1610 = vpop.permute.xlu0 %1609
      %v1612 = vsel %vm825, %v1605, 0
      %v1615 = vsel %vm825, %v1610, 0
      %1617 = vmatpush.bf16.xpose.msra.mxu0 0
      %1618 = vmatpush.bf16.xpose.msra.mxu0 0
      %1619 = vmatpush.bf16.xpose.msra.mxu0 0
      %1620 = vmatpush.bf16.xpose.msra.mxu0 0
      %1621 = vmatpush.bf16.xpose.msra.mxu0 0
      %1622 = vmatpush.bf16.xpose.msra.mxu0 0
      %1623 = vmatpush.bf16.xpose.msra.mxu0 0
      %1624 = vmatpush.bf16.xpose.msra.mxu0 %v1615
      %1625 = vmatmul.bf16.gmra.mxu0 %v1612
      %v1626 = vpop.f32.mrf.mxu0
      %v1627 = vadd.f32 0.0, %v1626
      %v1628 = vpop.f32.mrf.mxu0
      %1629 = vdwg.mxu0
      %v1631 = vunpack.c.l.b16 %v1470
      %v1632 = vpack.c.b16 %v1631, %v1631
      %1633 = vrot.lane.b32.xlu0 %v1632, 112
      %v1634 = vpop.permute.xlu0 %1633
      %v1636 = vunpack.c.l.b16 %v1506
      %v1637 = vpack.c.b16 %v1636, %v1636
      %1638 = vrot.lane.b32.xlu0 %v1637, 80
      %v1639 = vpop.permute.xlu0 %1638
      %v1641 = vsel %vm825, %v1634, 0
      %v1644 = vsel %vm825, %v1639, 0
      %1646 = vmatpush.bf16.xpose.msra.mxu0 0
      %1647 = vmatpush.bf16.xpose.msra.mxu0 0
      %1648 = vmatpush.bf16.xpose.msra.mxu0 0
      %1649 = vmatpush.bf16.xpose.msra.mxu0 0
      %1650 = vmatpush.bf16.xpose.msra.mxu0 0
      %1651 = vmatpush.bf16.xpose.msra.mxu0 0
      %1652 = vmatpush.bf16.xpose.msra.mxu0 0
      %1653 = vmatpush.bf16.xpose.msra.mxu0 %v1644
      %1654 = vmatmul.bf16.gmra.mxu0 %v1641
      %v1655 = vpop.f32.mrf.mxu0
      %v1656 = vadd.f32 0.0, %v1655
      %v1657 = vpop.f32.mrf.mxu0
      %1658 = vdwg.mxu0
      %v1659 = vsel %vm917, %v1569, -inf
      %1660 = vmax.xlane.f32.xlu0 %v1659
      %v1661 = vpop.xlane.xlu0 %1660
      %v1662 = vsel %vm917, %v1598, -inf
      %1663 = vmax.xlane.f32.xlu0 %v1662
      %v1664 = vpop.xlane.xlu0 %1663
      %v1665 = vsel %vm917, %v1627, -inf
      %1666 = vmax.xlane.f32.xlu0 %v1665
      %v1667 = vpop.xlane.xlu0 %1666
      %v1668 = vsel %vm917, %v1656, -inf
      %1669 = vmax.xlane.f32.xlu0 %v1668
      %v1670 = vpop.xlane.xlu0 %1669
      %v1671 = vsub.f32 %v1569, %v1661
      %v1672 = vsub.f32 %v1598, %v1664
      %v1673 = vsub.f32 %v1627, %v1667
      %v1674 = vsub.f32 %v1656, %v1670
      %v1675 = vmul.f32 %v1671, 1.442695
      %v1676 = vpow.pop %v1675
      %v1677 = vmul.f32 %v1672, 1.442695
      %v1678 = vpow.pop %v1677
      %v1679 = vmul.f32 %v1673, 1.442695
      %v1680 = vpow.pop %v1679
      %v1681 = vmul.f32 %v1674, 1.442695
      %v1682 = vpow.pop %v1681
      %v1683 = vsel %vm917, %v1676, 0.0
      %1684 = vadd.xlane.f32.xlu0 %v1683
      %v1685 = vpop.xlane.xlu0 %1684
      %v1686 = vsel %vm917, %v1678, 0.0
      %1687 = vadd.xlane.f32.xlu0 %v1686
      %v1688 = vpop.xlane.xlu0 %1687
      %v1689 = vsel %vm917, %v1680, 0.0
      %1690 = vadd.xlane.f32.xlu0 %v1689
      %v1691 = vpop.xlane.xlu0 %1690
      %v1692 = vsel %vm917, %v1682, 0.0
      %1693 = vadd.xlane.f32.xlu0 %v1692
      %v1694 = vpop.xlane.xlu0 %1693
      %v1695 = vrcp.pop %v1685
      %v1696 = vrcp.pop %v1688
      %v1697 = vrcp.pop %v1691
      %v1698 = vrcp.pop %v1694
      %v1699 = vmul.f32 %v1676, %v1695
      %v1700 = vmul.f32 %v1678, %v1696
      %v1701 = vmul.f32 %v1680, %v1697
      %v1702 = vmul.f32 %v1682, %v1698
      %v1703 = vpack.c.bf16 %v1699, %v1699
      %v1704 = vpack.c.bf16 %v1700, %v1700
      %v1705 = vpack.c.bf16 %v1701, %v1701
      %v1706 = vpack.c.bf16 %v1702, %v1702
      %v1708 = vunpack.c.l.b16 %v1539
      %v1709 = vpack.c.b16 %v1708, %v1708
      %1710 = vrot.lane.b32.xlu0 %v1709, 48
      %v1711 = vpop.permute.xlu0 %1710
      %v1713 = vsel %vm971, %v1703, 0
      %v1716 = vand.u32 %v1711, %v978
      %1718 = vmatpush.bf16.msra.mxu0 0
      %1719 = vmatpush.bf16.msra.mxu0 0
      %1720 = vmatpush.bf16.msra.mxu0 0
      %1721 = vmatpush.bf16.msra.mxu0 0
      %1722 = vmatpush.bf16.msra.mxu0 0
      %1723 = vmatpush.bf16.msra.mxu0 0
      %1724 = vmatpush.bf16.msra.mxu0 0
      %1725 = vmatpush.bf16.msra.mxu0 %v1716
      %1726 = vmatmul.bf16.gmra.mxu0 %v1713
      %v1727 = vpop.f32.mrf.mxu0
      %v1728 = vadd.f32 0.0, %v1727
      %v1729 = vpop.f32.mrf.mxu0
      %1730 = vdwg.mxu0
      %v1732 = vunpack.c.l.b16 %v1540
      %v1733 = vpack.c.b16 %v1732, %v1732
      %1734 = vrot.lane.b32.xlu0 %v1733, 48
      %v1735 = vpop.permute.xlu0 %1734
      %v1737 = vsel %vm971, %v1704, 0
      %v1740 = vand.u32 %v1735, %v978
      %1742 = vmatpush.bf16.msra.mxu0 0
      %1743 = vmatpush.bf16.msra.mxu0 0
      %1744 = vmatpush.bf16.msra.mxu0 0
      %1745 = vmatpush.bf16.msra.mxu0 0
      %1746 = vmatpush.bf16.msra.mxu0 0
      %1747 = vmatpush.bf16.msra.mxu0 0
      %1748 = vmatpush.bf16.msra.mxu0 0
      %1749 = vmatpush.bf16.msra.mxu0 %v1740
      %1750 = vmatmul.bf16.gmra.mxu0 %v1737
      %v1751 = vpop.f32.mrf.mxu0
      %v1752 = vadd.f32 0.0, %v1751
      %v1753 = vpop.f32.mrf.mxu0
      %1754 = vdwg.mxu0
      %v1756 = vunpack.c.l.b16 %v1541
      %v1757 = vpack.c.b16 %v1756, %v1756
      %1758 = vrot.lane.b32.xlu0 %v1757, 48
      %v1759 = vpop.permute.xlu0 %1758
      %v1761 = vsel %vm971, %v1705, 0
      %v1764 = vand.u32 %v1759, %v978
      %1766 = vmatpush.bf16.msra.mxu0 0
      %1767 = vmatpush.bf16.msra.mxu0 0
      %1768 = vmatpush.bf16.msra.mxu0 0
      %1769 = vmatpush.bf16.msra.mxu0 0
      %1770 = vmatpush.bf16.msra.mxu0 0
      %1771 = vmatpush.bf16.msra.mxu0 0
      %1772 = vmatpush.bf16.msra.mxu0 0
      %1773 = vmatpush.bf16.msra.mxu0 %v1764
      %1774 = vmatmul.bf16.gmra.mxu0 %v1761
      %v1775 = vpop.f32.mrf.mxu0
      %v1776 = vadd.f32 0.0, %v1775
      %v1777 = vpop.f32.mrf.mxu0
      %1778 = vdwg.mxu0
      %v1780 = vunpack.c.l.b16 %v1542
      %v1781 = vpack.c.b16 %v1780, %v1780
      %1782 = vrot.lane.b32.xlu0 %v1781, 48
      %v1783 = vpop.permute.xlu0 %1782
      %v1785 = vsel %vm971, %v1706, 0
      %v1788 = vand.u32 %v1783, %v978
      %1790 = vmatpush.bf16.msra.mxu0 0
      %1791 = vmatpush.bf16.msra.mxu0 0
      %1792 = vmatpush.bf16.msra.mxu0 0
      %1793 = vmatpush.bf16.msra.mxu0 0
      %1794 = vmatpush.bf16.msra.mxu0 0
      %1795 = vmatpush.bf16.msra.mxu0 0
      %1796 = vmatpush.bf16.msra.mxu0 0
      %1797 = vmatpush.bf16.msra.mxu0 %v1788
      %1798 = vmatmul.bf16.gmra.mxu0 %v1785
      %v1799 = vpop.f32.mrf.mxu0
      %v1800 = vadd.f32 0.0, %v1799
      %v1801 = vpop.f32.mrf.mxu0
      %1802 = vdwg.mxu0
      %1803 = vst [vmem:[#allocation1] ss:$9 sm:$0xff] %v684
      %s1804 = scalar_lea.vmem [#allocation1], 1
      %1805 = vst [vmem:[%s1804] ss:$9 sm:$0xff] %v695
      %s1806 = scalar_lea.vmem [#allocation1], 2
      %1807 = vst [vmem:[%s1806] ss:$9 sm:$0xff] %v696
      %s1808 = scalar_lea.vmem [#allocation1], 3
      %1809 = vst [vmem:[%s1808] ss:$9 sm:$0xff] %v697
      %s1810 = scalar_lea.vmem [#allocation1], 4
      %1811 = vst [vmem:[%s1810] ss:$9 sm:$0xff] %v698
      %v1812 = vld [vmem:[#allocation1] sm:$0xff]
      %1813 = vst [vmem:[#allocation1] ss:$9 sm:$0xff] %v699
      %1814 = vst [vmem:[%s1804] ss:$9 sm:$0xff] %v700
      %1815 = vst [vmem:[%s1806] ss:$9 sm:$0xff] %v701
      %1816 = vst [vmem:[%s1808] ss:$9 sm:$0xff] %v686
      %1817 = vst [vmem:[%s1810] ss:$9 sm:$0xff] %v702
      %v1818 = vld [vmem:[#allocation1] sm:$0xff]
      %1819 = vst [vmem:[#allocation1] ss:$9 sm:$0xff] %v703
      %1820 = vst [vmem:[%s1804] ss:$9 sm:$0xff] %v704
      %1821 = vst [vmem:[%s1806] ss:$9 sm:$0xff] %v705
      %1822 = vst [vmem:[%s1808] ss:$9 sm:$0xff] %v706
      %1823 = vst [vmem:[%s1810] ss:$9 sm:$0xff] %v707
      %v1824 = vld [vmem:[#allocation1] sm:$0xff]
      %1825 = vst [vmem:[#allocation1] ss:$9 sm:$0xff] %v708
      %1826 = vst [vmem:[%s1804] ss:$9 sm:$0xff] %v689
      %1827 = vst [vmem:[%s1806] ss:$9 sm:$0xff] %v709
      %1828 = vst [vmem:[%s1808] ss:$9 sm:$0xff] %v710
      %1829 = vst [vmem:[%s1810] ss:$9 sm:$0xff] %v711
      %v1830 = vld [vmem:[#allocation1] sm:$0xff]
      %v1835 = vpack.c.bf16 %v1812, %v1812
      %v1836 = vpack.c.bf16 %v1818, %v1818
      %v1837 = vpack.c.bf16 %v1824, %v1824
      %v1838 = vpack.c.bf16 %v1830, %v1830
      %1839 = vst [vmem:[#allocation1] ss:$9 sm:$0xff] %v684
      %s1840 = scalar_lea.vmem [#allocation1], 1
      %1841 = vst [vmem:[%s1840] ss:$9 sm:$0xff] %v695
      %s1842 = scalar_lea.vmem [#allocation1], 2
      %1843 = vst [vmem:[%s1842] ss:$9 sm:$0xff] %v696
      %s1844 = scalar_lea.vmem [#allocation1], 3
      %1845 = vst [vmem:[%s1844] ss:$9 sm:$0xff] %v697
      %s1846 = scalar_lea.vmem [#allocation1], 4
      %1847 = vst [vmem:[%s1846] ss:$9 sm:$0xff] %v698
      %v1848 = vld [vmem:[#allocation1] sm:$0xff]
      %1849 = vst [vmem:[#allocation1] ss:$9 sm:$0xff] %v699
      %1850 = vst [vmem:[%s1840] ss:$9 sm:$0xff] %v700
      %1851 = vst [vmem:[%s1842] ss:$9 sm:$0xff] %v701
      %1852 = vst [vmem:[%s1844] ss:$9 sm:$0xff] %v686
      %1853 = vst [vmem:[%s1846] ss:$9 sm:$0xff] %v702
      %v1854 = vld [vmem:[#allocation1] sm:$0xff]
      %1855 = vst [vmem:[#allocation1] ss:$9 sm:$0xff] %v703
      %1856 = vst [vmem:[%s1840] ss:$9 sm:$0xff] %v704
      %1857 = vst [vmem:[%s1842] ss:$9 sm:$0xff] %v705
      %1858 = vst [vmem:[%s1844] ss:$9 sm:$0xff] %v706
      %1859 = vst [vmem:[%s1846] ss:$9 sm:$0xff] %v707
      %v1860 = vld [vmem:[#allocation1] sm:$0xff]
      %1861 = vst [vmem:[#allocation1] ss:$9 sm:$0xff] %v708
      %1862 = vst [vmem:[%s1840] ss:$9 sm:$0xff] %v689
      %1863 = vst [vmem:[%s1842] ss:$9 sm:$0xff] %v709
      %1864 = vst [vmem:[%s1844] ss:$9 sm:$0xff] %v710
      %1865 = vst [vmem:[%s1846] ss:$9 sm:$0xff] %v711
      %v1866 = vld [vmem:[#allocation1] sm:$0xff]
      %v1871 = vpack.c.bf16 %v1848, %v1848
      %v1872 = vpack.c.bf16 %v1854, %v1854
      %v1873 = vpack.c.bf16 %v1860, %v1860
      %v1874 = vpack.c.bf16 %v1866, %v1866
      %1875 = vst [vmem:[#allocation1] ss:$9 sm:$0xff] %v684
      %s1876 = scalar_lea.vmem [#allocation1], 1
      %1877 = vst [vmem:[%s1876] ss:$9 sm:$0xff] %v695
      %s1878 = scalar_lea.vmem [#allocation1], 2
      %1879 = vst [vmem:[%s1878] ss:$9 sm:$0xff] %v696
      %s1880 = scalar_lea.vmem [#allocation1], 3
      %1881 = vst [vmem:[%s1880] ss:$9 sm:$0xff] %v697
      %s1882 = scalar_lea.vmem [#allocation1], 4
      %1883 = vst [vmem:[%s1882] ss:$9 sm:$0xff] %v698
      %v1884 = vld [vmem:[#allocation1] sm:$0xff]
      %1885 = vst [vmem:[#allocation1] ss:$9 sm:$0xff] %v699
      %1886 = vst [vmem:[%s1876] ss:$9 sm:$0xff] %v700
      %1887 = vst [vmem:[%s1878] ss:$9 sm:$0xff] %v701
      %1888 = vst [vmem:[%s1880] ss:$9 sm:$0xff] %v686
      %1889 = vst [vmem:[%s1882] ss:$9 sm:$0xff] %v702
      %v1890 = vld [vmem:[#allocation1] sm:$0xff]
      %1891 = vst [vmem:[#allocation1] ss:$9 sm:$0xff] %v703
      %1892 = vst [vmem:[%s1876] ss:$9 sm:$0xff] %v704
      %1893 = vst [vmem:[%s1878] ss:$9 sm:$0xff] %v705
      %1894 = vst [vmem:[%s1880] ss:$9 sm:$0xff] %v706
      %1895 = vst [vmem:[%s1882] ss:$9 sm:$0xff] %v707
      %v1896 = vld [vmem:[#allocation1] sm:$0xff]
      %1897 = vst [vmem:[#allocation1] ss:$9 sm:$0xff] %v708
      %1898 = vst [vmem:[%s1876] ss:$9 sm:$0xff] %v689
      %1899 = vst [vmem:[%s1878] ss:$9 sm:$0xff] %v709
      %1900 = vst [vmem:[%s1880] ss:$9 sm:$0xff] %v710
      %1901 = vst [vmem:[%s1882] ss:$9 sm:$0xff] %v711
      %v1902 = vld [vmem:[#allocation1] sm:$0xff]
      %v1907 = vpack.c.bf16 %v1884, %v1884
      %v1908 = vpack.c.bf16 %v1890, %v1890
      %v1909 = vpack.c.bf16 %v1896, %v1896
      %v1910 = vpack.c.bf16 %v1902, %v1902
      %v1912 = vunpack.c.l.b16 %v1835
      %v1913 = vpack.c.b16 %v1912, %v1912
      %1914 = vrot.lane.b32.xlu0 %v1913, 104
      %v1915 = vpop.permute.xlu0 %1914
      %v1917 = vunpack.c.l.b16 %v1871
      %v1918 = vpack.c.b16 %v1917, %v1917
      %1919 = vrot.lane.b32.xlu0 %v1918, 72
      %v1920 = vpop.permute.xlu0 %1919
      %v1922 = vsel %vm825, %v1915, 0
      %v1925 = vsel %vm825, %v1920, 0
      %1927 = vmatpush.bf16.xpose.msra.mxu0 0
      %1928 = vmatpush.bf16.xpose.msra.mxu0 0
      %1929 = vmatpush.bf16.xpose.msra.mxu0 0
      %1930 = vmatpush.bf16.xpose.msra.mxu0 0
      %1931 = vmatpush.bf16.xpose.msra.mxu0 0
      %1932 = vmatpush.bf16.xpose.msra.mxu0 0
      %1933 = vmatpush.bf16.xpose.msra.mxu0 0
      %1934 = vmatpush.bf16.xpose.msra.mxu0 %v1925
      %1935 = vmatmul.bf16.gmra.mxu0 %v1922
      %v1936 = vpop.f32.mrf.mxu0
      %v1937 = vadd.f32 0.0, %v1936
      %v1938 = vpop.f32.mrf.mxu0
      %1939 = vdwg.mxu0
      %v1941 = vunpack.c.l.b16 %v1836
      %v1942 = vpack.c.b16 %v1941, %v1941
      %1943 = vrot.lane.b32.xlu0 %v1942, 104
      %v1944 = vpop.permute.xlu0 %1943
      %v1946 = vunpack.c.l.b16 %v1872
      %v1947 = vpack.c.b16 %v1946, %v1946
      %1948 = vrot.lane.b32.xlu0 %v1947, 72
      %v1949 = vpop.permute.xlu0 %1948
      %v1951 = vsel %vm825, %v1944, 0
      %v1954 = vsel %vm825, %v1949, 0
      %1956 = vmatpush.bf16.xpose.msra.mxu0 0
      %1957 = vmatpush.bf16.xpose.msra.mxu0 0
      %1958 = vmatpush.bf16.xpose.msra.mxu0 0
      %1959 = vmatpush.bf16.xpose.msra.mxu0 0
      %1960 = vmatpush.bf16.xpose.msra.mxu0 0
      %1961 = vmatpush.bf16.xpose.msra.mxu0 0
      %1962 = vmatpush.bf16.xpose.msra.mxu0 0
      %1963 = vmatpush.bf16.xpose.msra.mxu0 %v1954
      %1964 = vmatmul.bf16.gmra.mxu0 %v1951
      %v1965 = vpop.f32.mrf.mxu0
      %v1966 = vadd.f32 0.0, %v1965
      %v1967 = vpop.f32.mrf.mxu0
      %1968 = vdwg.mxu0
      %v1970 = vunpack.c.l.b16 %v1837
      %v1971 = vpack.c.b16 %v1970, %v1970
      %1972 = vrot.lane.b32.xlu0 %v1971, 104
      %v1973 = vpop.permute.xlu0 %1972
      %v1975 = vunpack.c.l.b16 %v1873
      %v1976 = vpack.c.b16 %v1975, %v1975
      %1977 = vrot.lane.b32.xlu0 %v1976, 72
      %v1978 = vpop.permute.xlu0 %1977
      %v1980 = vsel %vm825, %v1973, 0
      %v1983 = vsel %vm825, %v1978, 0
      %1985 = vmatpush.bf16.xpose.msra.mxu0 0
      %1986 = vmatpush.bf16.xpose.msra.mxu0 0
      %1987 = vmatpush.bf16.xpose.msra.mxu0 0
      %1988 = vmatpush.bf16.xpose.msra.mxu0 0
      %1989 = vmatpush.bf16.xpose.msra.mxu0 0
      %1990 = vmatpush.bf16.xpose.msra.mxu0 0
      %1991 = vmatpush.bf16.xpose.msra.mxu0 0
      %1992 = vmatpush.bf16.xpose.msra.mxu0 %v1983
      %1993 = vmatmul.bf16.gmra.mxu0 %v1980
      %v1994 = vpop.f32.mrf.mxu0
      %v1995 = vadd.f32 0.0, %v1994
      %v1996 = vpop.f32.mrf.mxu0
      %1997 = vdwg.mxu0
      %v1999 = vunpack.c.l.b16 %v1838
      %v2000 = vpack.c.b16 %v1999, %v1999
      %2001 = vrot.lane.b32.xlu0 %v2000, 104
      %v2002 = vpop.permute.xlu0 %2001
      %v2004 = vunpack.c.l.b16 %v1874
      %v2005 = vpack.c.b16 %v2004, %v2004
      %2006 = vrot.lane.b32.xlu0 %v2005, 72
      %v2007 = vpop.permute.xlu0 %2006
      %v2009 = vsel %vm825, %v2002, 0
      %v2012 = vsel %vm825, %v2007, 0
      %2014 = vmatpush.bf16.xpose.msra.mxu0 0
      %2015 = vmatpush.bf16.xpose.msra.mxu0 0
      %2016 = vmatpush.bf16.xpose.msra.mxu0 0
      %2017 = vmatpush.bf16.xpose.msra.mxu0 0
      %2018 = vmatpush.bf16.xpose.msra.mxu0 0
      %2019 = vmatpush.bf16.xpose.msra.mxu0 0
      %2020 = vmatpush.bf16.xpose.msra.mxu0 0
      %2021 = vmatpush.bf16.xpose.msra.mxu0 %v2012
      %2022 = vmatmul.bf16.gmra.mxu0 %v2009
      %v2023 = vpop.f32.mrf.mxu0
      %v2024 = vadd.f32 0.0, %v2023
      %v2025 = vpop.f32.mrf.mxu0
      %2026 = vdwg.mxu0
      %v2027 = vsel %vm917, %v1937, -inf
      %2028 = vmax.xlane.f32.xlu0 %v2027
      %v2029 = vpop.xlane.xlu0 %2028
      %v2030 = vsel %vm917, %v1966, -inf
      %2031 = vmax.xlane.f32.xlu0 %v2030
      %v2032 = vpop.xlane.xlu0 %2031
      %v2033 = vsel %vm917, %v1995, -inf
      %2034 = vmax.xlane.f32.xlu0 %v2033
      %v2035 = vpop.xlane.xlu0 %2034
      %v2036 = vsel %vm917, %v2024, -inf
      %2037 = vmax.xlane.f32.xlu0 %v2036
      %v2038 = vpop.xlane.xlu0 %2037
      %v2039 = vsub.f32 %v1937, %v2029
      %v2040 = vsub.f32 %v1966, %v2032
      %v2041 = vsub.f32 %v1995, %v2035
      %v2042 = vsub.f32 %v2024, %v2038
      %v2043 = vmul.f32 %v2039, 1.442695
      %v2044 = vpow.pop %v2043
      %v2045 = vmul.f32 %v2040, 1.442695
      %v2046 = vpow.pop %v2045
      %v2047 = vmul.f32 %v2041, 1.442695
      %v2048 = vpow.pop %v2047
      %v2049 = vmul.f32 %v2042, 1.442695
      %v2050 = vpow.pop %v2049
      %v2051 = vsel %vm917, %v2044, 0.0
      %2052 = vadd.xlane.f32.xlu0 %v2051
      %v2053 = vpop.xlane.xlu0 %2052
      %v2054 = vsel %vm917, %v2046, 0.0
      %2055 = vadd.xlane.f32.xlu0 %v2054
      %v2056 = vpop.xlane.xlu0 %2055
      %v2057 = vsel %vm917, %v2048, 0.0
      %2058 = vadd.xlane.f32.xlu0 %v2057
      %v2059 = vpop.xlane.xlu0 %2058
      %v2060 = vsel %vm917, %v2050, 0.0
      %2061 = vadd.xlane.f32.xlu0 %v2060
      %v2062 = vpop.xlane.xlu0 %2061
      %v2063 = vrcp.pop %v2053
      %v2064 = vrcp.pop %v2056
      %v2065 = vrcp.pop %v2059
      %v2066 = vrcp.pop %v2062
      %v2067 = vmul.f32 %v2044, %v2063
      %v2068 = vmul.f32 %v2046, %v2064
      %v2069 = vmul.f32 %v2048, %v2065
      %v2070 = vmul.f32 %v2050, %v2066
      %v2071 = vpack.c.bf16 %v2067, %v2067
      %v2072 = vpack.c.bf16 %v2068, %v2068
      %v2073 = vpack.c.bf16 %v2069, %v2069
      %v2074 = vpack.c.bf16 %v2070, %v2070
      %v2076 = vunpack.c.l.b16 %v1907
      %v2077 = vpack.c.b16 %v2076, %v2076
      %2078 = vrot.lane.b32.xlu0 %v2077, 40
      %v2079 = vpop.permute.xlu0 %2078
      %v2081 = vsel %vm971, %v2071, 0
      %v2084 = vand.u32 %v2079, %v978
      %2086 = vmatpush.bf16.msra.mxu0 0
      %2087 = vmatpush.bf16.msra.mxu0 0
      %2088 = vmatpush.bf16.msra.mxu0 0
      %2089 = vmatpush.bf16.msra.mxu0 0
      %2090 = vmatpush.bf16.msra.mxu0 0
      %2091 = vmatpush.bf16.msra.mxu0 0
      %2092 = vmatpush.bf16.msra.mxu0 0
      %2093 = vmatpush.bf16.msra.mxu0 %v2084
      %2094 = vmatmul.bf16.gmra.mxu0 %v2081
      %v2095 = vpop.f32.mrf.mxu0
      %v2096 = vadd.f32 0.0, %v2095
      %v2097 = vpop.f32.mrf.mxu0
      %2098 = vdwg.mxu0
      %v2100 = vunpack.c.l.b16 %v1908
      %v2101 = vpack.c.b16 %v2100, %v2100
      %2102 = vrot.lane.b32.xlu0 %v2101, 40
      %v2103 = vpop.permute.xlu0 %2102
      %v2105 = vsel %vm971, %v2072, 0
      %v2108 = vand.u32 %v2103, %v978
      %2110 = vmatpush.bf16.msra.mxu0 0
      %2111 = vmatpush.bf16.msra.mxu0 0
      %2112 = vmatpush.bf16.msra.mxu0 0
      %2113 = vmatpush.bf16.msra.mxu0 0
      %2114 = vmatpush.bf16.msra.mxu0 0
      %2115 = vmatpush.bf16.msra.mxu0 0
      %2116 = vmatpush.bf16.msra.mxu0 0
      %2117 = vmatpush.bf16.msra.mxu0 %v2108
      %2118 = vmatmul.bf16.gmra.mxu0 %v2105
      %v2119 = vpop.f32.mrf.mxu0
      %v2120 = vadd.f32 0.0, %v2119
      %v2121 = vpop.f32.mrf.mxu0
      %2122 = vdwg.mxu0
      %v2124 = vunpack.c.l.b16 %v1909
      %v2125 = vpack.c.b16 %v2124, %v2124
      %2126 = vrot.lane.b32.xlu0 %v2125, 40
      %v2127 = vpop.permute.xlu0 %2126
      %v2129 = vsel %vm971, %v2073, 0
      %v2132 = vand.u32 %v2127, %v978
      %2134 = vmatpush.bf16.msra.mxu0 0
      %2135 = vmatpush.bf16.msra.mxu0 0
      %2136 = vmatpush.bf16.msra.mxu0 0
      %2137 = vmatpush.bf16.msra.mxu0 0
      %2138 = vmatpush.bf16.msra.mxu0 0
      %2139 = vmatpush.bf16.msra.mxu0 0
      %2140 = vmatpush.bf16.msra.mxu0 0
      %2141 = vmatpush.bf16.msra.mxu0 %v2132
      %2142 = vmatmul.bf16.gmra.mxu0 %v2129
      %v2143 = vpop.f32.mrf.mxu0
      %v2144 = vadd.f32 0.0, %v2143
      %v2145 = vpop.f32.mrf.mxu0
      %2146 = vdwg.mxu0
      %v2148 = vunpack.c.l.b16 %v1910
      %v2149 = vpack.c.b16 %v2148, %v2148
      %2150 = vrot.lane.b32.xlu0 %v2149, 40
      %v2151 = vpop.permute.xlu0 %2150
      %v2153 = vsel %vm971, %v2074, 0
      %v2156 = vand.u32 %v2151, %v978
      %2158 = vmatpush.bf16.msra.mxu0 0
      %2159 = vmatpush.bf16.msra.mxu0 0
      %2160 = vmatpush.bf16.msra.mxu0 0
      %2161 = vmatpush.bf16.msra.mxu0 0
      %2162 = vmatpush.bf16.msra.mxu0 0
      %2163 = vmatpush.bf16.msra.mxu0 0
      %2164 = vmatpush.bf16.msra.mxu0 0
      %2165 = vmatpush.bf16.msra.mxu0 %v2156
      %2166 = vmatmul.bf16.gmra.mxu0 %v2153
      %v2167 = vpop.f32.mrf.mxu0
      %v2168 = vadd.f32 0.0, %v2167
      %v2169 = vpop.f32.mrf.mxu0
      %2170 = vdwg.mxu0
      %2175 = vrot.lane.b32.xlu0 %v1360, 8
      %v2176 = vpop.permute.xlu0 %2175
      %2177 = vrot.lane.b32.xlu0 %v1384, 8
      %v2178 = vpop.permute.xlu0 %2177
      %2179 = vrot.lane.b32.xlu0 %v1408, 8
      %v2180 = vpop.permute.xlu0 %2179
      %2181 = vrot.lane.b32.xlu0 %v1432, 8
      %v2182 = vpop.permute.xlu0 %2181
      %2191 = vrot.lane.b32.xlu0 %v1728, 16
      %v2192 = vpop.permute.xlu0 %2191
      %2193 = vrot.lane.b32.xlu0 %v1752, 16
      %v2194 = vpop.permute.xlu0 %2193
      %2195 = vrot.lane.b32.xlu0 %v1776, 16
      %v2196 = vpop.permute.xlu0 %2195
      %2197 = vrot.lane.b32.xlu0 %v1800, 16
      %v2198 = vpop.permute.xlu0 %2197
      %2207 = vrot.lane.b32.xlu0 %v2096, 24
      %v2208 = vpop.permute.xlu0 %2207
      %2209 = vrot.lane.b32.xlu0 %v2120, 24
      %v2210 = vpop.permute.xlu0 %2209
      %2211 = vrot.lane.b32.xlu0 %v2144, 24
      %v2212 = vpop.permute.xlu0 %2211
      %2213 = vrot.lane.b32.xlu0 %v2168, 24
      %v2214 = vpop.permute.xlu0 %2213
      %v2219 = vsel %vm825, %v992, %v2176
      %v2220 = vsel %vm825, %v1016, %v2178
      %v2221 = vsel %vm825, %v1040, %v2180
      %v2222 = vsel %vm825, %v1064, %v2182
      %vm2223 = vcmask 130048
      %v2224 = vsel %vm2223, %v2219, %v2192
      %v2225 = vsel %vm2223, %v2220, %v2194
      %v2226 = vsel %vm2223, %v2221, %v2196
      %v2227 = vsel %vm2223, %v2222, %v2198
      %vm2228 = vcmask 195584
      %v2229 = vsel %vm2228, %v2224, %v2208
      %v2230 = vsel %vm2228, %v2225, %v2210
      %v2231 = vsel %vm2228, %v2226, %v2212
      %v2232 = vsel %vm2228, %v2227, %v2214
      %v2233 = vpack.c.bf16 %v2229, %v2229
      %v2234 = vpack.c.bf16 %v2230, %v2230
      %v2235 = vpack.c.bf16 %v2231, %v2231
      %v2236 = vpack.c.bf16 %v2232, %v2232
      %v2238 = vperm.slane %v542, 0
      %v2243 = vrot.slane %v2233, 3
      %v2244 = vrot.slane %v2234, 3
      %v2245 = vrot.slane %v2235, 3
      %v2246 = vrot.slane %v2236, 3
      %v2249 = vsel %vm555, %v2233, %v2243
      %v2251 = vsel %vm560, %v2233, %v2243
      %v2253 = vrot.slane %v2251, 1
      %v2254 = vsel %vm564, %v2233, %v2243
      %v2256 = vrot.slane %v2254, 2
      %v2259 = vsel %vm555, %v2234, %v2244
      %v2261 = vsel %vm560, %v2234, %v2244
      %v2263 = vrot.slane %v2261, 1
      %v2264 = vsel %vm564, %v2234, %v2244
      %v2266 = vrot.slane %v2264, 2
      %v2269 = vsel %vm555, %v2235, %v2245
      %v2271 = vsel %vm560, %v2235, %v2245
      %v2273 = vrot.slane %v2271, 1
      %v2274 = vsel %vm564, %v2235, %v2245
      %v2276 = vrot.slane %v2274, 2
      %v2279 = vsel %vm555, %v2236, %v2246
      %v2281 = vsel %vm560, %v2236, %v2246
      %v2283 = vrot.slane %v2281, 1
      %v2284 = vsel %vm564, %v2236, %v2246
      %v2286 = vrot.slane %v2284, 2
      %v2287 = vunpack.i.l.s16 %v2249
      %v2288 = vunpack.i.h.s16 %v2249
      %v2289 = vunpack.i.l.s16 %v2253
      %v2290 = vunpack.i.h.s16 %v2253
      %v2291 = vunpack.i.l.s16 %v2256
      %v2292 = vunpack.i.l.s16 %v2259
      %v2293 = vunpack.i.h.s16 %v2259
      %v2294 = vunpack.i.l.s16 %v2263
      %v2295 = vunpack.i.h.s16 %v2263
      %v2296 = vunpack.i.l.s16 %v2266
      %v2297 = vunpack.i.l.s16 %v2269
      %v2298 = vunpack.i.h.s16 %v2269
      %v2299 = vunpack.i.l.s16 %v2273
      %v2300 = vunpack.i.h.s16 %v2273
      %v2301 = vunpack.i.l.s16 %v2276
      %v2302 = vunpack.i.l.s16 %v2279
      %v2303 = vunpack.i.h.s16 %v2279
      %v2304 = vunpack.i.l.s16 %v2283
      %v2305 = vunpack.i.h.s16 %v2283
      %v2306 = vunpack.i.l.s16 %v2286
      %v2307 = vrot.slane %v2238, 1
      %v2308 = vrot.slane %v2238, 2
      %v2309 = vrot.slane %v2238, 3
      %v2310 = vrot.slane %v2238, 4
      %v2311 = vpack.i.b16 %v2288, %v2287
      %v2312 = vpack.i.b16 %v2290, %v2289
      %v2313 = vpack.i.b16 %v2292, %v2291
      %v2314 = vpack.i.b16 %v2294, %v2293
      %v2315 = vpack.i.b16 %v2296, %v2295
      %v2316 = vpack.i.b16 %v2298, %v2297
      %v2317 = vpack.i.b16 %v2300, %v2299
      %v2318 = vpack.i.b16 %v2302, %v2301
      %v2319 = vpack.i.b16 %v2304, %v2303
      %v2320 = vpack.i.b16 %v2306, %v2305
      %2322 = vst [vmem:[#allocation1] ss:$9 sm:$0xff] %v2311
      %s2324 = scalar_lea.vmem [#allocation1], 1
      %2325 = vst [vmem:[%s2324] ss:$9 sm:$0xff] %v2312
      %s2327 = scalar_lea.vmem [#allocation1], 2
      %2328 = vst [vmem:[%s2327] ss:$9 sm:$0xff] %v2313
      %s2330 = scalar_lea.vmem [#allocation1], 3
      %2331 = vst [vmem:[%s2330] ss:$9 sm:$0xff] %v2314
      %s2333 = scalar_lea.vmem [#allocation1], 4
      %2334 = vst [vmem:[%s2333] ss:$9 sm:$0xff] %v2315
      %s2336 = scalar_lea.vmem [#allocation1], 5
      %2337 = vst [vmem:[%s2336] ss:$9 sm:$0xff] %v2316
      %s2339 = scalar_lea.vmem [#allocation1], 6
      %2340 = vst [vmem:[%s2339] ss:$9 sm:$0xff] %v2317
      %s2342 = scalar_lea.vmem [#allocation1], 7
      %2343 = vst [vmem:[%s2342] ss:$9 sm:$0xff] %v2318
      %v2344 = vld [vmem:[#allocation1] sm:$0xff]
      %2346 = vst [vmem:[#allocation1] ss:$9 sm:$0xff] %v2319
      %2348 = vst [vmem:[%s2324] ss:$9 sm:$0xff] %v2320
      %v2349 = vld [vmem:[#allocation1] sm:$0xff]
      %v2354 = vunpack.c.l.b16 %v538
      %v2355 = vunpack.c.l.b16 %v539
      %v2356 = vunpack.c.l.b16 %v540
      %v2357 = vunpack.c.l.b16 %v541
      %v2358 = vpack.c.b16 %v2355, %v2354
      %v2359 = vpack.c.b16 %v2357, %v2356
      %2362 = vst [vmem:[#allocation1] ss:$9 sm:$0xff] %v2238
      %s2363 = scalar_lea.vmem [#allocation1], 1
      %2364 = vst [vmem:[%s2363] ss:$9 sm:$0xff] %v2307
      %s2365 = scalar_lea.vmem [#allocation1], 2
      %2366 = vst [vmem:[%s2365] ss:$9 sm:$0xff] %v2308
      %s2367 = scalar_lea.vmem [#allocation1], 3
      %2368 = vst [vmem:[%s2367] ss:$9 sm:$0xff] %v2309
      %s2369 = scalar_lea.vmem [#allocation1], 4
      %2370 = vst [vmem:[%s2369] ss:$9 sm:$0xff] %v2310
      %s2371 = scalar_lea.vmem [#allocation1], 5
      %2372 = vst [vmem:[%s2371] ss:$9 sm:$0xff] %v2238
      %s2373 = scalar_lea.vmem [#allocation1], 6
      %2374 = vst [vmem:[%s2373] ss:$9 sm:$0xff] %v2307
      %s2375 = scalar_lea.vmem [#allocation1], 7
      %2376 = vst [vmem:[%s2375] ss:$9 sm:$0xff] %v2308
      %v2377 = vld [vmem:[#allocation1] sm:$0xff]
      %2378 = vst [vmem:[#allocation1] ss:$9 sm:$0xff] %v2309
      %2379 = vst [vmem:[%s2363] ss:$9 sm:$0xff] %v2310
      %2380 = vst [vmem:[%s2365] ss:$9 sm:$0xff] %v2238
      %2381 = vst [vmem:[%s2367] ss:$9 sm:$0xff] %v2307
      %2382 = vst [vmem:[%s2369] ss:$9 sm:$0xff] %v2308
      %2383 = vst [vmem:[%s2371] ss:$9 sm:$0xff] %v2309
      %2384 = vst [vmem:[%s2373] ss:$9 sm:$0xff] %v2310
      %2385 = vst [vmem:[%s2375] ss:$9 sm:$0xff] %v2238
      %v2386 = vld [vmem:[#allocation1] sm:$0xff]
      %2387 = vst [vmem:[#allocation1] ss:$9 sm:$0xff] %v2307
      %2388 = vst [vmem:[%s2363] ss:$9 sm:$0xff] %v2308
      %2389 = vst [vmem:[%s2365] ss:$9 sm:$0xff] %v2309
      %2390 = vst [vmem:[%s2367] ss:$9 sm:$0xff] %v2310
      %v2391 = vld [vmem:[#allocation1] sm:$0xff]
      %v2395 = vsel %vm669, %v2344, 0
      %v2397 = vsel %vm669, %v2349, 0
      %2399 = vmatpush.bf16.msra.mxu0 0
      %2400 = vmatpush.bf16.msra.mxu0 0
      %2401 = vmatpush.bf16.msra.mxu0 0
      %2402 = vmatpush.bf16.msra.mxu0 0
      %2403 = vmatpush.bf16.msra.mxu0 0
      %2404 = vmatpush.bf16.msra.mxu0 0
      %2405 = vmatpush.bf16.msra.mxu0 %v2359
      %2406 = vmatpush.bf16.msra.mxu0 %v2358
      %2407 = vmatmul.bf16.gmra.mxu0 %v2395
      %v2408 = vpop.f32.mrf.mxu0
      %v2409 = vadd.f32 %v2377, %v2408
      %v2410 = vpop.f32.mrf.mxu0
      %v2411 = vadd.f32 %v2386, %v2410
      %2412 = vmatmul.bf16.gmra.mxu0 %v2397
      %v2413 = vpop.f32.mrf.mxu0
      %v2414 = vadd.f32 %v2391, %v2413
      %v2415 = vpop.f32.mrf.mxu0
      %2416 = vdwg.mxu0
      %v2420 = vrot.slane %v2409, 1
      %v2421 = vrot.slane %v2409, 2
      %v2422 = vrot.slane %v2409, 3
      %v2423 = vrot.slane %v2409, 4
      %v2424 = vrot.slane %v2409, 5
      %v2425 = vrot.slane %v2409, 6
      %v2426 = vrot.slane %v2409, 7
      %v2427 = vrot.slane %v2411, 1
      %v2428 = vrot.slane %v2411, 2
      %v2429 = vrot.slane %v2411, 3
      %v2430 = vrot.slane %v2411, 4
      %v2431 = vrot.slane %v2411, 5
      %v2432 = vrot.slane %v2411, 6
      %v2433 = vrot.slane %v2411, 7
      %v2434 = vrot.slane %v2414, 1
      %v2435 = vrot.slane %v2414, 2
      %v2436 = vrot.slane %v2414, 3
      %2437 = vst [vmem:[#allocation1] ss:$9 sm:$0xff] %v2409
      %s2438 = scalar_lea.vmem [#allocation1], 1
      %2439 = vst [vmem:[%s2438] ss:$9 sm:$0xff] %v2420
      %s2440 = scalar_lea.vmem [#allocation1], 2
      %2441 = vst [vmem:[%s2440] ss:$9 sm:$0xff] %v2421
      %s2442 = scalar_lea.vmem [#allocation1], 3
      %2443 = vst [vmem:[%s2442] ss:$9 sm:$0xff] %v2422
      %s2444 = scalar_lea.vmem [#allocation1], 4
      %2445 = vst [vmem:[%s2444] ss:$9 sm:$0xff] %v2423
      %v2446 = vld [vmem:[#allocation1] sm:$0xff]
      %2447 = vst [vmem:[#allocation1] ss:$9 sm:$0xff] %v2424
      %2448 = vst [vmem:[%s2438] ss:$9 sm:$0xff] %v2425
      %2449 = vst [vmem:[%s2440] ss:$9 sm:$0xff] %v2426
      %2450 = vst [vmem:[%s2442] ss:$9 sm:$0xff] %v2411
      %2451 = vst [vmem:[%s2444] ss:$9 sm:$0xff] %v2427
      %v2452 = vld [vmem:[#allocation1] sm:$0xff]
      %2453 = vst [vmem:[#allocation1] ss:$9 sm:$0xff] %v2428
      %2454 = vst [vmem:[%s2438] ss:$9 sm:$0xff] %v2429
      %2455 = vst [vmem:[%s2440] ss:$9 sm:$0xff] %v2430
      %2456 = vst [vmem:[%s2442] ss:$9 sm:$0xff] %v2431
      %2457 = vst [vmem:[%s2444] ss:$9 sm:$0xff] %v2432
      %v2458 = vld [vmem:[#allocation1] sm:$0xff]
      %2459 = vst [vmem:[#allocation1] ss:$9 sm:$0xff] %v2433
      %2460 = vst [vmem:[%s2438] ss:$9 sm:$0xff] %v2414
      %2461 = vst [vmem:[%s2440] ss:$9 sm:$0xff] %v2434
      %2462 = vst [vmem:[%s2442] ss:$9 sm:$0xff] %v2435
      %2463 = vst [vmem:[%s2444] ss:$9 sm:$0xff] %v2436
      %v2464 = vld [vmem:[#allocation1] sm:$0xff]
      %v2469 = vadd.f32 %v418, %v2446
      %v2470 = vadd.f32 %v419, %v2452
      %v2471 = vadd.f32 %v420, %v2458
      %v2472 = vadd.f32 %v421, %v2464
      %v2473 = vld [vmem:[%s6] sm:$0x1]
      %v2474 = vld [vmem:[%s7] sm:$0x1]
      %v2475 = vsel %vm424, %v2469, 0.0
      %2476 = vadd.xlane.f32.xlu0 %v2475
      %v2477 = vpop.xlane.xlu0 %2476
      %v2478 = vsel %vm424, %v2470, 0.0
      %2479 = vadd.xlane.f32.xlu0 %v2478
      %v2480 = vpop.xlane.xlu0 %2479
      %v2481 = vsel %vm424, %v2471, 0.0
      %2482 = vadd.xlane.f32.xlu0 %v2481
      %v2483 = vpop.xlane.xlu0 %2482
      %v2484 = vsel %vm424, %v2472, 0.0
      %2485 = vadd.xlane.f32.xlu0 %v2484
      %v2486 = vpop.xlane.xlu0 %2485
      %v2487 = vmul.f32 %v2477, %v443
      %v2488 = vmul.f32 %v2480, %v443
      %v2489 = vmul.f32 %v2483, %v443
      %v2490 = vmul.f32 %v2486, %v443
      %v2491 = vsub.f32 %v2469, %v2487
      %v2492 = vsub.f32 %v2470, %v2488
      %v2493 = vsub.f32 %v2471, %v2489
      %v2494 = vsub.f32 %v2472, %v2490
      %v2495 = vmul.f32 %v2491, %v2491
      %v2496 = vmul.f32 %v2492, %v2492
      %v2497 = vmul.f32 %v2493, %v2493
      %v2498 = vmul.f32 %v2494, %v2494
      %v2499 = vsel %vm424, %v2495, 0.0
      %2500 = vadd.xlane.f32.xlu0 %v2499
      %v2501 = vpop.xlane.xlu0 %2500
      %v2502 = vsel %vm424, %v2496, 0.0
      %2503 = vadd.xlane.f32.xlu0 %v2502
      %v2504 = vpop.xlane.xlu0 %2503
      %v2505 = vsel %vm424, %v2497, 0.0
      %2506 = vadd.xlane.f32.xlu0 %v2505
      %v2507 = vpop.xlane.xlu0 %2506
      %v2508 = vsel %vm424, %v2498, 0.0
      %2509 = vadd.xlane.f32.xlu0 %v2508
      %v2510 = vpop.xlane.xlu0 %2509
      %v2511 = vmul.f32 %v2501, %v443
      %v2512 = vmul.f32 %v2504, %v443
      %v2513 = vmul.f32 %v2507, %v443
      %v2514 = vmul.f32 %v2510, %v443
      %v2515 = vadd.f32 %v2511, 1e-05
      %v2516 = vadd.f32 %v2512, 1e-05
      %v2517 = vadd.f32 %v2513, 1e-05
      %v2518 = vadd.f32 %v2514, 1e-05
      %v2519 = vrsqrt.pop %v2515
      %v2520 = vmul.f32 %v2519, %v2515
      %v2521 = vmul.f32 %v2520, %v2519
      %v2522 = vmul.f32 0.5, %v2521
      %v2523 = vsub.f32 1.5, %v2522
      %v2524 = vmul.f32 %v2519, %v2523
      %vm2525 = vweird.f32 %v2515
      %vm2526 = vweird.f32 %v2519
      %vm2527 = vmor %vm2525, %vm2526
      %v2528 = vsel %vm2527, %v2519, %v2524
      %v2529 = vrsqrt.pop %v2516
      %v2530 = vmul.f32 %v2529, %v2516
      %v2531 = vmul.f32 %v2530, %v2529
      %v2532 = vmul.f32 0.5, %v2531
      %v2533 = vsub.f32 1.5, %v2532
      %v2534 = vmul.f32 %v2529, %v2533
      %vm2535 = vweird.f32 %v2516
      %vm2536 = vweird.f32 %v2529
      %vm2537 = vmor %vm2535, %vm2536
      %v2538 = vsel %vm2537, %v2529, %v2534
      %v2539 = vrsqrt.pop %v2517
      %v2540 = vmul.f32 %v2539, %v2517
      %v2541 = vmul.f32 %v2540, %v2539
      %v2542 = vmul.f32 0.5, %v2541
      %v2543 = vsub.f32 1.5, %v2542
      %v2544 = vmul.f32 %v2539, %v2543
      %vm2545 = vweird.f32 %v2517
      %vm2546 = vweird.f32 %v2539
      %vm2547 = vmor %vm2545, %vm2546
      %v2548 = vsel %vm2547, %v2539, %v2544
      %v2549 = vrsqrt.pop %v2518
      %v2550 = vmul.f32 %v2549, %v2518
      %v2551 = vmul.f32 %v2550, %v2549
      %v2552 = vmul.f32 0.5, %v2551
      %v2553 = vsub.f32 1.5, %v2552
      %v2554 = vmul.f32 %v2549, %v2553
      %vm2555 = vweird.f32 %v2518
      %vm2556 = vweird.f32 %v2549
      %vm2557 = vmor %vm2555, %vm2556
      %v2558 = vsel %vm2557, %v2549, %v2554
      %v2559 = vmul.f32 %v2491, %v2528
      %v2560 = vmul.f32 %v2492, %v2538
      %v2561 = vmul.f32 %v2493, %v2548
      %v2562 = vmul.f32 %v2494, %v2558
      %v2564 = vperm.slane %v2473, 0
      %v2566 = vmul.f32 %v2559, %v2564
      %v2567 = vmul.f32 %v2560, %v2564
      %v2568 = vmul.f32 %v2561, %v2564
      %v2569 = vmul.f32 %v2562, %v2564
      %v2571 = vperm.slane %v2474, 0
      %v2573 = vadd.f32 %v2566, %v2571
      %v2574 = vadd.f32 %v2567, %v2571
      %v2575 = vadd.f32 %v2568, %v2571
      %v2576 = vadd.f32 %v2569, %v2571
      %v2577 = vpack.c.bf16 %v2573, %v2573
      %v2578 = vpack.c.bf16 %v2574, %v2574
      %v2579 = vpack.c.bf16 %v2575, %v2575
      %v2580 = vpack.c.bf16 %v2576, %v2576
      %v2581 = vld [vmem:[%s8] sm:$0xf]
      %v2582 = vld [vmem:[%s8 + $0x4] sm:$0xf]
      %v2583 = vld [vmem:[%s8 + $0x8] sm:$0xf]
      %v2584 = vld [vmem:[%s8 + $0xc] sm:$0xf]
      %v2585 = vld [vmem:[%s9] sm:$0x1]
      %v2587 = vperm.slane %v2585, 0
      %v2592 = vrot.slane %v2577, 3
      %v2593 = vrot.slane %v2578, 3
      %v2594 = vrot.slane %v2579, 3
      %v2595 = vrot.slane %v2580, 3
      %v2598 = vsel %vm555, %v2577, %v2592
      %v2600 = vsel %vm560, %v2577, %v2592
      %v2602 = vrot.slane %v2600, 1
      %v2603 = vsel %vm564, %v2577, %v2592
      %v2605 = vrot.slane %v2603, 2
      %v2608 = vsel %vm555, %v2578, %v2593
      %v2610 = vsel %vm560, %v2578, %v2593
      %v2612 = vrot.slane %v2610, 1
      %v2613 = vsel %vm564, %v2578, %v2593
      %v2615 = vrot.slane %v2613, 2
      %v2618 = vsel %vm555, %v2579, %v2594
      %v2620 = vsel %vm560, %v2579, %v2594
      %v2622 = vrot.slane %v2620, 1
      %v2623 = vsel %vm564, %v2579, %v2594
      %v2625 = vrot.slane %v2623, 2
      %v2628 = vsel %vm555, %v2580, %v2595
      %v2630 = vsel %vm560, %v2580, %v2595
      %v2632 = vrot.slane %v2630, 1
      %v2633 = vsel %vm564, %v2580, %v2595
      %v2635 = vrot.slane %v2633, 2
      %v2636 = vunpack.i.l.s16 %v2598
      %v2637 = vunpack.i.h.s16 %v2598
      %v2638 = vunpack.i.l.s16 %v2602
      %v2639 = vunpack.i.h.s16 %v2602
      %v2640 = vunpack.i.l.s16 %v2605
      %v2641 = vunpack.i.l.s16 %v2608
      %v2642 = vunpack.i.h.s16 %v2608
      %v2643 = vunpack.i.l.s16 %v2612
      %v2644 = vunpack.i.h.s16 %v2612
      %v2645 = vunpack.i.l.s16 %v2615
      %v2646 = vunpack.i.l.s16 %v2618
      %v2647 = vunpack.i.h.s16 %v2618
      %v2648 = vunpack.i.l.s16 %v2622
      %v2649 = vunpack.i.h.s16 %v2622
      %v2650 = vunpack.i.l.s16 %v2625
      %v2651 = vunpack.i.l.s16 %v2628
      %v2652 = vunpack.i.h.s16 %v2628
      %v2653 = vunpack.i.l.s16 %v2632
      %v2654 = vunpack.i.h.s16 %v2632
      %v2655 = vunpack.i.l.s16 %v2635
      %v2656 = vrot.slane %v2587, 1
      %v2657 = vrot.slane %v2587, 2
      %v2658 = vrot.slane %v2587, 3
      %v2659 = vrot.slane %v2587, 4
      %v2660 = vpack.i.b16 %v2637, %v2636
      %v2661 = vpack.i.b16 %v2639, %v2638
      %v2662 = vpack.i.b16 %v2641, %v2640
      %v2663 = vpack.i.b16 %v2643, %v2642
      %v2664 = vpack.i.b16 %v2645, %v2644
      %v2665 = vpack.i.b16 %v2647, %v2646
      %v2666 = vpack.i.b16 %v2649, %v2648
      %v2667 = vpack.i.b16 %v2651, %v2650
      %v2668 = vpack.i.b16 %v2653, %v2652
      %v2669 = vpack.i.b16 %v2655, %v2654
      %2671 = vst [vmem:[#allocation1] ss:$9 sm:$0xff] %v2660
      %s2673 = scalar_lea.vmem [#allocation1], 1
      %2674 = vst [vmem:[%s2673] ss:$9 sm:$0xff] %v2661
      %s2676 = scalar_lea.vmem [#allocation1], 2
      %2677 = vst [vmem:[%s2676] ss:$9 sm:$0xff] %v2662
      %s2679 = scalar_lea.vmem [#allocation1], 3
      %2680 = vst [vmem:[%s2679] ss:$9 sm:$0xff] %v2663
      %s2682 = scalar_lea.vmem [#allocation1], 4
      %2683 = vst [vmem:[%s2682] ss:$9 sm:$0xff] %v2664
      %s2685 = scalar_lea.vmem [#allocation1], 5
      %2686 = vst [vmem:[%s2685] ss:$9 sm:$0xff] %v2665
      %s2688 = scalar_lea.vmem [#allocation1], 6
      %2689 = vst [vmem:[%s2688] ss:$9 sm:$0xff] %v2666
      %s2691 = scalar_lea.vmem [#allocation1], 7
      %2692 = vst [vmem:[%s2691] ss:$9 sm:$0xff] %v2667
      %v2693 = vld [vmem:[#allocation1] sm:$0xff]
      %2695 = vst [vmem:[#allocation1] ss:$9 sm:$0xff] %v2668
      %2697 = vst [vmem:[%s2673] ss:$9 sm:$0xff] %v2669
      %v2698 = vld [vmem:[#allocation1] sm:$0xff]
      %v2703 = vunpack.c.l.b16 %v2581
      %v2704 = vunpack.c.l.b16 %v2582
      %v2705 = vunpack.c.l.b16 %v2583
      %v2706 = vunpack.c.l.b16 %v2584
      %v2707 = vpack.c.b16 %v2704, %v2703
      %v2708 = vpack.c.b16 %v2706, %v2705
      %2711 = vst [vmem:[#allocation1] ss:$9 sm:$0xff] %v2587
      %s2712 = scalar_lea.vmem [#allocation1], 1
      %2713 = vst [vmem:[%s2712] ss:$9 sm:$0xff] %v2656
      %s2714 = scalar_lea.vmem [#allocation1], 2
      %2715 = vst [vmem:[%s2714] ss:$9 sm:$0xff] %v2657
      %s2716 = scalar_lea.vmem [#allocation1], 3
      %2717 = vst [vmem:[%s2716] ss:$9 sm:$0xff] %v2658
      %s2718 = scalar_lea.vmem [#allocation1], 4
      %2719 = vst [vmem:[%s2718] ss:$9 sm:$0xff] %v2659
      %s2720 = scalar_lea.vmem [#allocation1], 5
      %2721 = vst [vmem:[%s2720] ss:$9 sm:$0xff] %v2587
      %s2722 = scalar_lea.vmem [#allocation1], 6
      %2723 = vst [vmem:[%s2722] ss:$9 sm:$0xff] %v2656
      %s2724 = scalar_lea.vmem [#allocation1], 7
      %2725 = vst [vmem:[%s2724] ss:$9 sm:$0xff] %v2657
      %v2726 = vld [vmem:[#allocation1] sm:$0xff]
      %2727 = vst [vmem:[#allocation1] ss:$9 sm:$0xff] %v2658
      %2728 = vst [vmem:[%s2712] ss:$9 sm:$0xff] %v2659
      %2729 = vst [vmem:[%s2714] ss:$9 sm:$0xff] %v2587
      %2730 = vst [vmem:[%s2716] ss:$9 sm:$0xff] %v2656
      %2731 = vst [vmem:[%s2718] ss:$9 sm:$0xff] %v2657
      %2732 = vst [vmem:[%s2720] ss:$9 sm:$0xff] %v2658
      %2733 = vst [vmem:[%s2722] ss:$9 sm:$0xff] %v2659
      %2734 = vst [vmem:[%s2724] ss:$9 sm:$0xff] %v2587
      %v2735 = vld [vmem:[#allocation1] sm:$0xff]
      %2736 = vst [vmem:[#allocation1] ss:$9 sm:$0xff] %v2656
      %2737 = vst [vmem:[%s2712] ss:$9 sm:$0xff] %v2657
      %2738 = vst [vmem:[%s2714] ss:$9 sm:$0xff] %v2658
      %2739 = vst [vmem:[%s2716] ss:$9 sm:$0xff] %v2659
      %v2740 = vld [vmem:[#allocation1] sm:$0xff]
      %v2744 = vsel %vm669, %v2693, 0
      %v2746 = vsel %vm669, %v2698, 0
      %2748 = vmatpush.bf16.msra.mxu0 0
      %2749 = vmatpush.bf16.msra.mxu0 0
      %2750 = vmatpush.bf16.msra.mxu0 0
      %2751 = vmatpush.bf16.msra.mxu0 0
      %2752 = vmatpush.bf16.msra.mxu0 0
      %2753 = vmatpush.bf16.msra.mxu0 0
      %2754 = vmatpush.bf16.msra.mxu0 %v2708
      %2755 = vmatpush.bf16.msra.mxu0 %v2707
      %2756 = vmatmul.bf16.gmra.mxu0 %v2744
      %v2757 = vpop.f32.mrf.mxu0
      %v2758 = vadd.f32 %v2726, %v2757
      %v2759 = vpop.f32.mrf.mxu0
      %v2760 = vadd.f32 %v2735, %v2759
      %2761 = vmatmul.bf16.gmra.mxu0 %v2746
      %v2762 = vpop.f32.mrf.mxu0
      %v2763 = vadd.f32 %v2740, %v2762
      %v2764 = vpop.f32.mrf.mxu0
      %2765 = vdwg.mxu0
      %v2769 = vrot.slane %v2758, 1
      %v2770 = vrot.slane %v2758, 2
      %v2771 = vrot.slane %v2758, 3
      %v2772 = vrot.slane %v2758, 4
      %v2773 = vrot.slane %v2758, 5
      %v2774 = vrot.slane %v2758, 6
      %v2775 = vrot.slane %v2758, 7
      %v2776 = vrot.slane %v2760, 1
      %v2777 = vrot.slane %v2760, 2
      %v2778 = vrot.slane %v2760, 3
      %v2779 = vrot.slane %v2760, 4
      %v2780 = vrot.slane %v2760, 5
      %v2781 = vrot.slane %v2760, 6
      %v2782 = vrot.slane %v2760, 7
      %v2783 = vrot.slane %v2763, 1
      %v2784 = vrot.slane %v2763, 2
      %v2785 = vrot.slane %v2763, 3
      %v2803 = vmul.f32 %v2758, 0.5
      %v2804 = vmul.f32 %v2769, 0.5
      %v2805 = vmul.f32 %v2770, 0.5
      %v2806 = vmul.f32 %v2771, 0.5
      %v2807 = vmul.f32 %v2772, 0.5
      %v2808 = vmul.f32 %v2773, 0.5
      %v2809 = vmul.f32 %v2774, 0.5
      %v2810 = vmul.f32 %v2775, 0.5
      %v2811 = vmul.f32 %v2760, 0.5
      %v2812 = vmul.f32 %v2776, 0.5
      %v2813 = vmul.f32 %v2777, 0.5
      %v2814 = vmul.f32 %v2778, 0.5
      %v2815 = vmul.f32 %v2779, 0.5
      %v2816 = vmul.f32 %v2780, 0.5
      %v2817 = vmul.f32 %v2781, 0.5
      %v2818 = vmul.f32 %v2782, 0.5
      %v2819 = vmul.f32 %v2763, 0.5
      %v2820 = vmul.f32 %v2783, 0.5
      %v2821 = vmul.f32 %v2784, 0.5
      %v2822 = vmul.f32 %v2785, 0.5
      %v2823 = vmul.f32 %v2758, 0.044715
      %v2824 = vmul.f32 %v2769, 0.044715
      %v2825 = vmul.f32 %v2770, 0.044715
      %v2826 = vmul.f32 %v2771, 0.044715
      %v2827 = vmul.f32 %v2772, 0.044715
      %v2828 = vmul.f32 %v2773, 0.044715
      %v2829 = vmul.f32 %v2774, 0.044715
      %v2830 = vmul.f32 %v2775, 0.044715
      %v2831 = vmul.f32 %v2760, 0.044715
      %v2832 = vmul.f32 %v2776, 0.044715
      %v2833 = vmul.f32 %v2777, 0.044715
      %v2834 = vmul.f32 %v2778, 0.044715
      %v2835 = vmul.f32 %v2779, 0.044715
      %v2836 = vmul.f32 %v2780, 0.044715
      %v2837 = vmul.f32 %v2781, 0.044715
      %v2838 = vmul.f32 %v2782, 0.044715
      %v2839 = vmul.f32 %v2763, 0.044715
      %v2840 = vmul.f32 %v2783, 0.044715
      %v2841 = vmul.f32 %v2784, 0.044715
      %v2842 = vmul.f32 %v2785, 0.044715
      %v2843 = vmul.f32 %v2823, %v2758
      %v2844 = vmul.f32 %v2824, %v2769
      %v2845 = vmul.f32 %v2825, %v2770
      %v2846 = vmul.f32 %v2826, %v2771
      %v2847 = vmul.f32 %v2827, %v2772
      %v2848 = vmul.f32 %v2828, %v2773
      %v2849 = vmul.f32 %v2829, %v2774
      %v2850 = vmul.f32 %v2830, %v2775
      %v2851 = vmul.f32 %v2831, %v2760
      %v2852 = vmul.f32 %v2832, %v2776
      %v2853 = vmul.f32 %v2833, %v2777
      %v2854 = vmul.f32 %v2834, %v2778
      %v2855 = vmul.f32 %v2835, %v2779
      %v2856 = vmul.f32 %v2836, %v2780
      %v2857 = vmul.f32 %v2837, %v2781
      %v2858 = vmul.f32 %v2838, %v2782
      %v2859 = vmul.f32 %v2839, %v2763
      %v2860 = vmul.f32 %v2840, %v2783
      %v2861 = vmul.f32 %v2841, %v2784
      %v2862 = vmul.f32 %v2842, %v2785
      %v2863 = vmul.f32 %v2843, %v2758
      %v2864 = vmul.f32 %v2844, %v2769
      %v2865 = vmul.f32 %v2845, %v2770
      %v2866 = vmul.f32 %v2846, %v2771
      %v2867 = vmul.f32 %v2847, %v2772
      %v2868 = vmul.f32 %v2848, %v2773
      %v2869 = vmul.f32 %v2849, %v2774
      %v2870 = vmul.f32 %v2850, %v2775
      %v2871 = vmul.f32 %v2851, %v2760
      %v2872 = vmul.f32 %v2852, %v2776
      %v2873 = vmul.f32 %v2853, %v2777
      %v2874 = vmul.f32 %v2854, %v2778
      %v2875 = vmul.f32 %v2855, %v2779
      %v2876 = vmul.f32 %v2856, %v2780
      %v2877 = vmul.f32 %v2857, %v2781
      %v2878 = vmul.f32 %v2858, %v2782
      %v2879 = vmul.f32 %v2859, %v2763
      %v2880 = vmul.f32 %v2860, %v2783
      %v2881 = vmul.f32 %v2861, %v2784
      %v2882 = vmul.f32 %v2862, %v2785
      %v2883 = vadd.f32 %v2758, %v2863
      %v2884 = vadd.f32 %v2769, %v2864
      %v2885 = vadd.f32 %v2770, %v2865
      %v2886 = vadd.f32 %v2771, %v2866
      %v2887 = vadd.f32 %v2772, %v2867
      %v2888 = vadd.f32 %v2773, %v2868
      %v2889 = vadd.f32 %v2774, %v2869
      %v2890 = vadd.f32 %v2775, %v2870
      %v2891 = vadd.f32 %v2760, %v2871
      %v2892 = vadd.f32 %v2776, %v2872
      %v2893 = vadd.f32 %v2777, %v2873
      %v2894 = vadd.f32 %v2778, %v2874
      %v2895 = vadd.f32 %v2779, %v2875
      %v2896 = vadd.f32 %v2780, %v2876
      %v2897 = vadd.f32 %v2781, %v2877
      %v2898 = vadd.f32 %v2782, %v2878
      %v2899 = vadd.f32 %v2763, %v2879
      %v2900 = vadd.f32 %v2783, %v2880
      %v2901 = vadd.f32 %v2784, %v2881
      %v2902 = vadd.f32 %v2785, %v2882
      %v2903 = vmul.f32 %v2883, 0.7978846
      %v2904 = vmul.f32 %v2884, 0.7978846
      %v2905 = vmul.f32 %v2885, 0.7978846
      %v2906 = vmul.f32 %v2886, 0.7978846
      %v2907 = vmul.f32 %v2887, 0.7978846
      %v2908 = vmul.f32 %v2888, 0.7978846
      %v2909 = vmul.f32 %v2889, 0.7978846
      %v2910 = vmul.f32 %v2890, 0.7978846
      %v2911 = vmul.f32 %v2891, 0.7978846
      %v2912 = vmul.f32 %v2892, 0.7978846
      %v2913 = vmul.f32 %v2893, 0.7978846
      %v2914 = vmul.f32 %v2894, 0.7978846
      %v2915 = vmul.f32 %v2895, 0.7978846
      %v2916 = vmul.f32 %v2896, 0.7978846
      %v2917 = vmul.f32 %v2897, 0.7978846
      %v2918 = vmul.f32 %v2898, 0.7978846
      %v2919 = vmul.f32 %v2899, 0.7978846
      %v2920 = vmul.f32 %v2900, 0.7978846
      %v2921 = vmul.f32 %v2901, 0.7978846
      %v2922 = vmul.f32 %v2902, 0.7978846
      %v2923 = vtanh.pop %v2903
      %v2924 = vtanh.pop %v2904
      %v2925 = vtanh.pop %v2905
      %v2926 = vtanh.pop %v2906
      %v2927 = vtanh.pop %v2907
      %v2928 = vtanh.pop %v2908
      %v2929 = vtanh.pop %v2909
      %v2930 = vtanh.pop %v2910
      %v2931 = vtanh.pop %v2911
      %v2932 = vtanh.pop %v2912
      %v2933 = vtanh.pop %v2913
      %v2934 = vtanh.pop %v2914
      %v2935 = vtanh.pop %v2915
      %v2936 = vtanh.pop %v2916
      %v2937 = vtanh.pop %v2917
      %v2938 = vtanh.pop %v2918
      %v2939 = vtanh.pop %v2919
      %v2940 = vtanh.pop %v2920
      %v2941 = vtanh.pop %v2921
      %v2942 = vtanh.pop %v2922
      %v2943 = vadd.f32 %v2923, 1.0
      %v2944 = vadd.f32 %v2924, 1.0
      %v2945 = vadd.f32 %v2925, 1.0
      %v2946 = vadd.f32 %v2926, 1.0
      %v2947 = vadd.f32 %v2927, 1.0
      %v2948 = vadd.f32 %v2928, 1.0
      %v2949 = vadd.f32 %v2929, 1.0
      %v2950 = vadd.f32 %v2930, 1.0
      %v2951 = vadd.f32 %v2931, 1.0
      %v2952 = vadd.f32 %v2932, 1.0
      %v2953 = vadd.f32 %v2933, 1.0
      %v2954 = vadd.f32 %v2934, 1.0
      %v2955 = vadd.f32 %v2935, 1.0
      %v2956 = vadd.f32 %v2936, 1.0
      %v2957 = vadd.f32 %v2937, 1.0
      %v2958 = vadd.f32 %v2938, 1.0
      %v2959 = vadd.f32 %v2939, 1.0
      %v2960 = vadd.f32 %v2940, 1.0
      %v2961 = vadd.f32 %v2941, 1.0
      %v2962 = vadd.f32 %v2942, 1.0
      %v2963 = vmul.f32 %v2803, %v2943
      %v2964 = vmul.f32 %v2804, %v2944
      %v2965 = vmul.f32 %v2805, %v2945
      %v2966 = vmul.f32 %v2806, %v2946
      %v2967 = vmul.f32 %v2807, %v2947
      %v2968 = vmul.f32 %v2808, %v2948
      %v2969 = vmul.f32 %v2809, %v2949
      %v2970 = vmul.f32 %v2810, %v2950
      %v2971 = vmul.f32 %v2811, %v2951
      %v2972 = vmul.f32 %v2812, %v2952
      %v2973 = vmul.f32 %v2813, %v2953
      %v2974 = vmul.f32 %v2814, %v2954
      %v2975 = vmul.f32 %v2815, %v2955
      %v2976 = vmul.f32 %v2816, %v2956
      %v2977 = vmul.f32 %v2817, %v2957
      %v2978 = vmul.f32 %v2818, %v2958
      %v2979 = vmul.f32 %v2819, %v2959
      %v2980 = vmul.f32 %v2820, %v2960
      %v2981 = vmul.f32 %v2821, %v2961
      %v2982 = vmul.f32 %v2822, %v2962
      %3003 = vst [vmem:[#allocation1] ss:$9 sm:$0xff] %v2963
      %s3004 = scalar_lea.vmem [#allocation1], 1
      %3005 = vst [vmem:[%s3004] ss:$9 sm:$0xff] %v2964
      %s3006 = scalar_lea.vmem [#allocation1], 2
      %3007 = vst [vmem:[%s3006] ss:$9 sm:$0xff] %v2965
      %s3008 = scalar_lea.vmem [#allocation1], 3
      %3009 = vst [vmem:[%s3008] ss:$9 sm:$0xff] %v2966
      %s3010 = scalar_lea.vmem [#allocation1], 4
      %3011 = vst [vmem:[%s3010] ss:$9 sm:$0xff] %v2967
      %v3012 = vld [vmem:[#allocation1] sm:$0xff]
      %3013 = vst [vmem:[#allocation1] ss:$9 sm:$0xff] %v2968
      %3014 = vst [vmem:[%s3004] ss:$9 sm:$0xff] %v2969
      %3015 = vst [vmem:[%s3006] ss:$9 sm:$0xff] %v2970
      %3016 = vst [vmem:[%s3008] ss:$9 sm:$0xff] %v2971
      %3017 = vst [vmem:[%s3010] ss:$9 sm:$0xff] %v2972
      %v3018 = vld [vmem:[#allocation1] sm:$0xff]
      %3019 = vst [vmem:[#allocation1] ss:$9 sm:$0xff] %v2973
      %3020 = vst [vmem:[%s3004] ss:$9 sm:$0xff] %v2974
      %3021 = vst [vmem:[%s3006] ss:$9 sm:$0xff] %v2975
      %3022 = vst [vmem:[%s3008] ss:$9 sm:$0xff] %v2976
      %3023 = vst [vmem:[%s3010] ss:$9 sm:$0xff] %v2977
      %v3024 = vld [vmem:[#allocation1] sm:$0xff]
      %3025 = vst [vmem:[#allocation1] ss:$9 sm:$0xff] %v2978
      %3026 = vst [vmem:[%s3004] ss:$9 sm:$0xff] %v2979
      %3027 = vst [vmem:[%s3006] ss:$9 sm:$0xff] %v2980
      %3028 = vst [vmem:[%s3008] ss:$9 sm:$0xff] %v2981
      %3029 = vst [vmem:[%s3010] ss:$9 sm:$0xff] %v2982
      %v3030 = vld [vmem:[#allocation1] sm:$0xff]
      %v3035 = vpack.c.bf16 %v3012, %v3012
      %v3036 = vpack.c.bf16 %v3018, %v3018
      %v3037 = vpack.c.bf16 %v3024, %v3024
      %v3038 = vpack.c.bf16 %v3030, %v3030
      %v3039 = vld [vmem:[%s10] sm:$0xf]
      %v3040 = vld [vmem:[%s10 + $0x4] sm:$0xf]
      %v3041 = vld [vmem:[%s10 + $0x8] sm:$0xf]
      %v3042 = vld [vmem:[%s10 + $0xc] sm:$0xf]
      %v3043 = vld [vmem:[%s10 + $0x10] sm:$0xf]
      %v3044 = vld [vmem:[%s10 + $0x14] sm:$0xf]
      %v3045 = vld [vmem:[%s10 + $0x18] sm:$0xf]
      %v3046 = vld [vmem:[%s10 + $0x1c] sm:$0xf]
      %v3047 = vld [vmem:[%s11] sm:$0x1]
      %v3049 = vperm.slane %v3047, 0
      %v3054 = vrot.slane %v3035, 3
      %v3055 = vrot.slane %v3036, 3
      %v3056 = vrot.slane %v3037, 3
      %v3057 = vrot.slane %v3038, 3
      %v3060 = vsel %vm555, %v3035, %v3054
      %v3062 = vsel %vm560, %v3035, %v3054
      %v3064 = vrot.slane %v3062, 1
      %v3065 = vsel %vm564, %v3035, %v3054
      %v3067 = vrot.slane %v3065, 2
      %v3070 = vsel %vm555, %v3036, %v3055
      %v3072 = vsel %vm560, %v3036, %v3055
      %v3074 = vrot.slane %v3072, 1
      %v3075 = vsel %vm564, %v3036, %v3055
      %v3077 = vrot.slane %v3075, 2
      %v3080 = vsel %vm555, %v3037, %v3056
      %v3082 = vsel %vm560, %v3037, %v3056
      %v3084 = vrot.slane %v3082, 1
      %v3085 = vsel %vm564, %v3037, %v3056
      %v3087 = vrot.slane %v3085, 2
      %v3090 = vsel %vm555, %v3038, %v3057
      %v3092 = vsel %vm560, %v3038, %v3057
      %v3094 = vrot.slane %v3092, 1
      %v3095 = vsel %vm564, %v3038, %v3057
      %v3097 = vrot.slane %v3095, 2
      %v3098 = vunpack.i.l.s16 %v3060
      %v3099 = vunpack.i.h.s16 %v3060
      %v3100 = vunpack.i.l.s16 %v3064
      %v3101 = vunpack.i.h.s16 %v3064
      %v3102 = vunpack.i.l.s16 %v3067
      %v3103 = vunpack.i.l.s16 %v3070
      %v3104 = vunpack.i.h.s16 %v3070
      %v3105 = vunpack.i.l.s16 %v3074
      %v3106 = vunpack.i.h.s16 %v3074
      %v3107 = vunpack.i.l.s16 %v3077
      %v3108 = vunpack.i.l.s16 %v3080
      %v3109 = vunpack.i.h.s16 %v3080
      %v3110 = vunpack.i.l.s16 %v3084
      %v3111 = vunpack.i.h.s16 %v3084
      %v3112 = vunpack.i.l.s16 %v3087
      %v3113 = vunpack.i.l.s16 %v3090
      %v3114 = vunpack.i.h.s16 %v3090
      %v3115 = vunpack.i.l.s16 %v3094
      %v3116 = vunpack.i.h.s16 %v3094
      %v3117 = vunpack.i.l.s16 %v3097
      %v3118 = vrot.slane %v3049, 1
      %v3119 = vrot.slane %v3049, 2
      %v3120 = vrot.slane %v3049, 3
      %v3121 = vrot.slane %v3049, 4
      %v3122 = vpack.i.b16 %v3099, %v3098
      %v3123 = vpack.i.b16 %v3101, %v3100
      %v3124 = vpack.i.b16 %v3103, %v3102
      %v3125 = vpack.i.b16 %v3105, %v3104
      %v3126 = vpack.i.b16 %v3107, %v3106
      %v3127 = vpack.i.b16 %v3109, %v3108
      %v3128 = vpack.i.b16 %v3111, %v3110
      %v3129 = vpack.i.b16 %v3113, %v3112
      %v3130 = vpack.i.b16 %v3115, %v3114
      %v3131 = vpack.i.b16 %v3117, %v3116
      %3133 = vst [vmem:[#allocation1] ss:$9 sm:$0xff] %v3122
      %s3135 = scalar_lea.vmem [#allocation1], 1
      %3136 = vst [vmem:[%s3135] ss:$9 sm:$0xff] %v3123
      %s3138 = scalar_lea.vmem [#allocation1], 2
      %3139 = vst [vmem:[%s3138] ss:$9 sm:$0xff] %v3124
      %s3141 = scalar_lea.vmem [#allocation1], 3
      %3142 = vst [vmem:[%s3141] ss:$9 sm:$0xff] %v3125
      %s3144 = scalar_lea.vmem [#allocation1], 4
      %3145 = vst [vmem:[%s3144] ss:$9 sm:$0xff] %v3126
      %s3147 = scalar_lea.vmem [#allocation1], 5
      %3148 = vst [vmem:[%s3147] ss:$9 sm:$0xff] %v3127
      %s3150 = scalar_lea.vmem [#allocation1], 6
      %3151 = vst [vmem:[%s3150] ss:$9 sm:$0xff] %v3128
      %s3153 = scalar_lea.vmem [#allocation1], 7
      %3154 = vst [vmem:[%s3153] ss:$9 sm:$0xff] %v3129
      %v3155 = vld [vmem:[#allocation1] sm:$0xff]
      %3157 = vst [vmem:[#allocation1] ss:$9 sm:$0xff] %v3130
      %3159 = vst [vmem:[%s3135] ss:$9 sm:$0xff] %v3131
      %v3160 = vld [vmem:[#allocation1] sm:$0xff]
      %v3169 = vunpack.c.l.b16 %v3039
      %v3170 = vunpack.c.l.b16 %v3040
      %v3171 = vunpack.c.l.b16 %v3041
      %v3172 = vunpack.c.l.b16 %v3042
      %v3173 = vunpack.c.l.b16 %v3043
      %v3174 = vunpack.c.l.b16 %v3044
      %v3175 = vunpack.c.l.b16 %v3045
      %v3176 = vunpack.c.l.b16 %v3046
      %v3177 = vpack.c.b16 %v3170, %v3169
      %v3178 = vpack.c.b16 %v3172, %v3171
      %v3179 = vpack.c.b16 %v3174, %v3173
      %v3180 = vpack.c.b16 %v3176, %v3175
      %3185 = vst [vmem:[#allocation1] ss:$9 sm:$0xff] %v3049
      %s3186 = scalar_lea.vmem [#allocation1], 1
      %3187 = vst [vmem:[%s3186] ss:$9 sm:$0xff] %v3118
      %s3188 = scalar_lea.vmem [#allocation1], 2
      %3189 = vst [vmem:[%s3188] ss:$9 sm:$0xff] %v3119
      %s3190 = scalar_lea.vmem [#allocation1], 3
      %3191 = vst [vmem:[%s3190] ss:$9 sm:$0xff] %v3120
      %s3192 = scalar_lea.vmem [#allocation1], 4
      %3193 = vst [vmem:[%s3192] ss:$9 sm:$0xff] %v3121
      %s3194 = scalar_lea.vmem [#allocation1], 5
      %3195 = vst [vmem:[%s3194] ss:$9 sm:$0xff] %v3049
      %s3196 = scalar_lea.vmem [#allocation1], 6
      %3197 = vst [vmem:[%s3196] ss:$9 sm:$0xff] %v3118
      %s3198 = scalar_lea.vmem [#allocation1], 7
      %3199 = vst [vmem:[%s3198] ss:$9 sm:$0xff] %v3119
      %v3200 = vld [vmem:[#allocation1] sm:$0xff]
      %3201 = vst [vmem:[#allocation1] ss:$9 sm:$0xff] %v3120
      %3202 = vst [vmem:[%s3186] ss:$9 sm:$0xff] %v3121
      %3203 = vst [vmem:[%s3188] ss:$9 sm:$0xff] %v3049
      %3204 = vst [vmem:[%s3190] ss:$9 sm:$0xff] %v3118
      %3205 = vst [vmem:[%s3192] ss:$9 sm:$0xff] %v3119
      %3206 = vst [vmem:[%s3194] ss:$9 sm:$0xff] %v3120
      %3207 = vst [vmem:[%s3196] ss:$9 sm:$0xff] %v3121
      %3208 = vst [vmem:[%s3198] ss:$9 sm:$0xff] %v3049
      %v3209 = vld [vmem:[#allocation1] sm:$0xff]
      %3210 = vst [vmem:[#allocation1] ss:$9 sm:$0xff] %v3118
      %3211 = vst [vmem:[%s3186] ss:$9 sm:$0xff] %v3119
      %3212 = vst [vmem:[%s3188] ss:$9 sm:$0xff] %v3120
      %3213 = vst [vmem:[%s3190] ss:$9 sm:$0xff] %v3121
      %v3214 = vld [vmem:[#allocation1] sm:$0xff]
      %vm3218 = vcmask 523264
      %v3219 = vsel %vm3218, %v3155, 0
      %v3221 = vsel %vm3218, %v3160, 0
      %3223 = vmatpush.bf16.msra.mxu0 0
      %3224 = vmatpush.bf16.msra.mxu0 0
      %3225 = vmatpush.bf16.msra.mxu0 0
      %3226 = vmatpush.bf16.msra.mxu0 0
      %3227 = vmatpush.bf16.msra.mxu0 %v3180
      %3228 = vmatpush.bf16.msra.mxu0 %v3179
      %3229 = vmatpush.bf16.msra.mxu0 %v3178
      %3230 = vmatpush.bf16.msra.mxu0 %v3177
      %3231 = vmatmul.bf16.gmra.mxu0 %v3219
      %v3232 = vpop.f32.mrf.mxu0
      %v3233 = vadd.f32 %v3200, %v3232
      %v3234 = vpop.f32.mrf.mxu0
      %v3235 = vadd.f32 %v3209, %v3234
      %3236 = vmatmul.bf16.gmra.mxu0 %v3221
      %v3237 = vpop.f32.mrf.mxu0
      %v3238 = vadd.f32 %v3214, %v3237
      %v3239 = vpop.f32.mrf.mxu0
      %3240 = vdwg.mxu0
      %v3244 = vrot.slane %v3233, 1
      %v3245 = vrot.slane %v3233, 2
      %v3246 = vrot.slane %v3233, 3
      %v3247 = vrot.slane %v3233, 4
      %v3248 = vrot.slane %v3233, 5
      %v3249 = vrot.slane %v3233, 6
      %v3250 = vrot.slane %v3233, 7
      %v3251 = vrot.slane %v3235, 1
      %v3252 = vrot.slane %v3235, 2
      %v3253 = vrot.slane %v3235, 3
      %v3254 = vrot.slane %v3235, 4
      %v3255 = vrot.slane %v3235, 5
      %v3256 = vrot.slane %v3235, 6
      %v3257 = vrot.slane %v3235, 7
      %v3258 = vrot.slane %v3238, 1
      %v3259 = vrot.slane %v3238, 2
      %v3260 = vrot.slane %v3238, 3
      %3261 = vst [vmem:[#allocation1] ss:$9 sm:$0xff] %v3233
      %s3262 = scalar_lea.vmem [#allocation1], 1
      %3263 = vst [vmem:[%s3262] ss:$9 sm:$0xff] %v3244
      %s3264 = scalar_lea.vmem [#allocation1], 2
      %3265 = vst [vmem:[%s3264] ss:$9 sm:$0xff] %v3245
      %s3266 = scalar_lea.vmem [#allocation1], 3
      %3267 = vst [vmem:[%s3266] ss:$9 sm:$0xff] %v3246
      %s3268 = scalar_lea.vmem [#allocation1], 4
      %3269 = vst [vmem:[%s3268] ss:$9 sm:$0xff] %v3247
      %v3270 = vld [vmem:[#allocation1] sm:$0xff]
      %3271 = vst [vmem:[#allocation1] ss:$9 sm:$0xff] %v3248
      %3272 = vst [vmem:[%s3262] ss:$9 sm:$0xff] %v3249
      %3273 = vst [vmem:[%s3264] ss:$9 sm:$0xff] %v3250
      %3274 = vst [vmem:[%s3266] ss:$9 sm:$0xff] %v3235
      %3275 = vst [vmem:[%s3268] ss:$9 sm:$0xff] %v3251
      %v3276 = vld [vmem:[#allocation1] sm:$0xff]
      %3277 = vst [vmem:[#allocation1] ss:$9 sm:$0xff] %v3252
      %3278 = vst [vmem:[%s3262] ss:$9 sm:$0xff] %v3253
      %3279 = vst [vmem:[%s3264] ss:$9 sm:$0xff] %v3254
      %3280 = vst [vmem:[%s3266] ss:$9 sm:$0xff] %v3255
      %3281 = vst [vmem:[%s3268] ss:$9 sm:$0xff] %v3256
      %v3282 = vld [vmem:[#allocation1] sm:$0xff]
      %3283 = vst [vmem:[#allocation1] ss:$9 sm:$0xff] %v3257
      %3284 = vst [vmem:[%s3262] ss:$9 sm:$0xff] %v3238
      %3285 = vst [vmem:[%s3264] ss:$9 sm:$0xff] %v3258
      %3286 = vst [vmem:[%s3266] ss:$9 sm:$0xff] %v3259
      %3287 = vst [vmem:[%s3268] ss:$9 sm:$0xff] %v3260
      %v3288 = vld [vmem:[#allocation1] sm:$0xff]
      %v3293 = vadd.f32 %v2469, %v3270
      %v3294 = vadd.f32 %v2470, %v3276
      %v3295 = vadd.f32 %v2471, %v3282
      %v3296 = vadd.f32 %v2472, %v3288
      %3297 = vst.msk [vmem:[%s415] sm:$0x1f] %vm424, %v3293
      %3298 = vst.msk [vmem:[%s415 + $0x8] sm:$0x1f] %vm424, %v3294
      %3299 = vst.msk [vmem:[%s415 + $0x10] sm:$0x1f] %vm424, %v3295
      %3300 = vst.msk [vmem:[%s415 + $0x18] sm:$0x1f] %vm424, %v3296
      %s3301 = smul.u32 4, %s23
      %p3302 = scmp.lt.s32.totalorder %s3301, 7
      %s3303 = scalar_select %p3302, %s3301, 7
      %s3304 = smul.addr %s3303, 8
      %s3305 = scalar_lea.vmem %s12, %s3304
      // Predicated region
      $region69: #{video_vit_forward.8} parent=67 // pred_check
        %p3306 = pneg %p298
      $region70: #{video_vit_forward.8} parent=67 // pred_check_branch
        %3308 = sbr.rel (%p3306) target = $region72
      $region71: #{video_vit_forward.8} parent=67 // pred_region
        %s3309 = smul.u32 4, %s23
      $region72: #{video_vit_forward.8} parent=67 // pred_fallthru
        _
    $region68: #{video_vit_forward.8} parent=5 // pred_fallthru
      _
    %p3310 = scmp.le.s32.totalorder 2, %s18
    // Predicated region
    $region73: #{video_vit_forward.8} parent=5 // pred_check
      %p3311 = pneg %p3310
    $region74: #{video_vit_forward.8} parent=5 // pred_check_branch
      %3313 = sbr.rel (%p3311) target = $region76
    $region75: #{video_vit_forward.8} parent=5 // pred_region
      %s3314 = ssub.s32 %s18, 2
      // Predicated region
      $region77: #{video_vit_forward.8} parent=75 // pred_check
        %p3315 = pneg %p304
      $region78: #{video_vit_forward.8} parent=75 // pred_check_branch
        %3317 = sbr.rel (%p3315) target = $region80
      $region79: #{video_vit_forward.8} parent=75 // pred_region
        %s3318 = smul.u32 4, %s24
        %p3319 = scmp.lt.s32.totalorder %s3318, 7
        %s3320 = scalar_select %p3319, %s3318, 7
        %s3321 = smul.addr %s3320, 8
        %s3322 = scalar_lea.vmem %s12, %s3321
      $region80: #{video_vit_forward.8} parent=75 // pred_fallthru
        _
    $region76: #{video_vit_forward.8} parent=5 // pred_fallthru
      _
  $region6: #{video_vit_forward.8} parent=0 // loop_footer
    %s22 = sadd.s32 1, %s18
  $region7: #{video_vit_forward.8} parent=0 // loop_footer_branch
    %17 = sbr.rel target = $region3
  $region8: #{video_vit_forward.8} parent=0 // loop_exit
    _

</llo_original>
